<compile_context>
chip_gen: v7x
topology: tpu7x:2x2x1
jax: 0.10.0
libtpu: 0.0.40
codegen_flags: <defaults>
</compile_context>

<pallas_src>
import functools

import numpy as np
import jax
import jax.numpy as jnp
from jax import lax
from jax.experimental import pallas as pl
from jax.experimental.pallas import tpu as pltpu


def _cbam_kernel(x_ref, w1_ref, w2_ref, wm_ref, o_ref,
                 gated_ref, m2_ref, v_ref, *, B, W, HW, K):
    """One batch block: x_ref (B, C, HW), wm_ref (K*K, 2*B, HW)."""
    P = K // 2
    C = x_ref.shape[1]

    # ---------------- Channel attention: pooling (pass 1) ----------------
    # Per element: one wide lane reduction each for mean and max, packed as
    # two lanes of the shared (C, 2*B) stats matrix.
    for b in range(B):
        x = x_ref[b].astype(jnp.float32)                    # (C, HW)
        avg = jnp.mean(x, axis=1, keepdims=True)            # (C, 1)
        mx = jnp.max(x, axis=1, keepdims=True)              # (C, 1)
        col = lax.broadcasted_iota(jnp.int32, (C, 2), 1)
        v_ref[:, pl.ds(2 * b, 2)] = jnp.where(col == 0, avg, mx)

    # Fused MLP: one dot per layer over all 2*B columns (review item).
    V = v_ref[...]                                          # (C, 2B)
    Hm = jnp.maximum(
        jnp.dot(w1_ref[...], V, preferred_element_type=jnp.float32), 0.0)
    Z = jnp.dot(w2_ref[...], Hm, preferred_element_type=jnp.float32)  # (C, 2B)

    # ---------------- Channel gate + spatial pooling (pass 2) ----------------
    for b in range(B):
        x = x_ref[b].astype(jnp.float32)                    # (C, HW)
        ca = jax.nn.sigmoid(Z[:, 2 * b:2 * b + 1] + Z[:, 2 * b + 1:2 * b + 2])
        out_b = x * ca                                      # (C, HW) gated
        gated_ref[b] = out_b
        avg_sp = jnp.mean(out_b, axis=0, keepdims=True)     # (1, HW)
        max_sp = jnp.max(out_b, axis=0, keepdims=True)      # (1, HW)
        row = lax.broadcasted_iota(jnp.int32, (2, HW), 0)
        m2_ref[pl.ds(2 * b, 2), :] = jnp.where(row == 0, avg_sp, max_sp)

    # ---------------- Spatial attention: KxK conv over all 2B rows ----------------
    # Each tap = one lane roll (XLU) of the (2B, HW) slab + one FMA against the
    # pre-broadcast weight*mask tile; rolls are 2B-row dense (sublane packing).
    m2 = m2_ref[...]                                        # (2B, HW)
    acc = jnp.zeros((2 * B, HW), jnp.float32)
    for ky in range(K):
        for kx in range(K):
            t = ky * K + kx
            s = (ky - P) * W + (kx - P)                     # flat offset of this tap
            shifted = m2 if s == 0 else pltpu.roll(m2, shift=(-s) % HW, axis=1)
            acc = acc + wm_ref[t] * shifted

    # ---------------- Spatial gate + store (pass 3) ----------------
    for b in range(B):
        # rows 2b / 2b+1 hold the avg-channel / max-channel conv partials.
        sa = jax.nn.sigmoid(acc[2 * b:2 * b + 1, :] + acc[2 * b + 1:2 * b + 2, :])
        o_ref[b] = (gated_ref[b] * sa).astype(o_ref.dtype)  # (C, HW), lane-dense store


@functools.lru_cache(maxsize=None)
def _validity_mask(H, W, K):
    """(K*K, H*W) validity mask per flat position (zero where a tap would read
    outside the SAME-padded image).  Depends only on geometry -> cached."""
    P = K // 2
    ys = np.repeat(np.arange(H), W)
    xs = np.tile(np.arange(W), H)
    masks = np.zeros((K * K, H * W), np.float32)
    for ky in range(K):
        for kx in range(K):
            dy, dx = ky - P, kx - P
            valid = ((ys + dy >= 0) & (ys + dy < H) &
                     (xs + dx >= 0) & (xs + dx < W))
            masks[ky * K + kx] = valid.astype(np.float32)
    return jnp.asarray(masks)


def _choose_b_tile(N, C, HW, K, vmem_budget=8 * 1024 * 1024):
    """Largest batch tile that keeps >=2 grid steps (v7x megacore) and fits the
    per-step double-buffered blocks inside a conservative VMEM budget."""
    best = 1
    for bt in range(1, N + 1):
        if N % bt:
            continue
        if N >= 2 and N // bt < 2:
            continue  # keep both v7x TensorCores busy
        step_bytes = 4 * (4 * bt * C * HW             # x + out, double buffered
                          + 2 * K * K * 2 * bt * HW   # weight-mask, double buffered
                          + bt * C * HW + 2 * bt * HW)  # scratch
        if step_bytes > vmem_budget:
            continue
        best = bt
    return best


def cbam_pallas(x, w1, w2, wsp, kernel_size=7, b_tile=None):
    N, C, H, W = x.shape
    HW = H * W
    K = kernel_size
    Ch = w1.shape[0]

    B = _choose_b_tile(N, C, HW, K) if b_tile is None else b_tile
    assert N % B == 0, "batch must be divisible by the batch tile"

    x2 = x.reshape(N, C, HW)                                # lane-dense layout

    # conv weight * validity mask, interleaved per batch element:
    # wm[t, 2b + j, :] = wsp[j, ky, kx] * mask[t, :]   (j=0 avg-row, j=1 max-row)
    mask = _validity_mask(H, W, K)                          # (K*K, HW), cached
    w_flat = jnp.transpose(wsp.reshape(2, K * K)).astype(jnp.float32)  # (K*K, 2)
    wm = w_flat[:, :, None] * mask[:, None, :]              # (K*K, 2, HW)
    wm = jnp.tile(wm, (1, B, 1))                            # (K*K, 2B, HW)

    kernel = functools.partial(_cbam_kernel, B=B, W=W, HW=HW, K=K)

    # Advisory cost estimate so XLA can overlap surrounding ops.
    flops = N * (6 * C * HW + 4 * K * K * HW)
    transcendentals = N * (C + HW)
    bytes_accessed = 2 * N * C * HW * x.dtype.itemsize + int(wm.size) * 4

    out = pl.pallas_call(
        kernel,
        out_shape=jax.ShapeDtypeStruct((N, C, HW), x.dtype),
        grid=(N // B,),
        in_specs=[
            pl.BlockSpec((B, C, HW), lambda b: (b, 0, 0)),
            # w1/w2/wm are grid-invariant (constant index_map -> no re-DMA).
            # TODO(synk): at production wmask sizes, single-buffer these
            # (pl.Buffered(1)) to halve their VMEM footprint.
            pl.BlockSpec((Ch, C), lambda b: (0, 0)),
            pl.BlockSpec((C, Ch), lambda b: (0, 0)),
            pl.BlockSpec((K * K, 2 * B, HW), lambda b: (0, 0, 0)),
        ],
        out_specs=pl.BlockSpec((B, C, HW), lambda b: (b, 0, 0)),
        scratch_shapes=[
            pltpu.VMEM((B, C, HW), jnp.float32),    # channel-gated features
            pltpu.VMEM((2 * B, HW), jnp.float32),   # stacked [mean;max] maps
            pltpu.VMEM((C, 2 * B), jnp.float32),    # stacked pooled stats (MLP RHS)
        ],
        compiler_params=pltpu.CompilerParams(
            dimension_semantics=("parallel",),
            # Explicit scoped-VMEM limit (safe on v5e/v6e/v7x); raise toward
            # the physical budget for production-size blocks.
            vmem_limit_bytes=32 * 1024 * 1024,
        ),
        cost_estimate=pl.CostEstimate(
            flops=int(flops),
            transcendentals=int(transcendentals),
            bytes_accessed=int(bytes_accessed)),
    )(x2, w1, w2, wm)
    return out.reshape(N, C, H, W)


def cbam_ref(x, w1, w2, wsp):
    """Pure-JAX reference mirroring the PyTorch module."""
    avg = jnp.mean(x, axis=(2, 3), keepdims=True)
    mx = jnp.max(x, axis=(2, 3), keepdims=True)

    def mlp(v):
        h = jnp.maximum(jnp.einsum("oc,ncij->noij", w1, v), 0.0)
        return jnp.einsum("oc,ncij->noij", w2, h)

    ca = jax.nn.sigmoid(mlp(avg) + mlp(mx))
    out = x * ca
    avg_sp = jnp.mean(out, axis=1, keepdims=True)
    max_sp = jnp.max(out, axis=1, keepdims=True)
    cat = jnp.concatenate([avg_sp, max_sp], axis=1)
    sa = jax.lax.conv_general_dilated(
        cat, wsp[None], window_strides=(1, 1), padding="SAME",
        dimension_numbers=("NCHW", "OIHW", "NCHW"))
    return out * jax.nn.sigmoid(sa)


if __name__ == "__main__":
    key = jax.random.PRNGKey(0)
    N, C, H, W = 4, 8, 16, 16            # small, exercises B_TILE=2 / grid=(2,)
    ratio, K = 3, 7
    Ch = max(1, C // ratio)               # in_planes // ratio

    k_x, k1, k2, k3 = jax.random.split(key, 4)
    x = jax.random.normal(k_x, (N, C, H, W), dtype=jnp.float32)
    # Deterministic synthetic weights (shapes from the module __init__):
    w1 = jax.random.normal(k1, (Ch, C), dtype=jnp.float32) * 0.2     # fc1: (C//r, C, 1, 1)
    w2 = jax.random.normal(k2, (C, Ch), dtype=jnp.float32) * 0.2     # fc2: (C, C//r, 1, 1)
    wsp = jax.random.normal(k3, (2, K, K), dtype=jnp.float32) * 0.1  # conv1: (1, 2, 7, 7)

    cbam = jax.jit(cbam_pallas, static_argnames=("kernel_size", "b_tile"))
    y = jax.block_until_ready(cbam(x, w1, w2, wsp, kernel_size=K))

    y_ref = cbam_ref(x, w1, w2, wsp)
    err = float(jnp.max(jnp.abs(y - y_ref)))
    assert jnp.allclose(y, y_ref, atol=1e-4, rtol=1e-4), f"max abs err {err}"
    print("KERNEL_OK")
</pallas_src>

<mosaic_0001>
module attributes {stable_mosaic.version = 11 : i64} {
  func.func @_cbam_kernel(%arg0: i32, %arg1: memref<2x8x256xf32, #tpu.memory_space<vmem>>, %arg2: memref<2x8xf32, #tpu.memory_space<vmem>>, %arg3: memref<8x2xf32, #tpu.memory_space<vmem>>, %arg4: memref<49x4x256xf32, #tpu.memory_space<vmem>>, %arg5: memref<2x8x256xf32, #tpu.memory_space<vmem>>, %arg6: memref<2x8x256xf32, #tpu.memory_space<vmem>>, %arg7: memref<4x256xf32, #tpu.memory_space<vmem>>, %arg8: memref<8x4xf32, #tpu.memory_space<vmem>>) attributes {dimension_semantics = [#tpu.dimension_semantics<parallel>], iteration_bounds = array<i64: 2>, scalar_prefetch = 0 : i64, scratch_operands = 3 : i64, tpu.core_type = #tpu.core_type<tc>, window_params = [{transform_indices = @transform_0, window_bounds = array<i64: 2, 8, 256>}, {pipeline_mode = #tpu.pipeline_mode<synchronous>, transform_indices = @transform_1, window_bounds = array<i64: 2, 8>}, {pipeline_mode = #tpu.pipeline_mode<synchronous>, transform_indices = @transform_2, window_bounds = array<i64: 8, 2>}, {pipeline_mode = #tpu.pipeline_mode<synchronous>, transform_indices = @transform_3, window_bounds = array<i64: 49, 4, 256>}, {transform_indices = @transform_4, window_bounds = array<i64: 2, 8, 256>}]} {
    %c0 = arith.constant 0 : index
    %c0_0 = arith.constant 0 : index
    %c0_1 = arith.constant 0 : index
    %0 = vector.load %arg1[%c0, %c0_0, %c0_1] : memref<2x8x256xf32, #tpu.memory_space<vmem>>, vector<1x8x256xf32>
    %1 = vector.shape_cast %0 : vector<1x8x256xf32> to vector<8x256xf32>
    %cst = arith.constant dense<0.000000e+00> : vector<8xf32>
    %2 = vector.multi_reduction <add>, %1, %cst [1] : vector<8x256xf32> to vector<8xf32>
    %3 = vector.shape_cast %2 : vector<8xf32> to vector<8x1xf32>
    %cst_2 = arith.constant 2.560000e+02 : f32
    %4 = vector.broadcast %cst_2 : f32 to vector<8x1xf32>
    %5 = arith.divf %3, %4 : vector<8x1xf32>
    %cst_3 = arith.constant dense<0xFF800000> : vector<8xf32>
    %6 = vector.multi_reduction <maximumf>, %1, %cst_3 [1] : vector<8x256xf32> to vector<8xf32>
    %7 = vector.shape_cast %6 : vector<8xf32> to vector<8x1xf32>
    %8 = tpu.iota {dimensions = array<i32: 1>} : vector<8x2xi32>
    %c0_i32 = arith.constant 0 : i32
    %9 = vector.broadcast %c0_i32 : i32 to vector<8x2xi32>
    %10 = arith.cmpi eq, %8, %9 : vector<8x2xi32>
    %11 = vector.shape_cast %5 : vector<8x1xf32> to vector<8x1xf32>
    %12 = vector.broadcast %11 : vector<8x1xf32> to vector<8x2xf32>
    %13 = vector.shape_cast %7 : vector<8x1xf32> to vector<8x1xf32>
    %14 = vector.broadcast %13 : vector<8x1xf32> to vector<8x2xf32>
    %15 = arith.select %10, %12, %14 : vector<8x2xi1>, vector<8x2xf32>
    %c0_4 = arith.constant 0 : index
    %c0_5 = arith.constant 0 : index
    %16 = vector.load %arg8[%c0_4, %c0_5] : memref<8x4xf32, #tpu.memory_space<vmem>>, vector<8x2xf32>
    tpu.vector_store %arg8[%c0_4, %c0_5], %15 {strides = array<i32>} : memref<8x4xf32, #tpu.memory_space<vmem>>, vector<8x2xf32>,
    %c1 = arith.constant 1 : index
    %c0_6 = arith.constant 0 : index
    %c0_7 = arith.constant 0 : index
    %17 = vector.load %arg1[%c1, %c0_6, %c0_7] : memref<2x8x256xf32, #tpu.memory_space<vmem>>, vector<1x8x256xf32>
    %18 = vector.shape_cast %17 : vector<1x8x256xf32> to vector<8x256xf32>
    %cst_8 = arith.constant dense<0.000000e+00> : vector<8xf32>
    %19 = vector.multi_reduction <add>, %18, %cst_8 [1] : vector<8x256xf32> to vector<8xf32>
    %20 = vector.shape_cast %19 : vector<8xf32> to vector<8x1xf32>
    %cst_9 = arith.constant 2.560000e+02 : f32
    %21 = vector.broadcast %cst_9 : f32 to vector<8x1xf32>
    %22 = arith.divf %20, %21 : vector<8x1xf32>
    %cst_10 = arith.constant dense<0xFF800000> : vector<8xf32>
    %23 = vector.multi_reduction <maximumf>, %18, %cst_10 [1] : vector<8x256xf32> to vector<8xf32>
    %24 = vector.shape_cast %23 : vector<8xf32> to vector<8x1xf32>
    %25 = tpu.iota {dimensions = array<i32: 1>} : vector<8x2xi32>
    %c0_i32_11 = arith.constant 0 : i32
    %26 = vector.broadcast %c0_i32_11 : i32 to vector<8x2xi32>
    %27 = arith.cmpi eq, %25, %26 : vector<8x2xi32>
    %28 = vector.shape_cast %22 : vector<8x1xf32> to vector<8x1xf32>
    %29 = vector.broadcast %28 : vector<8x1xf32> to vector<8x2xf32>
    %30 = vector.shape_cast %24 : vector<8x1xf32> to vector<8x1xf32>
    %31 = vector.broadcast %30 : vector<8x1xf32> to vector<8x2xf32>
    %32 = arith.select %27, %29, %31 : vector<8x2xi1>, vector<8x2xf32>
    %c0_12 = arith.constant 0 : index
    %c2 = arith.constant 2 : index
    %33 = vector.load %arg8[%c0_12, %c2] : memref<8x4xf32, #tpu.memory_space<vmem>>, vector<8x2xf32>
    tpu.vector_store %arg8[%c0_12, %c2], %32 {strides = array<i32>} : memref<8x4xf32, #tpu.memory_space<vmem>>, vector<8x2xf32>,
    %c0_13 = arith.constant 0 : index
    %c0_14 = arith.constant 0 : index
    %34 = vector.load %arg8[%c0_13, %c0_14] : memref<8x4xf32, #tpu.memory_space<vmem>>, vector<8x4xf32>
    %c0_15 = arith.constant 0 : index
    %c0_16 = arith.constant 0 : index
    %35 = vector.load %arg2[%c0_15, %c0_16] : memref<2x8xf32, #tpu.memory_space<vmem>>, vector<2x8xf32>
    %cst_17 = arith.constant dense<0.000000e+00> : vector<2x4xf32>
    %36 = tpu.matmul %35, %34, %cst_17 {dimension_numbers = #tpu.dot_dimension_numbers<[1], [0], [0], [1], [0, 0, 1, 1], [], []>} : vector<2x8xf32>, vector<8x4xf32>, vector<2x4xf32> -> vector<2x4xf32>
    %cst_18 = arith.constant 0.000000e+00 : f32
    %37 = vector.broadcast %cst_18 : f32 to vector<2x4xf32>
    %38 = arith.maximumf %36, %37 : vector<2x4xf32>
    %c0_19 = arith.constant 0 : index
    %c0_20 = arith.constant 0 : index
    %39 = vector.load %arg3[%c0_19, %c0_20] : memref<8x2xf32, #tpu.memory_space<vmem>>, vector<8x2xf32>
    %cst_21 = arith.constant dense<0.000000e+00> : vector<8x4xf32>
    %40 = tpu.matmul %39, %38, %cst_21 {dimension_numbers = #tpu.dot_dimension_numbers<[1], [0], [0], [1], [0, 0, 1, 1], [], []>} : vector<8x2xf32>, vector<2x4xf32>, vector<8x4xf32> -> vector<8x4xf32>
    %c0_22 = arith.constant 0 : index
    %c0_23 = arith.constant 0 : index
    %c0_24 = arith.constant 0 : index
    %41 = vector.load %arg1[%c0_22, %c0_23, %c0_24] : memref<2x8x256xf32, #tpu.memory_space<vmem>>, vector<1x8x256xf32>
    %42 = vector.shape_cast %41 : vector<1x8x256xf32> to vector<8x256xf32>
    %43 = vector.extract_strided_slice %40 {offsets = [0, 0], sizes = [8, 1], strides = [1, 1]} : vector<8x4xf32> to vector<8x1xf32>
    %44 = vector.extract_strided_slice %40 {offsets = [0, 1], sizes = [8, 1], strides = [1, 1]} : vector<8x4xf32> to vector<8x1xf32>
    %45 = arith.addf %43, %44 : vector<8x1xf32>
    %46 = arith.negf %45 : vector<8x1xf32>
    %47 = math.exp %46 : vector<8x1xf32>
    %cst_25 = arith.constant 1.000000e+00 : f32
    %48 = vector.broadcast %cst_25 : f32 to vector<8x1xf32>
    %49 = arith.addf %48, %47 : vector<8x1xf32>
    %50 = arith.divf %48, %49 : vector<8x1xf32>
    %51 = vector.broadcast %50 : vector<8x1xf32> to vector<8x256xf32>
    %52 = arith.mulf %42, %51 : vector<8x256xf32>
    %c0_26 = arith.constant 0 : index
    %c0_27 = arith.constant 0 : index
    %c0_28 = arith.constant 0 : index
    %53 = vector.load %arg6[%c0_26, %c0_27, %c0_28] : memref<2x8x256xf32, #tpu.memory_space<vmem>>, vector<1x8x256xf32>
    %54 = vector.shape_cast %53 : vector<1x8x256xf32> to vector<8x256xf32>
    %55 = vector.shape_cast %52 : vector<8x256xf32> to vector<1x8x256xf32>
    tpu.vector_store %arg6[%c0_26, %c0_27, %c0_28], %55 {strides = array<i32>} : memref<2x8x256xf32, #tpu.memory_space<vmem>>, vector<1x8x256xf32>,
    %cst_29 = arith.constant dense<0.000000e+00> : vector<256xf32>
    %56 = vector.multi_reduction <add>, %52, %cst_29 [0] : vector<8x256xf32> to vector<256xf32>
    %57 = vector.shape_cast %56 : vector<256xf32> to vector<1x256xf32>
    %cst_30 = arith.constant 8.000000e+00 : f32
    %58 = vector.broadcast %cst_30 : f32 to vector<1x256xf32>
    %59 = arith.divf %57, %58 : vector<1x256xf32>
    %cst_31 = arith.constant dense<0xFF800000> : vector<256xf32>
    %60 = vector.multi_reduction <maximumf>, %52, %cst_31 [0] : vector<8x256xf32> to vector<256xf32>
    %61 = vector.shape_cast %60 : vector<256xf32> to vector<1x256xf32>
    %62 = tpu.iota {dimensions = array<i32: 0>} : vector<2x256xi32>
    %c0_i32_32 = arith.constant 0 : i32
    %63 = vector.broadcast %c0_i32_32 : i32 to vector<2x256xi32>
    %64 = arith.cmpi eq, %62, %63 : vector<2x256xi32>
    %65 = vector.shape_cast %59 : vector<1x256xf32> to vector<1x256xf32>
    %66 = vector.broadcast %65 : vector<1x256xf32> to vector<2x256xf32>
    %67 = vector.shape_cast %61 : vector<1x256xf32> to vector<1x256xf32>
    %68 = vector.broadcast %67 : vector<1x256xf32> to vector<2x256xf32>
    %69 = arith.select %64, %66, %68 : vector<2x256xi1>, vector<2x256xf32>
    %c0_33 = arith.constant 0 : index
    %c0_34 = arith.constant 0 : index
    %70 = vector.load %arg7[%c0_33, %c0_34] : memref<4x256xf32, #tpu.memory_space<vmem>>, vector<2x256xf32>
    tpu.vector_store %arg7[%c0_33, %c0_34], %69 {strides = array<i32>} : memref<4x256xf32, #tpu.memory_space<vmem>>, vector<2x256xf32>,
    %c1_35 = arith.constant 1 : index
    %c0_36 = arith.constant 0 : index
    %c0_37 = arith.constant 0 : index
    %71 = vector.load %arg1[%c1_35, %c0_36, %c0_37] : memref<2x8x256xf32, #tpu.memory_space<vmem>>, vector<1x8x256xf32>
    %72 = vector.shape_cast %71 : vector<1x8x256xf32> to vector<8x256xf32>
    %73 = vector.extract_strided_slice %40 {offsets = [0, 2], sizes = [8, 1], strides = [1, 1]} : vector<8x4xf32> to vector<8x1xf32>
    %74 = vector.extract_strided_slice %40 {offsets = [0, 3], sizes = [8, 1], strides = [1, 1]} : vector<8x4xf32> to vector<8x1xf32>
    %75 = arith.addf %73, %74 : vector<8x1xf32>
    %76 = arith.negf %75 : vector<8x1xf32>
    %77 = math.exp %76 : vector<8x1xf32>
    %cst_38 = arith.constant 1.000000e+00 : f32
    %78 = vector.broadcast %cst_38 : f32 to vector<8x1xf32>
    %79 = arith.addf %78, %77 : vector<8x1xf32>
    %80 = arith.divf %78, %79 : vector<8x1xf32>
    %81 = vector.broadcast %80 : vector<8x1xf32> to vector<8x256xf32>
    %82 = arith.mulf %72, %81 : vector<8x256xf32>
    %c1_39 = arith.constant 1 : index
    %c0_40 = arith.constant 0 : index
    %c0_41 = arith.constant 0 : index
    %83 = vector.load %arg6[%c1_39, %c0_40, %c0_41] : memref<2x8x256xf32, #tpu.memory_space<vmem>>, vector<1x8x256xf32>
    %84 = vector.shape_cast %83 : vector<1x8x256xf32> to vector<8x256xf32>
    %85 = vector.shape_cast %82 : vector<8x256xf32> to vector<1x8x256xf32>
    tpu.vector_store %arg6[%c1_39, %c0_40, %c0_41], %85 {strides = array<i32>} : memref<2x8x256xf32, #tpu.memory_space<vmem>>, vector<1x8x256xf32>,
    %cst_42 = arith.constant dense<0.000000e+00> : vector<256xf32>
    %86 = vector.multi_reduction <add>, %82, %cst_42 [0] : vector<8x256xf32> to vector<256xf32>
    %87 = vector.shape_cast %86 : vector<256xf32> to vector<1x256xf32>
    %cst_43 = arith.constant 8.000000e+00 : f32
    %88 = vector.broadcast %cst_43 : f32 to vector<1x256xf32>
    %89 = arith.divf %87, %88 : vector<1x256xf32>
    %cst_44 = arith.constant dense<0xFF800000> : vector<256xf32>
    %90 = vector.multi_reduction <maximumf>, %82, %cst_44 [0] : vector<8x256xf32> to vector<256xf32>
    %91 = vector.shape_cast %90 : vector<256xf32> to vector<1x256xf32>
    %92 = tpu.iota {dimensions = array<i32: 0>} : vector<2x256xi32>
    %c0_i32_45 = arith.constant 0 : i32
    %93 = vector.broadcast %c0_i32_45 : i32 to vector<2x256xi32>
    %94 = arith.cmpi eq, %92, %93 : vector<2x256xi32>
    %95 = vector.shape_cast %89 : vector<1x256xf32> to vector<1x256xf32>
    %96 = vector.broadcast %95 : vector<1x256xf32> to vector<2x256xf32>
    %97 = vector.shape_cast %91 : vector<1x256xf32> to vector<1x256xf32>
    %98 = vector.broadcast %97 : vector<1x256xf32> to vector<2x256xf32>
    %99 = arith.select %94, %96, %98 : vector<2x256xi1>, vector<2x256xf32>
    %c2_46 = arith.constant 2 : index
    %c0_47 = arith.constant 0 : index
    %100 = vector.load %arg7[%c2_46, %c0_47] : memref<4x256xf32, #tpu.memory_space<vmem>>, vector<2x256xf32>
    tpu.vector_store %arg7[%c2_46, %c0_47], %99 {strides = array<i32>} : memref<4x256xf32, #tpu.memory_space<vmem>>, vector<2x256xf32>,
    %c0_48 = arith.constant 0 : index
    %c0_49 = arith.constant 0 : index
    %101 = vector.load %arg7[%c0_48, %c0_49] : memref<4x256xf32, #tpu.memory_space<vmem>>, vector<4x256xf32>
    %cst_50 = arith.constant 0.000000e+00 : f32
    %102 = vector.broadcast %cst_50 : f32 to vector<4x256xf32>
    %c51_i32 = arith.constant 51 : i32
    %103 = tpu.dynamic_rotate %101 by %c51_i32 dim 1 : vector<4x256xf32>, i32 -> vector<4x256xf32>
    %c0_51 = arith.constant 0 : index
    %c0_52 = arith.constant 0 : index
    %c0_53 = arith.constant 0 : index
    %104 = vector.load %arg4[%c0_51, %c0_52, %c0_53] : memref<49x4x256xf32, #tpu.memory_space<vmem>>, vector<1x4x256xf32>
    %105 = vector.shape_cast %104 : vector<1x4x256xf32> to vector<4x256xf32>
    %106 = arith.mulf %105, %103 : vector<4x256xf32>
    %107 = arith.addf %102, %106 : vector<4x256xf32>
    %c50_i32 = arith.constant 50 : i32
    %108 = tpu.dynamic_rotate %101 by %c50_i32 dim 1 : vector<4x256xf32>, i32 -> vector<4x256xf32>
    %c1_54 = arith.constant 1 : index
    %c0_55 = arith.constant 0 : index
    %c0_56 = arith.constant 0 : index
    %109 = vector.load %arg4[%c1_54, %c0_55, %c0_56] : memref<49x4x256xf32, #tpu.memory_space<vmem>>, vector<1x4x256xf32>
    %110 = vector.shape_cast %109 : vector<1x4x256xf32> to vector<4x256xf32>
    %111 = arith.mulf %110, %108 : vector<4x256xf32>
    %112 = arith.addf %107, %111 : vector<4x256xf32>
    %c49_i32 = arith.constant 49 : i32
    %113 = tpu.dynamic_rotate %101 by %c49_i32 dim 1 : vector<4x256xf32>, i32 -> vector<4x256xf32>
    %c2_57 = arith.constant 2 : index
    %c0_58 = arith.constant 0 : index
    %c0_59 = arith.constant 0 : index
    %114 = vector.load %arg4[%c2_57, %c0_58, %c0_59] : memref<49x4x256xf32, #tpu.memory_space<vmem>>, vector<1x4x256xf32>
    %115 = vector.shape_cast %114 : vector<1x4x256xf32> to vector<4x256xf32>
    %116 = arith.mulf %115, %113 : vector<4x256xf32>
    %117 = arith.addf %112, %116 : vector<4x256xf32>
    %c48_i32 = arith.constant 48 : i32
    %118 = tpu.dynamic_rotate %101 by %c48_i32 dim 1 : vector<4x256xf32>, i32 -> vector<4x256xf32>
    %c3 = arith.constant 3 : index
    %c0_60 = arith.constant 0 : index
    %c0_61 = arith.constant 0 : index
    %119 = vector.load %arg4[%c3, %c0_60, %c0_61] : memref<49x4x256xf32, #tpu.memory_space<vmem>>, vector<1x4x256xf32>
    %120 = vector.shape_cast %119 : vector<1x4x256xf32> to vector<4x256xf32>
    %121 = arith.mulf %120, %118 : vector<4x256xf32>
    %122 = arith.addf %117, %121 : vector<4x256xf32>
    %c47_i32 = arith.constant 47 : i32
    %123 = tpu.dynamic_rotate %101 by %c47_i32 dim 1 : vector<4x256xf32>, i32 -> vector<4x256xf32>
    %c4 = arith.constant 4 : index
    %c0_62 = arith.constant 0 : index
    %c0_63 = arith.constant 0 : index
    %124 = vector.load %arg4[%c4, %c0_62, %c0_63] : memref<49x4x256xf32, #tpu.memory_space<vmem>>, vector<1x4x256xf32>
    %125 = vector.shape_cast %124 : vector<1x4x256xf32> to vector<4x256xf32>
    %126 = arith.mulf %125, %123 : vector<4x256xf32>
    %127 = arith.addf %122, %126 : vector<4x256xf32>
    %c46_i32 = arith.constant 46 : i32
    %128 = tpu.dynamic_rotate %101 by %c46_i32 dim 1 : vector<4x256xf32>, i32 -> vector<4x256xf32>
    %c5 = arith.constant 5 : index
    %c0_64 = arith.constant 0 : index
    %c0_65 = arith.constant 0 : index
    %129 = vector.load %arg4[%c5, %c0_64, %c0_65] : memref<49x4x256xf32, #tpu.memory_space<vmem>>, vector<1x4x256xf32>
    %130 = vector.shape_cast %129 : vector<1x4x256xf32> to vector<4x256xf32>
    %131 = arith.mulf %130, %128 : vector<4x256xf32>
    %132 = arith.addf %127, %131 : vector<4x256xf32>
    %c45_i32 = arith.constant 45 : i32
    %133 = tpu.dynamic_rotate %101 by %c45_i32 dim 1 : vector<4x256xf32>, i32 -> vector<4x256xf32>
    %c6 = arith.constant 6 : index
    %c0_66 = arith.constant 0 : index
    %c0_67 = arith.constant 0 : index
    %134 = vector.load %arg4[%c6, %c0_66, %c0_67] : memref<49x4x256xf32, #tpu.memory_space<vmem>>, vector<1x4x256xf32>
    %135 = vector.shape_cast %134 : vector<1x4x256xf32> to vector<4x256xf32>
    %136 = arith.mulf %135, %133 : vector<4x256xf32>
    %137 = arith.addf %132, %136 : vector<4x256xf32>
    %c35_i32 = arith.constant 35 : i32
    %138 = tpu.dynamic_rotate %101 by %c35_i32 dim 1 : vector<4x256xf32>, i32 -> vector<4x256xf32>
    %c7 = arith.constant 7 : index
    %c0_68 = arith.constant 0 : index
    %c0_69 = arith.constant 0 : index
    %139 = vector.load %arg4[%c7, %c0_68, %c0_69] : memref<49x4x256xf32, #tpu.memory_space<vmem>>, vector<1x4x256xf32>
    %140 = vector.shape_cast %139 : vector<1x4x256xf32> to vector<4x256xf32>
    %141 = arith.mulf %140, %138 : vector<4x256xf32>
    %142 = arith.addf %137, %141 : vector<4x256xf32>
    %c34_i32 = arith.constant 34 : i32
    %143 = tpu.dynamic_rotate %101 by %c34_i32 dim 1 : vector<4x256xf32>, i32 -> vector<4x256xf32>
    %c8 = arith.constant 8 : index
    %c0_70 = arith.constant 0 : index
    %c0_71 = arith.constant 0 : index
    %144 = vector.load %arg4[%c8, %c0_70, %c0_71] : memref<49x4x256xf32, #tpu.memory_space<vmem>>, vector<1x4x256xf32>
    %145 = vector.shape_cast %144 : vector<1x4x256xf32> to vector<4x256xf32>
    %146 = arith.mulf %145, %143 : vector<4x256xf32>
    %147 = arith.addf %142, %146 : vector<4x256xf32>
    %c33_i32 = arith.constant 33 : i32
    %148 = tpu.dynamic_rotate %101 by %c33_i32 dim 1 : vector<4x256xf32>, i32 -> vector<4x256xf32>
    %c9 = arith.constant 9 : index
    %c0_72 = arith.constant 0 : index
    %c0_73 = arith.constant 0 : index
    %149 = vector.load %arg4[%c9, %c0_72, %c0_73] : memref<49x4x256xf32, #tpu.memory_space<vmem>>, vector<1x4x256xf32>
    %150 = vector.shape_cast %149 : vector<1x4x256xf32> to vector<4x256xf32>
    %151 = arith.mulf %150, %148 : vector<4x256xf32>
    %152 = arith.addf %147, %151 : vector<4x256xf32>
    %c32_i32 = arith.constant 32 : i32
    %153 = tpu.dynamic_rotate %101 by %c32_i32 dim 1 : vector<4x256xf32>, i32 -> vector<4x256xf32>
    %c10 = arith.constant 10 : index
    %c0_74 = arith.constant 0 : index
    %c0_75 = arith.constant 0 : index
    %154 = vector.load %arg4[%c10, %c0_74, %c0_75] : memref<49x4x256xf32, #tpu.memory_space<vmem>>, vector<1x4x256xf32>
    %155 = vector.shape_cast %154 : vector<1x4x256xf32> to vector<4x256xf32>
    %156 = arith.mulf %155, %153 : vector<4x256xf32>
    %157 = arith.addf %152, %156 : vector<4x256xf32>
    %c31_i32 = arith.constant 31 : i32
    %158 = tpu.dynamic_rotate %101 by %c31_i32 dim 1 : vector<4x256xf32>, i32 -> vector<4x256xf32>
    %c11 = arith.constant 11 : index
    %c0_76 = arith.constant 0 : index
    %c0_77 = arith.constant 0 : index
    %159 = vector.load %arg4[%c11, %c0_76, %c0_77] : memref<49x4x256xf32, #tpu.memory_space<vmem>>, vector<1x4x256xf32>
    %160 = vector.shape_cast %159 : vector<1x4x256xf32> to vector<4x256xf32>
    %161 = arith.mulf %160, %158 : vector<4x256xf32>
    %162 = arith.addf %157, %161 : vector<4x256xf32>
    %c30_i32 = arith.constant 30 : i32
    %163 = tpu.dynamic_rotate %101 by %c30_i32 dim 1 : vector<4x256xf32>, i32 -> vector<4x256xf32>
    %c12 = arith.constant 12 : index
    %c0_78 = arith.constant 0 : index
    %c0_79 = arith.constant 0 : index
    %164 = vector.load %arg4[%c12, %c0_78, %c0_79] : memref<49x4x256xf32, #tpu.memory_space<vmem>>, vector<1x4x256xf32>
    %165 = vector.shape_cast %164 : vector<1x4x256xf32> to vector<4x256xf32>
    %166 = arith.mulf %165, %163 : vector<4x256xf32>
    %167 = arith.addf %162, %166 : vector<4x256xf32>
    %c29_i32 = arith.constant 29 : i32
    %168 = tpu.dynamic_rotate %101 by %c29_i32 dim 1 : vector<4x256xf32>, i32 -> vector<4x256xf32>
    %c13 = arith.constant 13 : index
    %c0_80 = arith.constant 0 : index
    %c0_81 = arith.constant 0 : index
    %169 = vector.load %arg4[%c13, %c0_80, %c0_81] : memref<49x4x256xf32, #tpu.memory_space<vmem>>, vector<1x4x256xf32>
    %170 = vector.shape_cast %169 : vector<1x4x256xf32> to vector<4x256xf32>
    %171 = arith.mulf %170, %168 : vector<4x256xf32>
    %172 = arith.addf %167, %171 : vector<4x256xf32>
    %c19_i32 = arith.constant 19 : i32
    %173 = tpu.dynamic_rotate %101 by %c19_i32 dim 1 : vector<4x256xf32>, i32 -> vector<4x256xf32>
    %c14 = arith.constant 14 : index
    %c0_82 = arith.constant 0 : index
    %c0_83 = arith.constant 0 : index
    %174 = vector.load %arg4[%c14, %c0_82, %c0_83] : memref<49x4x256xf32, #tpu.memory_space<vmem>>, vector<1x4x256xf32>
    %175 = vector.shape_cast %174 : vector<1x4x256xf32> to vector<4x256xf32>
    %176 = arith.mulf %175, %173 : vector<4x256xf32>
    %177 = arith.addf %172, %176 : vector<4x256xf32>
    %c18_i32 = arith.constant 18 : i32
    %178 = tpu.dynamic_rotate %101 by %c18_i32 dim 1 : vector<4x256xf32>, i32 -> vector<4x256xf32>
    %c15 = arith.constant 15 : index
    %c0_84 = arith.constant 0 : index
    %c0_85 = arith.constant 0 : index
    %179 = vector.load %arg4[%c15, %c0_84, %c0_85] : memref<49x4x256xf32, #tpu.memory_space<vmem>>, vector<1x4x256xf32>
    %180 = vector.shape_cast %179 : vector<1x4x256xf32> to vector<4x256xf32>
    %181 = arith.mulf %180, %178 : vector<4x256xf32>
    %182 = arith.addf %177, %181 : vector<4x256xf32>
    %c17_i32 = arith.constant 17 : i32
    %183 = tpu.dynamic_rotate %101 by %c17_i32 dim 1 : vector<4x256xf32>, i32 -> vector<4x256xf32>
    %c16 = arith.constant 16 : index
    %c0_86 = arith.constant 0 : index
    %c0_87 = arith.constant 0 : index
    %184 = vector.load %arg4[%c16, %c0_86, %c0_87] : memref<49x4x256xf32, #tpu.memory_space<vmem>>, vector<1x4x256xf32>
    %185 = vector.shape_cast %184 : vector<1x4x256xf32> to vector<4x256xf32>
    %186 = arith.mulf %185, %183 : vector<4x256xf32>
    %187 = arith.addf %182, %186 : vector<4x256xf32>
    %c16_i32 = arith.constant 16 : i32
    %188 = tpu.dynamic_rotate %101 by %c16_i32 dim 1 : vector<4x256xf32>, i32 -> vector<4x256xf32>
    %c17 = arith.constant 17 : index
    %c0_88 = arith.constant 0 : index
    %c0_89 = arith.constant 0 : index
    %189 = vector.load %arg4[%c17, %c0_88, %c0_89] : memref<49x4x256xf32, #tpu.memory_space<vmem>>, vector<1x4x256xf32>
    %190 = vector.shape_cast %189 : vector<1x4x256xf32> to vector<4x256xf32>
    %191 = arith.mulf %190, %188 : vector<4x256xf32>
    %192 = arith.addf %187, %191 : vector<4x256xf32>
    %c15_i32 = arith.constant 15 : i32
    %193 = tpu.dynamic_rotate %101 by %c15_i32 dim 1 : vector<4x256xf32>, i32 -> vector<4x256xf32>
    %c18 = arith.constant 18 : index
    %c0_90 = arith.constant 0 : index
    %c0_91 = arith.constant 0 : index
    %194 = vector.load %arg4[%c18, %c0_90, %c0_91] : memref<49x4x256xf32, #tpu.memory_space<vmem>>, vector<1x4x256xf32>
    %195 = vector.shape_cast %194 : vector<1x4x256xf32> to vector<4x256xf32>
    %196 = arith.mulf %195, %193 : vector<4x256xf32>
    %197 = arith.addf %192, %196 : vector<4x256xf32>
    %c14_i32 = arith.constant 14 : i32
    %198 = tpu.dynamic_rotate %101 by %c14_i32 dim 1 : vector<4x256xf32>, i32 -> vector<4x256xf32>
    %c19 = arith.constant 19 : index
    %c0_92 = arith.constant 0 : index
    %c0_93 = arith.constant 0 : index
    %199 = vector.load %arg4[%c19, %c0_92, %c0_93] : memref<49x4x256xf32, #tpu.memory_space<vmem>>, vector<1x4x256xf32>
    %200 = vector.shape_cast %199 : vector<1x4x256xf32> to vector<4x256xf32>
    %201 = arith.mulf %200, %198 : vector<4x256xf32>
    %202 = arith.addf %197, %201 : vector<4x256xf32>
    %c13_i32 = arith.constant 13 : i32
    %203 = tpu.dynamic_rotate %101 by %c13_i32 dim 1 : vector<4x256xf32>, i32 -> vector<4x256xf32>
    %c20 = arith.constant 20 : index
    %c0_94 = arith.constant 0 : index
    %c0_95 = arith.constant 0 : index
    %204 = vector.load %arg4[%c20, %c0_94, %c0_95] : memref<49x4x256xf32, #tpu.memory_space<vmem>>, vector<1x4x256xf32>
    %205 = vector.shape_cast %204 : vector<1x4x256xf32> to vector<4x256xf32>
    %206 = arith.mulf %205, %203 : vector<4x256xf32>
    %207 = arith.addf %202, %206 : vector<4x256xf32>
    %c3_i32 = arith.constant 3 : i32
    %208 = tpu.dynamic_rotate %101 by %c3_i32 dim 1 : vector<4x256xf32>, i32 -> vector<4x256xf32>
    %c21 = arith.constant 21 : index
    %c0_96 = arith.constant 0 : index
    %c0_97 = arith.constant 0 : index
    %209 = vector.load %arg4[%c21, %c0_96, %c0_97] : memref<49x4x256xf32, #tpu.memory_space<vmem>>, vector<1x4x256xf32>
    %210 = vector.shape_cast %209 : vector<1x4x256xf32> to vector<4x256xf32>
    %211 = arith.mulf %210, %208 : vector<4x256xf32>
    %212 = arith.addf %207, %211 : vector<4x256xf32>
    %c2_i32 = arith.constant 2 : i32
    %213 = tpu.dynamic_rotate %101 by %c2_i32 dim 1 : vector<4x256xf32>, i32 -> vector<4x256xf32>
    %c22 = arith.constant 22 : index
    %c0_98 = arith.constant 0 : index
    %c0_99 = arith.constant 0 : index
    %214 = vector.load %arg4[%c22, %c0_98, %c0_99] : memref<49x4x256xf32, #tpu.memory_space<vmem>>, vector<1x4x256xf32>
    %215 = vector.shape_cast %214 : vector<1x4x256xf32> to vector<4x256xf32>
    %216 = arith.mulf %215, %213 : vector<4x256xf32>
    %217 = arith.addf %212, %216 : vector<4x256xf32>
    %c1_i32 = arith.constant 1 : i32
    %218 = tpu.dynamic_rotate %101 by %c1_i32 dim 1 : vector<4x256xf32>, i32 -> vector<4x256xf32>
    %c23 = arith.constant 23 : index
    %c0_100 = arith.constant 0 : index
    %c0_101 = arith.constant 0 : index
    %219 = vector.load %arg4[%c23, %c0_100, %c0_101] : memref<49x4x256xf32, #tpu.memory_space<vmem>>, vector<1x4x256xf32>
    %220 = vector.shape_cast %219 : vector<1x4x256xf32> to vector<4x256xf32>
    %221 = arith.mulf %220, %218 : vector<4x256xf32>
    %222 = arith.addf %217, %221 : vector<4x256xf32>
    %c24 = arith.constant 24 : index
    %c0_102 = arith.constant 0 : index
    %c0_103 = arith.constant 0 : index
    %223 = vector.load %arg4[%c24, %c0_102, %c0_103] : memref<49x4x256xf32, #tpu.memory_space<vmem>>, vector<1x4x256xf32>
    %224 = vector.shape_cast %223 : vector<1x4x256xf32> to vector<4x256xf32>
    %225 = arith.mulf %224, %101 : vector<4x256xf32>
    %226 = arith.addf %222, %225 : vector<4x256xf32>
    %c255_i32 = arith.constant 255 : i32
    %227 = tpu.dynamic_rotate %101 by %c255_i32 dim 1 : vector<4x256xf32>, i32 -> vector<4x256xf32>
    %c25 = arith.constant 25 : index
    %c0_104 = arith.constant 0 : index
    %c0_105 = arith.constant 0 : index
    %228 = vector.load %arg4[%c25, %c0_104, %c0_105] : memref<49x4x256xf32, #tpu.memory_space<vmem>>, vector<1x4x256xf32>
    %229 = vector.shape_cast %228 : vector<1x4x256xf32> to vector<4x256xf32>
    %230 = arith.mulf %229, %227 : vector<4x256xf32>
    %231 = arith.addf %226, %230 : vector<4x256xf32>
    %c254_i32 = arith.constant 254 : i32
    %232 = tpu.dynamic_rotate %101 by %c254_i32 dim 1 : vector<4x256xf32>, i32 -> vector<4x256xf32>
    %c26 = arith.constant 26 : index
    %c0_106 = arith.constant 0 : index
    %c0_107 = arith.constant 0 : index
    %233 = vector.load %arg4[%c26, %c0_106, %c0_107] : memref<49x4x256xf32, #tpu.memory_space<vmem>>, vector<1x4x256xf32>
    %234 = vector.shape_cast %233 : vector<1x4x256xf32> to vector<4x256xf32>
    %235 = arith.mulf %234, %232 : vector<4x256xf32>
    %236 = arith.addf %231, %235 : vector<4x256xf32>
    %c253_i32 = arith.constant 253 : i32
    %237 = tpu.dynamic_rotate %101 by %c253_i32 dim 1 : vector<4x256xf32>, i32 -> vector<4x256xf32>
    %c27 = arith.constant 27 : index
    %c0_108 = arith.constant 0 : index
    %c0_109 = arith.constant 0 : index
    %238 = vector.load %arg4[%c27, %c0_108, %c0_109] : memref<49x4x256xf32, #tpu.memory_space<vmem>>, vector<1x4x256xf32>
    %239 = vector.shape_cast %238 : vector<1x4x256xf32> to vector<4x256xf32>
    %240 = arith.mulf %239, %237 : vector<4x256xf32>
    %241 = arith.addf %236, %240 : vector<4x256xf32>
    %c243_i32 = arith.constant 243 : i32
    %242 = tpu.dynamic_rotate %101 by %c243_i32 dim 1 : vector<4x256xf32>, i32 -> vector<4x256xf32>
    %c28 = arith.constant 28 : index
    %c0_110 = arith.constant 0 : index
    %c0_111 = arith.constant 0 : index
    %243 = vector.load %arg4[%c28, %c0_110, %c0_111] : memref<49x4x256xf32, #tpu.memory_space<vmem>>, vector<1x4x256xf32>
    %244 = vector.shape_cast %243 : vector<1x4x256xf32> to vector<4x256xf32>
    %245 = arith.mulf %244, %242 : vector<4x256xf32>
    %246 = arith.addf %241, %245 : vector<4x256xf32>
    %c242_i32 = arith.constant 242 : i32
    %247 = tpu.dynamic_rotate %101 by %c242_i32 dim 1 : vector<4x256xf32>, i32 -> vector<4x256xf32>
    %c29 = arith.constant 29 : index
    %c0_112 = arith.constant 0 : index
    %c0_113 = arith.constant 0 : index
    %248 = vector.load %arg4[%c29, %c0_112, %c0_113] : memref<49x4x256xf32, #tpu.memory_space<vmem>>, vector<1x4x256xf32>
    %249 = vector.shape_cast %248 : vector<1x4x256xf32> to vector<4x256xf32>
    %250 = arith.mulf %249, %247 : vector<4x256xf32>
    %251 = arith.addf %246, %250 : vector<4x256xf32>
    %c241_i32 = arith.constant 241 : i32
    %252 = tpu.dynamic_rotate %101 by %c241_i32 dim 1 : vector<4x256xf32>, i32 -> vector<4x256xf32>
    %c30 = arith.constant 30 : index
    %c0_114 = arith.constant 0 : index
    %c0_115 = arith.constant 0 : index
    %253 = vector.load %arg4[%c30, %c0_114, %c0_115] : memref<49x4x256xf32, #tpu.memory_space<vmem>>, vector<1x4x256xf32>
    %254 = vector.shape_cast %253 : vector<1x4x256xf32> to vector<4x256xf32>
    %255 = arith.mulf %254, %252 : vector<4x256xf32>
    %256 = arith.addf %251, %255 : vector<4x256xf32>
    %c240_i32 = arith.constant 240 : i32
    %257 = tpu.dynamic_rotate %101 by %c240_i32 dim 1 : vector<4x256xf32>, i32 -> vector<4x256xf32>
    %c31 = arith.constant 31 : index
    %c0_116 = arith.constant 0 : index
    %c0_117 = arith.constant 0 : index
    %258 = vector.load %arg4[%c31, %c0_116, %c0_117] : memref<49x4x256xf32, #tpu.memory_space<vmem>>, vector<1x4x256xf32>
    %259 = vector.shape_cast %258 : vector<1x4x256xf32> to vector<4x256xf32>
    %260 = arith.mulf %259, %257 : vector<4x256xf32>
    %261 = arith.addf %256, %260 : vector<4x256xf32>
    %c239_i32 = arith.constant 239 : i32
    %262 = tpu.dynamic_rotate %101 by %c239_i32 dim 1 : vector<4x256xf32>, i32 -> vector<4x256xf32>
    %c32 = arith.constant 32 : index
    %c0_118 = arith.constant 0 : index
    %c0_119 = arith.constant 0 : index
    %263 = vector.load %arg4[%c32, %c0_118, %c0_119] : memref<49x4x256xf32, #tpu.memory_space<vmem>>, vector<1x4x256xf32>
    %264 = vector.shape_cast %263 : vector<1x4x256xf32> to vector<4x256xf32>
    %265 = arith.mulf %264, %262 : vector<4x256xf32>
    %266 = arith.addf %261, %265 : vector<4x256xf32>
    %c238_i32 = arith.constant 238 : i32
    %267 = tpu.dynamic_rotate %101 by %c238_i32 dim 1 : vector<4x256xf32>, i32 -> vector<4x256xf32>
    %c33 = arith.constant 33 : index
    %c0_120 = arith.constant 0 : index
    %c0_121 = arith.constant 0 : index
    %268 = vector.load %arg4[%c33, %c0_120, %c0_121] : memref<49x4x256xf32, #tpu.memory_space<vmem>>, vector<1x4x256xf32>
    %269 = vector.shape_cast %268 : vector<1x4x256xf32> to vector<4x256xf32>
    %270 = arith.mulf %269, %267 : vector<4x256xf32>
    %271 = arith.addf %266, %270 : vector<4x256xf32>
    %c237_i32 = arith.constant 237 : i32
    %272 = tpu.dynamic_rotate %101 by %c237_i32 dim 1 : vector<4x256xf32>, i32 -> vector<4x256xf32>
    %c34 = arith.constant 34 : index
    %c0_122 = arith.constant 0 : index
    %c0_123 = arith.constant 0 : index
    %273 = vector.load %arg4[%c34, %c0_122, %c0_123] : memref<49x4x256xf32, #tpu.memory_space<vmem>>, vector<1x4x256xf32>
    %274 = vector.shape_cast %273 : vector<1x4x256xf32> to vector<4x256xf32>
    %275 = arith.mulf %274, %272 : vector<4x256xf32>
    %276 = arith.addf %271, %275 : vector<4x256xf32>
    %c227_i32 = arith.constant 227 : i32
    %277 = tpu.dynamic_rotate %101 by %c227_i32 dim 1 : vector<4x256xf32>, i32 -> vector<4x256xf32>
    %c35 = arith.constant 35 : index
    %c0_124 = arith.constant 0 : index
    %c0_125 = arith.constant 0 : index
    %278 = vector.load %arg4[%c35, %c0_124, %c0_125] : memref<49x4x256xf32, #tpu.memory_space<vmem>>, vector<1x4x256xf32>
    %279 = vector.shape_cast %278 : vector<1x4x256xf32> to vector<4x256xf32>
    %280 = arith.mulf %279, %277 : vector<4x256xf32>
    %281 = arith.addf %276, %280 : vector<4x256xf32>
    %c226_i32 = arith.constant 226 : i32
    %282 = tpu.dynamic_rotate %101 by %c226_i32 dim 1 : vector<4x256xf32>, i32 -> vector<4x256xf32>
    %c36 = arith.constant 36 : index
    %c0_126 = arith.constant 0 : index
    %c0_127 = arith.constant 0 : index
    %283 = vector.load %arg4[%c36, %c0_126, %c0_127] : memref<49x4x256xf32, #tpu.memory_space<vmem>>, vector<1x4x256xf32>
    %284 = vector.shape_cast %283 : vector<1x4x256xf32> to vector<4x256xf32>
    %285 = arith.mulf %284, %282 : vector<4x256xf32>
    %286 = arith.addf %281, %285 : vector<4x256xf32>
    %c225_i32 = arith.constant 225 : i32
    %287 = tpu.dynamic_rotate %101 by %c225_i32 dim 1 : vector<4x256xf32>, i32 -> vector<4x256xf32>
    %c37 = arith.constant 37 : index
    %c0_128 = arith.constant 0 : index
    %c0_129 = arith.constant 0 : index
    %288 = vector.load %arg4[%c37, %c0_128, %c0_129] : memref<49x4x256xf32, #tpu.memory_space<vmem>>, vector<1x4x256xf32>
    %289 = vector.shape_cast %288 : vector<1x4x256xf32> to vector<4x256xf32>
    %290 = arith.mulf %289, %287 : vector<4x256xf32>
    %291 = arith.addf %286, %290 : vector<4x256xf32>
    %c224_i32 = arith.constant 224 : i32
    %292 = tpu.dynamic_rotate %101 by %c224_i32 dim 1 : vector<4x256xf32>, i32 -> vector<4x256xf32>
    %c38 = arith.constant 38 : index
    %c0_130 = arith.constant 0 : index
    %c0_131 = arith.constant 0 : index
    %293 = vector.load %arg4[%c38, %c0_130, %c0_131] : memref<49x4x256xf32, #tpu.memory_space<vmem>>, vector<1x4x256xf32>
    %294 = vector.shape_cast %293 : vector<1x4x256xf32> to vector<4x256xf32>
    %295 = arith.mulf %294, %292 : vector<4x256xf32>
    %296 = arith.addf %291, %295 : vector<4x256xf32>
    %c223_i32 = arith.constant 223 : i32
    %297 = tpu.dynamic_rotate %101 by %c223_i32 dim 1 : vector<4x256xf32>, i32 -> vector<4x256xf32>
    %c39 = arith.constant 39 : index
    %c0_132 = arith.constant 0 : index
    %c0_133 = arith.constant 0 : index
    %298 = vector.load %arg4[%c39, %c0_132, %c0_133] : memref<49x4x256xf32, #tpu.memory_space<vmem>>, vector<1x4x256xf32>
    %299 = vector.shape_cast %298 : vector<1x4x256xf32> to vector<4x256xf32>
    %300 = arith.mulf %299, %297 : vector<4x256xf32>
    %301 = arith.addf %296, %300 : vector<4x256xf32>
    %c222_i32 = arith.constant 222 : i32
    %302 = tpu.dynamic_rotate %101 by %c222_i32 dim 1 : vector<4x256xf32>, i32 -> vector<4x256xf32>
    %c40 = arith.constant 40 : index
    %c0_134 = arith.constant 0 : index
    %c0_135 = arith.constant 0 : index
    %303 = vector.load %arg4[%c40, %c0_134, %c0_135] : memref<49x4x256xf32, #tpu.memory_space<vmem>>, vector<1x4x256xf32>
    %304 = vector.shape_cast %303 : vector<1x4x256xf32> to vector<4x256xf32>
    %305 = arith.mulf %304, %302 : vector<4x256xf32>
    %306 = arith.addf %301, %305 : vector<4x256xf32>
    %c221_i32 = arith.constant 221 : i32
    %307 = tpu.dynamic_rotate %101 by %c221_i32 dim 1 : vector<4x256xf32>, i32 -> vector<4x256xf32>
    %c41 = arith.constant 41 : index
    %c0_136 = arith.constant 0 : index
    %c0_137 = arith.constant 0 : index
    %308 = vector.load %arg4[%c41, %c0_136, %c0_137] : memref<49x4x256xf32, #tpu.memory_space<vmem>>, vector<1x4x256xf32>
    %309 = vector.shape_cast %308 : vector<1x4x256xf32> to vector<4x256xf32>
    %310 = arith.mulf %309, %307 : vector<4x256xf32>
    %311 = arith.addf %306, %310 : vector<4x256xf32>
    %c211_i32 = arith.constant 211 : i32
    %312 = tpu.dynamic_rotate %101 by %c211_i32 dim 1 : vector<4x256xf32>, i32 -> vector<4x256xf32>
    %c42 = arith.constant 42 : index
    %c0_138 = arith.constant 0 : index
    %c0_139 = arith.constant 0 : index
    %313 = vector.load %arg4[%c42, %c0_138, %c0_139] : memref<49x4x256xf32, #tpu.memory_space<vmem>>, vector<1x4x256xf32>
    %314 = vector.shape_cast %313 : vector<1x4x256xf32> to vector<4x256xf32>
    %315 = arith.mulf %314, %312 : vector<4x256xf32>
    %316 = arith.addf %311, %315 : vector<4x256xf32>
    %c210_i32 = arith.constant 210 : i32
    %317 = tpu.dynamic_rotate %101 by %c210_i32 dim 1 : vector<4x256xf32>, i32 -> vector<4x256xf32>
    %c43 = arith.constant 43 : index
    %c0_140 = arith.constant 0 : index
    %c0_141 = arith.constant 0 : index
    %318 = vector.load %arg4[%c43, %c0_140, %c0_141] : memref<49x4x256xf32, #tpu.memory_space<vmem>>, vector<1x4x256xf32>
    %319 = vector.shape_cast %318 : vector<1x4x256xf32> to vector<4x256xf32>
    %320 = arith.mulf %319, %317 : vector<4x256xf32>
    %321 = arith.addf %316, %320 : vector<4x256xf32>
    %c209_i32 = arith.constant 209 : i32
    %322 = tpu.dynamic_rotate %101 by %c209_i32 dim 1 : vector<4x256xf32>, i32 -> vector<4x256xf32>
    %c44 = arith.constant 44 : index
    %c0_142 = arith.constant 0 : index
    %c0_143 = arith.constant 0 : index
    %323 = vector.load %arg4[%c44, %c0_142, %c0_143] : memref<49x4x256xf32, #tpu.memory_space<vmem>>, vector<1x4x256xf32>
    %324 = vector.shape_cast %323 : vector<1x4x256xf32> to vector<4x256xf32>
    %325 = arith.mulf %324, %322 : vector<4x256xf32>
    %326 = arith.addf %321, %325 : vector<4x256xf32>
    %c208_i32 = arith.constant 208 : i32
    %327 = tpu.dynamic_rotate %101 by %c208_i32 dim 1 : vector<4x256xf32>, i32 -> vector<4x256xf32>
    %c45 = arith.constant 45 : index
    %c0_144 = arith.constant 0 : index
    %c0_145 = arith.constant 0 : index
    %328 = vector.load %arg4[%c45, %c0_144, %c0_145] : memref<49x4x256xf32, #tpu.memory_space<vmem>>, vector<1x4x256xf32>
    %329 = vector.shape_cast %328 : vector<1x4x256xf32> to vector<4x256xf32>
    %330 = arith.mulf %329, %327 : vector<4x256xf32>
    %331 = arith.addf %326, %330 : vector<4x256xf32>
    %c207_i32 = arith.constant 207 : i32
    %332 = tpu.dynamic_rotate %101 by %c207_i32 dim 1 : vector<4x256xf32>, i32 -> vector<4x256xf32>
    %c46 = arith.constant 46 : index
    %c0_146 = arith.constant 0 : index
    %c0_147 = arith.constant 0 : index
    %333 = vector.load %arg4[%c46, %c0_146, %c0_147] : memref<49x4x256xf32, #tpu.memory_space<vmem>>, vector<1x4x256xf32>
    %334 = vector.shape_cast %333 : vector<1x4x256xf32> to vector<4x256xf32>
    %335 = arith.mulf %334, %332 : vector<4x256xf32>
    %336 = arith.addf %331, %335 : vector<4x256xf32>
    %c206_i32 = arith.constant 206 : i32
    %337 = tpu.dynamic_rotate %101 by %c206_i32 dim 1 : vector<4x256xf32>, i32 -> vector<4x256xf32>
    %c47 = arith.constant 47 : index
    %c0_148 = arith.constant 0 : index
    %c0_149 = arith.constant 0 : index
    %338 = vector.load %arg4[%c47, %c0_148, %c0_149] : memref<49x4x256xf32, #tpu.memory_space<vmem>>, vector<1x4x256xf32>
    %339 = vector.shape_cast %338 : vector<1x4x256xf32> to vector<4x256xf32>
    %340 = arith.mulf %339, %337 : vector<4x256xf32>
    %341 = arith.addf %336, %340 : vector<4x256xf32>
    %c205_i32 = arith.constant 205 : i32
    %342 = tpu.dynamic_rotate %101 by %c205_i32 dim 1 : vector<4x256xf32>, i32 -> vector<4x256xf32>
    %c48 = arith.constant 48 : index
    %c0_150 = arith.constant 0 : index
    %c0_151 = arith.constant 0 : index
    %343 = vector.load %arg4[%c48, %c0_150, %c0_151] : memref<49x4x256xf32, #tpu.memory_space<vmem>>, vector<1x4x256xf32>
    %344 = vector.shape_cast %343 : vector<1x4x256xf32> to vector<4x256xf32>
    %345 = arith.mulf %344, %342 : vector<4x256xf32>
    %346 = arith.addf %341, %345 : vector<4x256xf32>
    %347 = vector.extract_strided_slice %346 {offsets = [0, 0], sizes = [1, 256], strides = [1, 1]} : vector<4x256xf32> to vector<1x256xf32>
    %348 = vector.extract_strided_slice %346 {offsets = [1, 0], sizes = [1, 256], strides = [1, 1]} : vector<4x256xf32> to vector<1x256xf32>
    %349 = arith.addf %347, %348 : vector<1x256xf32>
    %350 = arith.negf %349 : vector<1x256xf32>
    %351 = math.exp %350 : vector<1x256xf32>
    %cst_152 = arith.constant 1.000000e+00 : f32
    %352 = vector.broadcast %cst_152 : f32 to vector<1x256xf32>
    %353 = arith.addf %352, %351 : vector<1x256xf32>
    %354 = arith.divf %352, %353 : vector<1x256xf32>
    %c0_153 = arith.constant 0 : index
    %c0_154 = arith.constant 0 : index
    %c0_155 = arith.constant 0 : index
    %355 = vector.load %arg6[%c0_153, %c0_154, %c0_155] : memref<2x8x256xf32, #tpu.memory_space<vmem>>, vector<1x8x256xf32>
    %356 = vector.shape_cast %355 : vector<1x8x256xf32> to vector<8x256xf32>
    %357 = vector.broadcast %354 : vector<1x256xf32> to vector<8x256xf32>
    %358 = arith.mulf %356, %357 : vector<8x256xf32>
    %c0_156 = arith.constant 0 : index
    %c0_157 = arith.constant 0 : index
    %c0_158 = arith.constant 0 : index
    %359 = vector.load %arg5[%c0_156, %c0_157, %c0_158] : memref<2x8x256xf32, #tpu.memory_space<vmem>>, vector<1x8x256xf32>
    %360 = vector.shape_cast %359 : vector<1x8x256xf32> to vector<8x256xf32>
    %361 = vector.shape_cast %358 : vector<8x256xf32> to vector<1x8x256xf32>
    tpu.vector_store %arg5[%c0_156, %c0_157, %c0_158], %361 {strides = array<i32>} : memref<2x8x256xf32, #tpu.memory_space<vmem>>, vector<1x8x256xf32>,
    %362 = vector.extract_strided_slice %346 {offsets = [2, 0], sizes = [1, 256], strides = [1, 1]} : vector<4x256xf32> to vector<1x256xf32>
    %363 = vector.extract_strided_slice %346 {offsets = [3, 0], sizes = [1, 256], strides = [1, 1]} : vector<4x256xf32> to vector<1x256xf32>
    %364 = arith.addf %362, %363 : vector<1x256xf32>
    %365 = arith.negf %364 : vector<1x256xf32>
    %366 = math.exp %365 : vector<1x256xf32>
    %cst_159 = arith.constant 1.000000e+00 : f32
    %367 = vector.broadcast %cst_159 : f32 to vector<1x256xf32>
    %368 = arith.addf %367, %366 : vector<1x256xf32>
    %369 = arith.divf %367, %368 : vector<1x256xf32>
    %c1_160 = arith.constant 1 : index
    %c0_161 = arith.constant 0 : index
    %c0_162 = arith.constant 0 : index
    %370 = vector.load %arg6[%c1_160, %c0_161, %c0_162] : memref<2x8x256xf32, #tpu.memory_space<vmem>>, vector<1x8x256xf32>
    %371 = vector.shape_cast %370 : vector<1x8x256xf32> to vector<8x256xf32>
    %372 = vector.broadcast %369 : vector<1x256xf32> to vector<8x256xf32>
    %373 = arith.mulf %371, %372 : vector<8x256xf32>
    %c1_163 = arith.constant 1 : index
    %c0_164 = arith.constant 0 : index
    %c0_165 = arith.constant 0 : index
    %374 = vector.load %arg5[%c1_163, %c0_164, %c0_165] : memref<2x8x256xf32, #tpu.memory_space<vmem>>, vector<1x8x256xf32>
    %375 = vector.shape_cast %374 : vector<1x8x256xf32> to vector<8x256xf32>
    %376 = vector.shape_cast %373 : vector<8x256xf32> to vector<1x8x256xf32>
    tpu.vector_store %arg5[%c1_163, %c0_164, %c0_165], %376 {strides = array<i32>} : memref<2x8x256xf32, #tpu.memory_space<vmem>>, vector<1x8x256xf32>,
    return
  }
  func.func @transform_0(%arg0: i32) -> (i32, i32, i32) {
    %c0_i32 = arith.constant 0 : i32
    %c0_i32_0 = arith.constant 0 : i32
    %c0_i32_1 = arith.constant 0 : i32
    return %arg0, %c0_i32, %c0_i32_0 : i32, i32, i32
  }
  func.func @transform_1(%arg0: i32) -> (i32, i32) {
    %c0_i32 = arith.constant 0 : i32
    %c0_i32_0 = arith.constant 0 : i32
    %c0_i32_1 = arith.constant 0 : i32
    return %c0_i32, %c0_i32_0 : i32, i32
  }
  func.func @transform_2(%arg0: i32) -> (i32, i32) {
    %c0_i32 = arith.constant 0 : i32
    %c0_i32_0 = arith.constant 0 : i32
    %c0_i32_1 = arith.constant 0 : i32
    return %c0_i32, %c0_i32_0 : i32, i32
  }
  func.func @transform_3(%arg0: i32) -> (i32, i32, i32) {
    %c0_i32 = arith.constant 0 : i32
    %c0_i32_0 = arith.constant 0 : i32
    %c0_i32_1 = arith.constant 0 : i32
    %c0_i32_2 = arith.constant 0 : i32
    return %c0_i32, %c0_i32_0, %c0_i32_1 : i32, i32, i32
  }
  func.func @transform_4(%arg0: i32) -> (i32, i32, i32) {
    %c0_i32 = arith.constant 0 : i32
    %c0_i32_0 = arith.constant 0 : i32
    %c0_i32_1 = arith.constant 0 : i32
    return %arg0, %c0_i32, %c0_i32_0 : i32, i32, i32
  }
}

</mosaic_0001>

<llo_original>
// kernel: tile.9
$region0: #{tile.9}
  %s0 = inlined_call_operand.vmem [shape: f32[49,2,2,256], index: 0, kind: input, shape index: {}]
  %s1 = inlined_call_operand.vmem [shape: f32[49,4,256], index: 1, kind: output, shape index: {}]
  $region1: #{tile.9} parent=0
    #allocation0 [shape = 'u8[401408]{0}', space=vmem, size = 0x62000, scoped, tag = 'scoped mem for output reshape']
    #allocation1 [shape = 'u8[802816]{0}', space=vmem, size = 0xc4000, scoped, tag = 'scoped mem for input reshape']
    %s3 = sshllo.u32 0, 2
    %s4 = smul.addr 2, 195
    %s5 = scalar_lea.vmem %s0, %s4
    %v6 = vld [vmem:[%s5] sm:%s3]
    %s7 = scalar_lea.vmem [#allocation1], 1560
    %8 = vst [vmem:[%s7] sm:%s3] %v6
    %s9 = smul.addr 2, 194
    %s10 = scalar_lea.vmem %s0, %s9
    %v11 = vld [vmem:[%s10] sm:%s3]
    %s12 = scalar_lea.vmem [#allocation1], 1552
    %13 = vst [vmem:[%s12] sm:%s3] %v11
    %s14 = smul.addr 2, 193
    %s15 = scalar_lea.vmem %s0, %s14
    %v16 = vld [vmem:[%s15] sm:%s3]
    %s17 = scalar_lea.vmem [#allocation1], 1544
    %18 = vst [vmem:[%s17] sm:%s3] %v16
    %s19 = smul.addr 2, 192
    %s20 = scalar_lea.vmem %s0, %s19
    %v21 = vld [vmem:[%s20] sm:%s3]
    %s22 = scalar_lea.vmem [#allocation1], 1536
    %23 = vst [vmem:[%s22] sm:%s3] %v21
    %s24 = smul.addr 2, 191
    %s25 = scalar_lea.vmem %s0, %s24
    %v26 = vld [vmem:[%s25] sm:%s3]
    %s27 = scalar_lea.vmem [#allocation1], 1528
    %28 = vst [vmem:[%s27] sm:%s3] %v26
    %s29 = smul.addr 2, 190
    %s30 = scalar_lea.vmem %s0, %s29
    %v31 = vld [vmem:[%s30] sm:%s3]
    %s32 = scalar_lea.vmem [#allocation1], 1520
    %33 = vst [vmem:[%s32] sm:%s3] %v31
    %s34 = smul.addr 2, 189
    %s35 = scalar_lea.vmem %s0, %s34
    %v36 = vld [vmem:[%s35] sm:%s3]
    %s37 = scalar_lea.vmem [#allocation1], 1512
    %38 = vst [vmem:[%s37] sm:%s3] %v36
    %s39 = smul.addr 2, 188
    %s40 = scalar_lea.vmem %s0, %s39
    %v41 = vld [vmem:[%s40] sm:%s3]
    %s42 = scalar_lea.vmem [#allocation1], 1504
    %43 = vst [vmem:[%s42] sm:%s3] %v41
    %s44 = smul.addr 2, 187
    %s45 = scalar_lea.vmem %s0, %s44
    %v46 = vld [vmem:[%s45] sm:%s3]
    %s47 = scalar_lea.vmem [#allocation1], 1496
    %48 = vst [vmem:[%s47] sm:%s3] %v46
    %s49 = smul.addr 2, 186
    %s50 = scalar_lea.vmem %s0, %s49
    %v51 = vld [vmem:[%s50] sm:%s3]
    %s52 = scalar_lea.vmem [#allocation1], 1488
    %53 = vst [vmem:[%s52] sm:%s3] %v51
    %s54 = smul.addr 2, 185
    %s55 = scalar_lea.vmem %s0, %s54
    %v56 = vld [vmem:[%s55] sm:%s3]
    %s57 = scalar_lea.vmem [#allocation1], 1480
    %58 = vst [vmem:[%s57] sm:%s3] %v56
    %s59 = smul.addr 2, 184
    %s60 = scalar_lea.vmem %s0, %s59
    %v61 = vld [vmem:[%s60] sm:%s3]
    %s62 = scalar_lea.vmem [#allocation1], 1472
    %63 = vst [vmem:[%s62] sm:%s3] %v61
    %s64 = smul.addr 2, 183
    %s65 = scalar_lea.vmem %s0, %s64
    %v66 = vld [vmem:[%s65] sm:%s3]
    %s67 = scalar_lea.vmem [#allocation1], 1464
    %68 = vst [vmem:[%s67] sm:%s3] %v66
    %s69 = smul.addr 2, 182
    %s70 = scalar_lea.vmem %s0, %s69
    %v71 = vld [vmem:[%s70] sm:%s3]
    %s72 = scalar_lea.vmem [#allocation1], 1456
    %73 = vst [vmem:[%s72] sm:%s3] %v71
    %s74 = smul.addr 2, 181
    %s75 = scalar_lea.vmem %s0, %s74
    %v76 = vld [vmem:[%s75] sm:%s3]
    %s77 = scalar_lea.vmem [#allocation1], 1448
    %78 = vst [vmem:[%s77] sm:%s3] %v76
    %s79 = smul.addr 2, 180
    %s80 = scalar_lea.vmem %s0, %s79
    %v81 = vld [vmem:[%s80] sm:%s3]
    %s82 = scalar_lea.vmem [#allocation1], 1440
    %83 = vst [vmem:[%s82] sm:%s3] %v81
    %s84 = smul.addr 2, 179
    %s85 = scalar_lea.vmem %s0, %s84
    %v86 = vld [vmem:[%s85] sm:%s3]
    %s87 = scalar_lea.vmem [#allocation1], 1432
    %88 = vst [vmem:[%s87] sm:%s3] %v86
    %s89 = smul.addr 2, 178
    %s90 = scalar_lea.vmem %s0, %s89
    %v91 = vld [vmem:[%s90] sm:%s3]
    %s92 = scalar_lea.vmem [#allocation1], 1424
    %93 = vst [vmem:[%s92] sm:%s3] %v91
    %s94 = smul.addr 2, 177
    %s95 = scalar_lea.vmem %s0, %s94
    %v96 = vld [vmem:[%s95] sm:%s3]
    %s97 = scalar_lea.vmem [#allocation1], 1416
    %98 = vst [vmem:[%s97] sm:%s3] %v96
    %s99 = smul.addr 2, 176
    %s100 = scalar_lea.vmem %s0, %s99
    %v101 = vld [vmem:[%s100] sm:%s3]
    %s102 = scalar_lea.vmem [#allocation1], 1408
    %103 = vst [vmem:[%s102] sm:%s3] %v101
    %s104 = smul.addr 2, 175
    %s105 = scalar_lea.vmem %s0, %s104
    %v106 = vld [vmem:[%s105] sm:%s3]
    %s107 = scalar_lea.vmem [#allocation1], 1400
    %108 = vst [vmem:[%s107] sm:%s3] %v106
    %s109 = smul.addr 2, 174
    %s110 = scalar_lea.vmem %s0, %s109
    %v111 = vld [vmem:[%s110] sm:%s3]
    %s112 = scalar_lea.vmem [#allocation1], 1392
    %113 = vst [vmem:[%s112] sm:%s3] %v111
    %s114 = smul.addr 2, 173
    %s115 = scalar_lea.vmem %s0, %s114
    %v116 = vld [vmem:[%s115] sm:%s3]
    %s117 = scalar_lea.vmem [#allocation1], 1384
    %118 = vst [vmem:[%s117] sm:%s3] %v116
    %s119 = smul.addr 2, 172
    %s120 = scalar_lea.vmem %s0, %s119
    %v121 = vld [vmem:[%s120] sm:%s3]
    %s122 = scalar_lea.vmem [#allocation1], 1376
    %123 = vst [vmem:[%s122] sm:%s3] %v121
    %s124 = smul.addr 2, 171
    %s125 = scalar_lea.vmem %s0, %s124
    %v126 = vld [vmem:[%s125] sm:%s3]
    %s127 = scalar_lea.vmem [#allocation1], 1368
    %128 = vst [vmem:[%s127] sm:%s3] %v126
    %s129 = smul.addr 2, 170
    %s130 = scalar_lea.vmem %s0, %s129
    %v131 = vld [vmem:[%s130] sm:%s3]
    %s132 = scalar_lea.vmem [#allocation1], 1360
    %133 = vst [vmem:[%s132] sm:%s3] %v131
    %s134 = smul.addr 2, 169
    %s135 = scalar_lea.vmem %s0, %s134
    %v136 = vld [vmem:[%s135] sm:%s3]
    %s137 = scalar_lea.vmem [#allocation1], 1352
    %138 = vst [vmem:[%s137] sm:%s3] %v136
    %s139 = smul.addr 2, 168
    %s140 = scalar_lea.vmem %s0, %s139
    %v141 = vld [vmem:[%s140] sm:%s3]
    %s142 = scalar_lea.vmem [#allocation1], 1344
    %143 = vst [vmem:[%s142] sm:%s3] %v141
    %s144 = smul.addr 2, 167
    %s145 = scalar_lea.vmem %s0, %s144
    %v146 = vld [vmem:[%s145] sm:%s3]
    %s147 = scalar_lea.vmem [#allocation1], 1336
    %148 = vst [vmem:[%s147] sm:%s3] %v146
    %s149 = smul.addr 2, 166
    %s150 = scalar_lea.vmem %s0, %s149
    %v151 = vld [vmem:[%s150] sm:%s3]
    %s152 = scalar_lea.vmem [#allocation1], 1328
    %153 = vst [vmem:[%s152] sm:%s3] %v151
    %s154 = smul.addr 2, 165
    %s155 = scalar_lea.vmem %s0, %s154
    %v156 = vld [vmem:[%s155] sm:%s3]
    %s157 = scalar_lea.vmem [#allocation1], 1320
    %158 = vst [vmem:[%s157] sm:%s3] %v156
    %s159 = smul.addr 2, 164
    %s160 = scalar_lea.vmem %s0, %s159
    %v161 = vld [vmem:[%s160] sm:%s3]
    %s162 = scalar_lea.vmem [#allocation1], 1312
    %163 = vst [vmem:[%s162] sm:%s3] %v161
    %s164 = smul.addr 2, 163
    %s165 = scalar_lea.vmem %s0, %s164
    %v166 = vld [vmem:[%s165] sm:%s3]
    %s167 = scalar_lea.vmem [#allocation1], 1304
    %168 = vst [vmem:[%s167] sm:%s3] %v166
    %s169 = smul.addr 2, 162
    %s170 = scalar_lea.vmem %s0, %s169
    %v171 = vld [vmem:[%s170] sm:%s3]
    %s172 = scalar_lea.vmem [#allocation1], 1296
    %173 = vst [vmem:[%s172] sm:%s3] %v171
    %s174 = smul.addr 2, 161
    %s175 = scalar_lea.vmem %s0, %s174
    %v176 = vld [vmem:[%s175] sm:%s3]
    %s177 = scalar_lea.vmem [#allocation1], 1288
    %178 = vst [vmem:[%s177] sm:%s3] %v176
    %s179 = smul.addr 2, 160
    %s180 = scalar_lea.vmem %s0, %s179
    %v181 = vld [vmem:[%s180] sm:%s3]
    %s182 = scalar_lea.vmem [#allocation1], 1280
    %183 = vst [vmem:[%s182] sm:%s3] %v181
    %s184 = smul.addr 2, 159
    %s185 = scalar_lea.vmem %s0, %s184
    %v186 = vld [vmem:[%s185] sm:%s3]
    %s187 = scalar_lea.vmem [#allocation1], 1272
    %188 = vst [vmem:[%s187] sm:%s3] %v186
    %s189 = smul.addr 2, 158
    %s190 = scalar_lea.vmem %s0, %s189
    %v191 = vld [vmem:[%s190] sm:%s3]
    %s192 = scalar_lea.vmem [#allocation1], 1264
    %193 = vst [vmem:[%s192] sm:%s3] %v191
    %s194 = smul.addr 2, 157
    %s195 = scalar_lea.vmem %s0, %s194
    %v196 = vld [vmem:[%s195] sm:%s3]
    %s197 = scalar_lea.vmem [#allocation1], 1256
    %198 = vst [vmem:[%s197] sm:%s3] %v196
    %s199 = smul.addr 2, 156
    %s200 = scalar_lea.vmem %s0, %s199
    %v201 = vld [vmem:[%s200] sm:%s3]
    %s202 = scalar_lea.vmem [#allocation1], 1248
    %203 = vst [vmem:[%s202] sm:%s3] %v201
    %s204 = smul.addr 2, 155
    %s205 = scalar_lea.vmem %s0, %s204
    %v206 = vld [vmem:[%s205] sm:%s3]
    %s207 = scalar_lea.vmem [#allocation1], 1240
    %208 = vst [vmem:[%s207] sm:%s3] %v206
    %s209 = smul.addr 2, 154
    %s210 = scalar_lea.vmem %s0, %s209
    %v211 = vld [vmem:[%s210] sm:%s3]
    %s212 = scalar_lea.vmem [#allocation1], 1232
    %213 = vst [vmem:[%s212] sm:%s3] %v211
    %s214 = smul.addr 2, 153
    %s215 = scalar_lea.vmem %s0, %s214
    %v216 = vld [vmem:[%s215] sm:%s3]
    %s217 = scalar_lea.vmem [#allocation1], 1224
    %218 = vst [vmem:[%s217] sm:%s3] %v216
    %s219 = smul.addr 2, 152
    %s220 = scalar_lea.vmem %s0, %s219
    %v221 = vld [vmem:[%s220] sm:%s3]
    %s222 = scalar_lea.vmem [#allocation1], 1216
    %223 = vst [vmem:[%s222] sm:%s3] %v221
    %s224 = smul.addr 2, 151
    %s225 = scalar_lea.vmem %s0, %s224
    %v226 = vld [vmem:[%s225] sm:%s3]
    %s227 = scalar_lea.vmem [#allocation1], 1208
    %228 = vst [vmem:[%s227] sm:%s3] %v226
    %s229 = smul.addr 2, 150
    %s230 = scalar_lea.vmem %s0, %s229
    %v231 = vld [vmem:[%s230] sm:%s3]
    %s232 = scalar_lea.vmem [#allocation1], 1200
    %233 = vst [vmem:[%s232] sm:%s3] %v231
    %s234 = smul.addr 2, 149
    %s235 = scalar_lea.vmem %s0, %s234
    %v236 = vld [vmem:[%s235] sm:%s3]
    %s237 = scalar_lea.vmem [#allocation1], 1192
    %238 = vst [vmem:[%s237] sm:%s3] %v236
    %s239 = smul.addr 2, 148
    %s240 = scalar_lea.vmem %s0, %s239
    %v241 = vld [vmem:[%s240] sm:%s3]
    %s242 = scalar_lea.vmem [#allocation1], 1184
    %243 = vst [vmem:[%s242] sm:%s3] %v241
    %s244 = smul.addr 2, 147
    %s245 = scalar_lea.vmem %s0, %s244
    %v246 = vld [vmem:[%s245] sm:%s3]
    %s247 = scalar_lea.vmem [#allocation1], 1176
    %248 = vst [vmem:[%s247] sm:%s3] %v246
    %s249 = smul.addr 2, 146
    %s250 = scalar_lea.vmem %s0, %s249
    %v251 = vld [vmem:[%s250] sm:%s3]
    %s252 = scalar_lea.vmem [#allocation1], 1168
    %253 = vst [vmem:[%s252] sm:%s3] %v251
    %s254 = smul.addr 2, 145
    %s255 = scalar_lea.vmem %s0, %s254
    %v256 = vld [vmem:[%s255] sm:%s3]
    %s257 = scalar_lea.vmem [#allocation1], 1160
    %258 = vst [vmem:[%s257] sm:%s3] %v256
    %s259 = smul.addr 2, 144
    %s260 = scalar_lea.vmem %s0, %s259
    %v261 = vld [vmem:[%s260] sm:%s3]
    %s262 = scalar_lea.vmem [#allocation1], 1152
    %263 = vst [vmem:[%s262] sm:%s3] %v261
    %s264 = smul.addr 2, 143
    %s265 = scalar_lea.vmem %s0, %s264
    %v266 = vld [vmem:[%s265] sm:%s3]
    %s267 = scalar_lea.vmem [#allocation1], 1144
    %268 = vst [vmem:[%s267] sm:%s3] %v266
    %s269 = smul.addr 2, 142
    %s270 = scalar_lea.vmem %s0, %s269
    %v271 = vld [vmem:[%s270] sm:%s3]
    %s272 = scalar_lea.vmem [#allocation1], 1136
    %273 = vst [vmem:[%s272] sm:%s3] %v271
    %s274 = smul.addr 2, 141
    %s275 = scalar_lea.vmem %s0, %s274
    %v276 = vld [vmem:[%s275] sm:%s3]
    %s277 = scalar_lea.vmem [#allocation1], 1128
    %278 = vst [vmem:[%s277] sm:%s3] %v276
    %s279 = smul.addr 2, 140
    %s280 = scalar_lea.vmem %s0, %s279
    %v281 = vld [vmem:[%s280] sm:%s3]
    %s282 = scalar_lea.vmem [#allocation1], 1120
    %283 = vst [vmem:[%s282] sm:%s3] %v281
    %s284 = smul.addr 2, 139
    %s285 = scalar_lea.vmem %s0, %s284
    %v286 = vld [vmem:[%s285] sm:%s3]
    %s287 = scalar_lea.vmem [#allocation1], 1112
    %288 = vst [vmem:[%s287] sm:%s3] %v286
    %s289 = smul.addr 2, 138
    %s290 = scalar_lea.vmem %s0, %s289
    %v291 = vld [vmem:[%s290] sm:%s3]
    %s292 = scalar_lea.vmem [#allocation1], 1104
    %293 = vst [vmem:[%s292] sm:%s3] %v291
    %s294 = smul.addr 2, 137
    %s295 = scalar_lea.vmem %s0, %s294
    %v296 = vld [vmem:[%s295] sm:%s3]
    %s297 = scalar_lea.vmem [#allocation1], 1096
    %298 = vst [vmem:[%s297] sm:%s3] %v296
    %s299 = smul.addr 2, 136
    %s300 = scalar_lea.vmem %s0, %s299
    %v301 = vld [vmem:[%s300] sm:%s3]
    %s302 = scalar_lea.vmem [#allocation1], 1088
    %303 = vst [vmem:[%s302] sm:%s3] %v301
    %s304 = smul.addr 2, 135
    %s305 = scalar_lea.vmem %s0, %s304
    %v306 = vld [vmem:[%s305] sm:%s3]
    %s307 = scalar_lea.vmem [#allocation1], 1080
    %308 = vst [vmem:[%s307] sm:%s3] %v306
    %s309 = smul.addr 2, 134
    %s310 = scalar_lea.vmem %s0, %s309
    %v311 = vld [vmem:[%s310] sm:%s3]
    %s312 = scalar_lea.vmem [#allocation1], 1072
    %313 = vst [vmem:[%s312] sm:%s3] %v311
    %s314 = smul.addr 2, 133
    %s315 = scalar_lea.vmem %s0, %s314
    %v316 = vld [vmem:[%s315] sm:%s3]
    %s317 = scalar_lea.vmem [#allocation1], 1064
    %318 = vst [vmem:[%s317] sm:%s3] %v316
    %s319 = smul.addr 2, 132
    %s320 = scalar_lea.vmem %s0, %s319
    %v321 = vld [vmem:[%s320] sm:%s3]
    %s322 = scalar_lea.vmem [#allocation1], 1056
    %323 = vst [vmem:[%s322] sm:%s3] %v321
    %s324 = smul.addr 2, 131
    %s325 = scalar_lea.vmem %s0, %s324
    %v326 = vld [vmem:[%s325] sm:%s3]
    %s327 = scalar_lea.vmem [#allocation1], 1048
    %328 = vst [vmem:[%s327] sm:%s3] %v326
    %s329 = smul.addr 2, 130
    %s330 = scalar_lea.vmem %s0, %s329
    %v331 = vld [vmem:[%s330] sm:%s3]
    %s332 = scalar_lea.vmem [#allocation1], 1040
    %333 = vst [vmem:[%s332] sm:%s3] %v331
    %s334 = smul.addr 2, 129
    %s335 = scalar_lea.vmem %s0, %s334
    %v336 = vld [vmem:[%s335] sm:%s3]
    %s337 = scalar_lea.vmem [#allocation1], 1032
    %338 = vst [vmem:[%s337] sm:%s3] %v336
    %s339 = smul.addr 2, 128
    %s340 = scalar_lea.vmem %s0, %s339
    %v341 = vld [vmem:[%s340] sm:%s3]
    %s342 = scalar_lea.vmem [#allocation1], 1024
    %343 = vst [vmem:[%s342] sm:%s3] %v341
    %s344 = smul.addr 2, 127
    %s345 = scalar_lea.vmem %s0, %s344
    %v346 = vld [vmem:[%s345] sm:%s3]
    %s347 = scalar_lea.vmem [#allocation1], 1016
    %348 = vst [vmem:[%s347] sm:%s3] %v346
    %s349 = smul.addr 2, 126
    %s350 = scalar_lea.vmem %s0, %s349
    %v351 = vld [vmem:[%s350] sm:%s3]
    %s352 = scalar_lea.vmem [#allocation1], 1008
    %353 = vst [vmem:[%s352] sm:%s3] %v351
    %s354 = smul.addr 2, 125
    %s355 = scalar_lea.vmem %s0, %s354
    %v356 = vld [vmem:[%s355] sm:%s3]
    %s357 = scalar_lea.vmem [#allocation1], 1000
    %358 = vst [vmem:[%s357] sm:%s3] %v356
    %s359 = smul.addr 2, 124
    %s360 = scalar_lea.vmem %s0, %s359
    %v361 = vld [vmem:[%s360] sm:%s3]
    %s362 = scalar_lea.vmem [#allocation1], 992
    %363 = vst [vmem:[%s362] sm:%s3] %v361
    %s364 = smul.addr 2, 123
    %s365 = scalar_lea.vmem %s0, %s364
    %v366 = vld [vmem:[%s365] sm:%s3]
    %s367 = scalar_lea.vmem [#allocation1], 984
    %368 = vst [vmem:[%s367] sm:%s3] %v366
    %s369 = smul.addr 2, 122
    %s370 = scalar_lea.vmem %s0, %s369
    %v371 = vld [vmem:[%s370] sm:%s3]
    %s372 = scalar_lea.vmem [#allocation1], 976
    %373 = vst [vmem:[%s372] sm:%s3] %v371
    %s374 = smul.addr 2, 121
    %s375 = scalar_lea.vmem %s0, %s374
    %v376 = vld [vmem:[%s375] sm:%s3]
    %s377 = scalar_lea.vmem [#allocation1], 968
    %378 = vst [vmem:[%s377] sm:%s3] %v376
    %s379 = smul.addr 2, 120
    %s380 = scalar_lea.vmem %s0, %s379
    %v381 = vld [vmem:[%s380] sm:%s3]
    %s382 = scalar_lea.vmem [#allocation1], 960
    %383 = vst [vmem:[%s382] sm:%s3] %v381
    %s384 = smul.addr 2, 119
    %s385 = scalar_lea.vmem %s0, %s384
    %v386 = vld [vmem:[%s385] sm:%s3]
    %s387 = scalar_lea.vmem [#allocation1], 952
    %388 = vst [vmem:[%s387] sm:%s3] %v386
    %s389 = smul.addr 2, 118
    %s390 = scalar_lea.vmem %s0, %s389
    %v391 = vld [vmem:[%s390] sm:%s3]
    %s392 = scalar_lea.vmem [#allocation1], 944
    %393 = vst [vmem:[%s392] sm:%s3] %v391
    %s394 = smul.addr 2, 117
    %s395 = scalar_lea.vmem %s0, %s394
    %v396 = vld [vmem:[%s395] sm:%s3]
    %s397 = scalar_lea.vmem [#allocation1], 936
    %398 = vst [vmem:[%s397] sm:%s3] %v396
    %s399 = smul.addr 2, 116
    %s400 = scalar_lea.vmem %s0, %s399
    %v401 = vld [vmem:[%s400] sm:%s3]
    %s402 = scalar_lea.vmem [#allocation1], 928
    %403 = vst [vmem:[%s402] sm:%s3] %v401
    %s404 = smul.addr 2, 115
    %s405 = scalar_lea.vmem %s0, %s404
    %v406 = vld [vmem:[%s405] sm:%s3]
    %s407 = scalar_lea.vmem [#allocation1], 920
    %408 = vst [vmem:[%s407] sm:%s3] %v406
    %s409 = smul.addr 2, 114
    %s410 = scalar_lea.vmem %s0, %s409
    %v411 = vld [vmem:[%s410] sm:%s3]
    %s412 = scalar_lea.vmem [#allocation1], 912
    %413 = vst [vmem:[%s412] sm:%s3] %v411
    %s414 = smul.addr 2, 113
    %s415 = scalar_lea.vmem %s0, %s414
    %v416 = vld [vmem:[%s415] sm:%s3]
    %s417 = scalar_lea.vmem [#allocation1], 904
    %418 = vst [vmem:[%s417] sm:%s3] %v416
    %s419 = smul.addr 2, 112
    %s420 = scalar_lea.vmem %s0, %s419
    %v421 = vld [vmem:[%s420] sm:%s3]
    %s422 = scalar_lea.vmem [#allocation1], 896
    %423 = vst [vmem:[%s422] sm:%s3] %v421
    %s424 = smul.addr 2, 111
    %s425 = scalar_lea.vmem %s0, %s424
    %v426 = vld [vmem:[%s425] sm:%s3]
    %s427 = scalar_lea.vmem [#allocation1], 888
    %428 = vst [vmem:[%s427] sm:%s3] %v426
    %s429 = smul.addr 2, 110
    %s430 = scalar_lea.vmem %s0, %s429
    %v431 = vld [vmem:[%s430] sm:%s3]
    %s432 = scalar_lea.vmem [#allocation1], 880
    %433 = vst [vmem:[%s432] sm:%s3] %v431
    %s434 = smul.addr 2, 109
    %s435 = scalar_lea.vmem %s0, %s434
    %v436 = vld [vmem:[%s435] sm:%s3]
    %s437 = scalar_lea.vmem [#allocation1], 872
    %438 = vst [vmem:[%s437] sm:%s3] %v436
    %s439 = smul.addr 2, 108
    %s440 = scalar_lea.vmem %s0, %s439
    %v441 = vld [vmem:[%s440] sm:%s3]
    %s442 = scalar_lea.vmem [#allocation1], 864
    %443 = vst [vmem:[%s442] sm:%s3] %v441
    %s444 = smul.addr 2, 107
    %s445 = scalar_lea.vmem %s0, %s444
    %v446 = vld [vmem:[%s445] sm:%s3]
    %s447 = scalar_lea.vmem [#allocation1], 856
    %448 = vst [vmem:[%s447] sm:%s3] %v446
    %s449 = smul.addr 2, 106
    %s450 = scalar_lea.vmem %s0, %s449
    %v451 = vld [vmem:[%s450] sm:%s3]
    %s452 = scalar_lea.vmem [#allocation1], 848
    %453 = vst [vmem:[%s452] sm:%s3] %v451
    %s454 = smul.addr 2, 105
    %s455 = scalar_lea.vmem %s0, %s454
    %v456 = vld [vmem:[%s455] sm:%s3]
    %s457 = scalar_lea.vmem [#allocation1], 840
    %458 = vst [vmem:[%s457] sm:%s3] %v456
    %s459 = smul.addr 2, 104
    %s460 = scalar_lea.vmem %s0, %s459
    %v461 = vld [vmem:[%s460] sm:%s3]
    %s462 = scalar_lea.vmem [#allocation1], 832
    %463 = vst [vmem:[%s462] sm:%s3] %v461
    %s464 = smul.addr 2, 103
    %s465 = scalar_lea.vmem %s0, %s464
    %v466 = vld [vmem:[%s465] sm:%s3]
    %s467 = scalar_lea.vmem [#allocation1], 824
    %468 = vst [vmem:[%s467] sm:%s3] %v466
    %s469 = smul.addr 2, 102
    %s470 = scalar_lea.vmem %s0, %s469
    %v471 = vld [vmem:[%s470] sm:%s3]
    %s472 = scalar_lea.vmem [#allocation1], 816
    %473 = vst [vmem:[%s472] sm:%s3] %v471
    %s474 = smul.addr 2, 101
    %s475 = scalar_lea.vmem %s0, %s474
    %v476 = vld [vmem:[%s475] sm:%s3]
    %s477 = scalar_lea.vmem [#allocation1], 808
    %478 = vst [vmem:[%s477] sm:%s3] %v476
    %s479 = smul.addr 2, 100
    %s480 = scalar_lea.vmem %s0, %s479
    %v481 = vld [vmem:[%s480] sm:%s3]
    %s482 = scalar_lea.vmem [#allocation1], 800
    %483 = vst [vmem:[%s482] sm:%s3] %v481
    %s484 = smul.addr 2, 99
    %s485 = scalar_lea.vmem %s0, %s484
    %v486 = vld [vmem:[%s485] sm:%s3]
    %s487 = scalar_lea.vmem [#allocation1], 792
    %488 = vst [vmem:[%s487] sm:%s3] %v486
    %s489 = smul.addr 2, 98
    %s490 = scalar_lea.vmem %s0, %s489
    %v491 = vld [vmem:[%s490] sm:%s3]
    %s492 = scalar_lea.vmem [#allocation1], 784
    %493 = vst [vmem:[%s492] sm:%s3] %v491
    %s494 = smul.addr 2, 97
    %s495 = scalar_lea.vmem %s0, %s494
    %v496 = vld [vmem:[%s495] sm:%s3]
    %s497 = scalar_lea.vmem [#allocation1], 776
    %498 = vst [vmem:[%s497] sm:%s3] %v496
    %s499 = smul.addr 2, 96
    %s500 = scalar_lea.vmem %s0, %s499
    %v501 = vld [vmem:[%s500] sm:%s3]
    %s502 = scalar_lea.vmem [#allocation1], 768
    %503 = vst [vmem:[%s502] sm:%s3] %v501
    %s504 = smul.addr 2, 95
    %s505 = scalar_lea.vmem %s0, %s504
    %v506 = vld [vmem:[%s505] sm:%s3]
    %s507 = scalar_lea.vmem [#allocation1], 760
    %508 = vst [vmem:[%s507] sm:%s3] %v506
    %s509 = smul.addr 2, 94
    %s510 = scalar_lea.vmem %s0, %s509
    %v511 = vld [vmem:[%s510] sm:%s3]
    %s512 = scalar_lea.vmem [#allocation1], 752
    %513 = vst [vmem:[%s512] sm:%s3] %v511
    %s514 = smul.addr 2, 93
    %s515 = scalar_lea.vmem %s0, %s514
    %v516 = vld [vmem:[%s515] sm:%s3]
    %s517 = scalar_lea.vmem [#allocation1], 744
    %518 = vst [vmem:[%s517] sm:%s3] %v516
    %s519 = smul.addr 2, 92
    %s520 = scalar_lea.vmem %s0, %s519
    %v521 = vld [vmem:[%s520] sm:%s3]
    %s522 = scalar_lea.vmem [#allocation1], 736
    %523 = vst [vmem:[%s522] sm:%s3] %v521
    %s524 = smul.addr 2, 91
    %s525 = scalar_lea.vmem %s0, %s524
    %v526 = vld [vmem:[%s525] sm:%s3]
    %s527 = scalar_lea.vmem [#allocation1], 728
    %528 = vst [vmem:[%s527] sm:%s3] %v526
    %s529 = smul.addr 2, 90
    %s530 = scalar_lea.vmem %s0, %s529
    %v531 = vld [vmem:[%s530] sm:%s3]
    %s532 = scalar_lea.vmem [#allocation1], 720
    %533 = vst [vmem:[%s532] sm:%s3] %v531
    %s534 = smul.addr 2, 89
    %s535 = scalar_lea.vmem %s0, %s534
    %v536 = vld [vmem:[%s535] sm:%s3]
    %s537 = scalar_lea.vmem [#allocation1], 712
    %538 = vst [vmem:[%s537] sm:%s3] %v536
    %s539 = smul.addr 2, 88
    %s540 = scalar_lea.vmem %s0, %s539
    %v541 = vld [vmem:[%s540] sm:%s3]
    %s542 = scalar_lea.vmem [#allocation1], 704
    %543 = vst [vmem:[%s542] sm:%s3] %v541
    %s544 = smul.addr 2, 87
    %s545 = scalar_lea.vmem %s0, %s544
    %v546 = vld [vmem:[%s545] sm:%s3]
    %s547 = scalar_lea.vmem [#allocation1], 696
    %548 = vst [vmem:[%s547] sm:%s3] %v546
    %s549 = smul.addr 2, 86
    %s550 = scalar_lea.vmem %s0, %s549
    %v551 = vld [vmem:[%s550] sm:%s3]
    %s552 = scalar_lea.vmem [#allocation1], 688
    %553 = vst [vmem:[%s552] sm:%s3] %v551
    %s554 = smul.addr 2, 85
    %s555 = scalar_lea.vmem %s0, %s554
    %v556 = vld [vmem:[%s555] sm:%s3]
    %s557 = scalar_lea.vmem [#allocation1], 680
    %558 = vst [vmem:[%s557] sm:%s3] %v556
    %s559 = smul.addr 2, 84
    %s560 = scalar_lea.vmem %s0, %s559
    %v561 = vld [vmem:[%s560] sm:%s3]
    %s562 = scalar_lea.vmem [#allocation1], 672
    %563 = vst [vmem:[%s562] sm:%s3] %v561
    %s564 = smul.addr 2, 83
    %s565 = scalar_lea.vmem %s0, %s564
    %v566 = vld [vmem:[%s565] sm:%s3]
    %s567 = scalar_lea.vmem [#allocation1], 664
    %568 = vst [vmem:[%s567] sm:%s3] %v566
    %s569 = smul.addr 2, 82
    %s570 = scalar_lea.vmem %s0, %s569
    %v571 = vld [vmem:[%s570] sm:%s3]
    %s572 = scalar_lea.vmem [#allocation1], 656
    %573 = vst [vmem:[%s572] sm:%s3] %v571
    %s574 = smul.addr 2, 81
    %s575 = scalar_lea.vmem %s0, %s574
    %v576 = vld [vmem:[%s575] sm:%s3]
    %s577 = scalar_lea.vmem [#allocation1], 648
    %578 = vst [vmem:[%s577] sm:%s3] %v576
    %s579 = smul.addr 2, 80
    %s580 = scalar_lea.vmem %s0, %s579
    %v581 = vld [vmem:[%s580] sm:%s3]
    %s582 = scalar_lea.vmem [#allocation1], 640
    %583 = vst [vmem:[%s582] sm:%s3] %v581
    %s584 = smul.addr 2, 79
    %s585 = scalar_lea.vmem %s0, %s584
    %v586 = vld [vmem:[%s585] sm:%s3]
    %s587 = scalar_lea.vmem [#allocation1], 632
    %588 = vst [vmem:[%s587] sm:%s3] %v586
    %s589 = smul.addr 2, 78
    %s590 = scalar_lea.vmem %s0, %s589
    %v591 = vld [vmem:[%s590] sm:%s3]
    %s592 = scalar_lea.vmem [#allocation1], 624
    %593 = vst [vmem:[%s592] sm:%s3] %v591
    %s594 = smul.addr 2, 77
    %s595 = scalar_lea.vmem %s0, %s594
    %v596 = vld [vmem:[%s595] sm:%s3]
    %s597 = scalar_lea.vmem [#allocation1], 616
    %598 = vst [vmem:[%s597] sm:%s3] %v596
    %s599 = smul.addr 2, 76
    %s600 = scalar_lea.vmem %s0, %s599
    %v601 = vld [vmem:[%s600] sm:%s3]
    %s602 = scalar_lea.vmem [#allocation1], 608
    %603 = vst [vmem:[%s602] sm:%s3] %v601
    %s604 = smul.addr 2, 75
    %s605 = scalar_lea.vmem %s0, %s604
    %v606 = vld [vmem:[%s605] sm:%s3]
    %s607 = scalar_lea.vmem [#allocation1], 600
    %608 = vst [vmem:[%s607] sm:%s3] %v606
    %s609 = smul.addr 2, 74
    %s610 = scalar_lea.vmem %s0, %s609
    %v611 = vld [vmem:[%s610] sm:%s3]
    %s612 = scalar_lea.vmem [#allocation1], 592
    %613 = vst [vmem:[%s612] sm:%s3] %v611
    %s614 = smul.addr 2, 73
    %s615 = scalar_lea.vmem %s0, %s614
    %v616 = vld [vmem:[%s615] sm:%s3]
    %s617 = scalar_lea.vmem [#allocation1], 584
    %618 = vst [vmem:[%s617] sm:%s3] %v616
    %s619 = smul.addr 2, 72
    %s620 = scalar_lea.vmem %s0, %s619
    %v621 = vld [vmem:[%s620] sm:%s3]
    %s622 = scalar_lea.vmem [#allocation1], 576
    %623 = vst [vmem:[%s622] sm:%s3] %v621
    %s624 = smul.addr 2, 71
    %s625 = scalar_lea.vmem %s0, %s624
    %v626 = vld [vmem:[%s625] sm:%s3]
    %s627 = scalar_lea.vmem [#allocation1], 568
    %628 = vst [vmem:[%s627] sm:%s3] %v626
    %s629 = smul.addr 2, 70
    %s630 = scalar_lea.vmem %s0, %s629
    %v631 = vld [vmem:[%s630] sm:%s3]
    %s632 = scalar_lea.vmem [#allocation1], 560
    %633 = vst [vmem:[%s632] sm:%s3] %v631
    %s634 = smul.addr 2, 69
    %s635 = scalar_lea.vmem %s0, %s634
    %v636 = vld [vmem:[%s635] sm:%s3]
    %s637 = scalar_lea.vmem [#allocation1], 552
    %638 = vst [vmem:[%s637] sm:%s3] %v636
    %s639 = smul.addr 2, 68
    %s640 = scalar_lea.vmem %s0, %s639
    %v641 = vld [vmem:[%s640] sm:%s3]
    %s642 = scalar_lea.vmem [#allocation1], 544
    %643 = vst [vmem:[%s642] sm:%s3] %v641
    %s644 = smul.addr 2, 67
    %s645 = scalar_lea.vmem %s0, %s644
    %v646 = vld [vmem:[%s645] sm:%s3]
    %s647 = scalar_lea.vmem [#allocation1], 536
    %648 = vst [vmem:[%s647] sm:%s3] %v646
    %s649 = smul.addr 2, 66
    %s650 = scalar_lea.vmem %s0, %s649
    %v651 = vld [vmem:[%s650] sm:%s3]
    %s652 = scalar_lea.vmem [#allocation1], 528
    %653 = vst [vmem:[%s652] sm:%s3] %v651
    %s654 = smul.addr 2, 65
    %s655 = scalar_lea.vmem %s0, %s654
    %v656 = vld [vmem:[%s655] sm:%s3]
    %s657 = scalar_lea.vmem [#allocation1], 520
    %658 = vst [vmem:[%s657] sm:%s3] %v656
    %s659 = smul.addr 2, 64
    %s660 = scalar_lea.vmem %s0, %s659
    %v661 = vld [vmem:[%s660] sm:%s3]
    %s662 = scalar_lea.vmem [#allocation1], 512
    %663 = vst [vmem:[%s662] sm:%s3] %v661
    %s664 = smul.addr 2, 63
    %s665 = scalar_lea.vmem %s0, %s664
    %v666 = vld [vmem:[%s665] sm:%s3]
    %s667 = scalar_lea.vmem [#allocation1], 504
    %668 = vst [vmem:[%s667] sm:%s3] %v666
    %s669 = smul.addr 2, 62
    %s670 = scalar_lea.vmem %s0, %s669
    %v671 = vld [vmem:[%s670] sm:%s3]
    %s672 = scalar_lea.vmem [#allocation1], 496
    %673 = vst [vmem:[%s672] sm:%s3] %v671
    %s674 = smul.addr 2, 61
    %s675 = scalar_lea.vmem %s0, %s674
    %v676 = vld [vmem:[%s675] sm:%s3]
    %s677 = scalar_lea.vmem [#allocation1], 488
    %678 = vst [vmem:[%s677] sm:%s3] %v676
    %s679 = smul.addr 2, 60
    %s680 = scalar_lea.vmem %s0, %s679
    %v681 = vld [vmem:[%s680] sm:%s3]
    %s682 = scalar_lea.vmem [#allocation1], 480
    %683 = vst [vmem:[%s682] sm:%s3] %v681
    %s684 = smul.addr 2, 59
    %s685 = scalar_lea.vmem %s0, %s684
    %v686 = vld [vmem:[%s685] sm:%s3]
    %s687 = scalar_lea.vmem [#allocation1], 472
    %688 = vst [vmem:[%s687] sm:%s3] %v686
    %s689 = smul.addr 2, 58
    %s690 = scalar_lea.vmem %s0, %s689
    %v691 = vld [vmem:[%s690] sm:%s3]
    %s692 = scalar_lea.vmem [#allocation1], 464
    %693 = vst [vmem:[%s692] sm:%s3] %v691
    %s694 = smul.addr 2, 57
    %s695 = scalar_lea.vmem %s0, %s694
    %v696 = vld [vmem:[%s695] sm:%s3]
    %s697 = scalar_lea.vmem [#allocation1], 456
    %698 = vst [vmem:[%s697] sm:%s3] %v696
    %s699 = smul.addr 2, 56
    %s700 = scalar_lea.vmem %s0, %s699
    %v701 = vld [vmem:[%s700] sm:%s3]
    %s702 = scalar_lea.vmem [#allocation1], 448
    %703 = vst [vmem:[%s702] sm:%s3] %v701
    %s704 = smul.addr 2, 55
    %s705 = scalar_lea.vmem %s0, %s704
    %v706 = vld [vmem:[%s705] sm:%s3]
    %s707 = scalar_lea.vmem [#allocation1], 440
    %708 = vst [vmem:[%s707] sm:%s3] %v706
    %s709 = smul.addr 2, 54
    %s710 = scalar_lea.vmem %s0, %s709
    %v711 = vld [vmem:[%s710] sm:%s3]
    %s712 = scalar_lea.vmem [#allocation1], 432
    %713 = vst [vmem:[%s712] sm:%s3] %v711
    %s714 = smul.addr 2, 53
    %s715 = scalar_lea.vmem %s0, %s714
    %v716 = vld [vmem:[%s715] sm:%s3]
    %s717 = scalar_lea.vmem [#allocation1], 424
    %718 = vst [vmem:[%s717] sm:%s3] %v716
    %s719 = smul.addr 2, 52
    %s720 = scalar_lea.vmem %s0, %s719
    %v721 = vld [vmem:[%s720] sm:%s3]
    %s722 = scalar_lea.vmem [#allocation1], 416
    %723 = vst [vmem:[%s722] sm:%s3] %v721
    %s724 = smul.addr 2, 51
    %s725 = scalar_lea.vmem %s0, %s724
    %v726 = vld [vmem:[%s725] sm:%s3]
    %s727 = scalar_lea.vmem [#allocation1], 408
    %728 = vst [vmem:[%s727] sm:%s3] %v726
    %s729 = smul.addr 2, 50
    %s730 = scalar_lea.vmem %s0, %s729
    %v731 = vld [vmem:[%s730] sm:%s3]
    %s732 = scalar_lea.vmem [#allocation1], 400
    %733 = vst [vmem:[%s732] sm:%s3] %v731
    %s734 = smul.addr 2, 49
    %s735 = scalar_lea.vmem %s0, %s734
    %v736 = vld [vmem:[%s735] sm:%s3]
    %s737 = scalar_lea.vmem [#allocation1], 392
    %738 = vst [vmem:[%s737] sm:%s3] %v736
    %s739 = smul.addr 2, 48
    %s740 = scalar_lea.vmem %s0, %s739
    %v741 = vld [vmem:[%s740] sm:%s3]
    %s742 = scalar_lea.vmem [#allocation1], 384
    %743 = vst [vmem:[%s742] sm:%s3] %v741
    %s744 = smul.addr 2, 47
    %s745 = scalar_lea.vmem %s0, %s744
    %v746 = vld [vmem:[%s745] sm:%s3]
    %s747 = scalar_lea.vmem [#allocation1], 376
    %748 = vst [vmem:[%s747] sm:%s3] %v746
    %s749 = smul.addr 2, 46
    %s750 = scalar_lea.vmem %s0, %s749
    %v751 = vld [vmem:[%s750] sm:%s3]
    %s752 = scalar_lea.vmem [#allocation1], 368
    %753 = vst [vmem:[%s752] sm:%s3] %v751
    %s754 = smul.addr 2, 45
    %s755 = scalar_lea.vmem %s0, %s754
    %v756 = vld [vmem:[%s755] sm:%s3]
    %s757 = scalar_lea.vmem [#allocation1], 360
    %758 = vst [vmem:[%s757] sm:%s3] %v756
    %s759 = smul.addr 2, 44
    %s760 = scalar_lea.vmem %s0, %s759
    %v761 = vld [vmem:[%s760] sm:%s3]
    %s762 = scalar_lea.vmem [#allocation1], 352
    %763 = vst [vmem:[%s762] sm:%s3] %v761
    %s764 = smul.addr 2, 43
    %s765 = scalar_lea.vmem %s0, %s764
    %v766 = vld [vmem:[%s765] sm:%s3]
    %s767 = scalar_lea.vmem [#allocation1], 344
    %768 = vst [vmem:[%s767] sm:%s3] %v766
    %s769 = smul.addr 2, 42
    %s770 = scalar_lea.vmem %s0, %s769
    %v771 = vld [vmem:[%s770] sm:%s3]
    %s772 = scalar_lea.vmem [#allocation1], 336
    %773 = vst [vmem:[%s772] sm:%s3] %v771
    %s774 = smul.addr 2, 41
    %s775 = scalar_lea.vmem %s0, %s774
    %v776 = vld [vmem:[%s775] sm:%s3]
    %s777 = scalar_lea.vmem [#allocation1], 328
    %778 = vst [vmem:[%s777] sm:%s3] %v776
    %s779 = smul.addr 2, 40
    %s780 = scalar_lea.vmem %s0, %s779
    %v781 = vld [vmem:[%s780] sm:%s3]
    %s782 = scalar_lea.vmem [#allocation1], 320
    %783 = vst [vmem:[%s782] sm:%s3] %v781
    %s784 = smul.addr 2, 39
    %s785 = scalar_lea.vmem %s0, %s784
    %v786 = vld [vmem:[%s785] sm:%s3]
    %s787 = scalar_lea.vmem [#allocation1], 312
    %788 = vst [vmem:[%s787] sm:%s3] %v786
    %s789 = smul.addr 2, 38
    %s790 = scalar_lea.vmem %s0, %s789
    %v791 = vld [vmem:[%s790] sm:%s3]
    %s792 = scalar_lea.vmem [#allocation1], 304
    %793 = vst [vmem:[%s792] sm:%s3] %v791
    %s794 = smul.addr 2, 37
    %s795 = scalar_lea.vmem %s0, %s794
    %v796 = vld [vmem:[%s795] sm:%s3]
    %s797 = scalar_lea.vmem [#allocation1], 296
    %798 = vst [vmem:[%s797] sm:%s3] %v796
    %s799 = smul.addr 2, 36
    %s800 = scalar_lea.vmem %s0, %s799
    %v801 = vld [vmem:[%s800] sm:%s3]
    %s802 = scalar_lea.vmem [#allocation1], 288
    %803 = vst [vmem:[%s802] sm:%s3] %v801
    %s804 = smul.addr 2, 35
    %s805 = scalar_lea.vmem %s0, %s804
    %v806 = vld [vmem:[%s805] sm:%s3]
    %s807 = scalar_lea.vmem [#allocation1], 280
    %808 = vst [vmem:[%s807] sm:%s3] %v806
    %s809 = smul.addr 2, 34
    %s810 = scalar_lea.vmem %s0, %s809
    %v811 = vld [vmem:[%s810] sm:%s3]
    %s812 = scalar_lea.vmem [#allocation1], 272
    %813 = vst [vmem:[%s812] sm:%s3] %v811
    %s814 = smul.addr 2, 33
    %s815 = scalar_lea.vmem %s0, %s814
    %v816 = vld [vmem:[%s815] sm:%s3]
    %s817 = scalar_lea.vmem [#allocation1], 264
    %818 = vst [vmem:[%s817] sm:%s3] %v816
    %s819 = smul.addr 2, 32
    %s820 = scalar_lea.vmem %s0, %s819
    %v821 = vld [vmem:[%s820] sm:%s3]
    %s822 = scalar_lea.vmem [#allocation1], 256
    %823 = vst [vmem:[%s822] sm:%s3] %v821
    %s824 = smul.addr 2, 31
    %s825 = scalar_lea.vmem %s0, %s824
    %v826 = vld [vmem:[%s825] sm:%s3]
    %s827 = scalar_lea.vmem [#allocation1], 248
    %828 = vst [vmem:[%s827] sm:%s3] %v826
    %s829 = smul.addr 2, 30
    %s830 = scalar_lea.vmem %s0, %s829
    %v831 = vld [vmem:[%s830] sm:%s3]
    %s832 = scalar_lea.vmem [#allocation1], 240
    %833 = vst [vmem:[%s832] sm:%s3] %v831
    %s834 = smul.addr 2, 29
    %s835 = scalar_lea.vmem %s0, %s834
    %v836 = vld [vmem:[%s835] sm:%s3]
    %s837 = scalar_lea.vmem [#allocation1], 232
    %838 = vst [vmem:[%s837] sm:%s3] %v836
    %s839 = smul.addr 2, 28
    %s840 = scalar_lea.vmem %s0, %s839
    %v841 = vld [vmem:[%s840] sm:%s3]
    %s842 = scalar_lea.vmem [#allocation1], 224
    %843 = vst [vmem:[%s842] sm:%s3] %v841
    %s844 = smul.addr 2, 27
    %s845 = scalar_lea.vmem %s0, %s844
    %v846 = vld [vmem:[%s845] sm:%s3]
    %s847 = scalar_lea.vmem [#allocation1], 216
    %848 = vst [vmem:[%s847] sm:%s3] %v846
    %s849 = smul.addr 2, 26
    %s850 = scalar_lea.vmem %s0, %s849
    %v851 = vld [vmem:[%s850] sm:%s3]
    %s852 = scalar_lea.vmem [#allocation1], 208
    %853 = vst [vmem:[%s852] sm:%s3] %v851
    %s854 = smul.addr 2, 25
    %s855 = scalar_lea.vmem %s0, %s854
    %v856 = vld [vmem:[%s855] sm:%s3]
    %s857 = scalar_lea.vmem [#allocation1], 200
    %858 = vst [vmem:[%s857] sm:%s3] %v856
    %s859 = smul.addr 2, 24
    %s860 = scalar_lea.vmem %s0, %s859
    %v861 = vld [vmem:[%s860] sm:%s3]
    %s862 = scalar_lea.vmem [#allocation1], 192
    %863 = vst [vmem:[%s862] sm:%s3] %v861
    %s864 = smul.addr 2, 23
    %s865 = scalar_lea.vmem %s0, %s864
    %v866 = vld [vmem:[%s865] sm:%s3]
    %s867 = scalar_lea.vmem [#allocation1], 184
    %868 = vst [vmem:[%s867] sm:%s3] %v866
    %s869 = smul.addr 2, 22
    %s870 = scalar_lea.vmem %s0, %s869
    %v871 = vld [vmem:[%s870] sm:%s3]
    %s872 = scalar_lea.vmem [#allocation1], 176
    %873 = vst [vmem:[%s872] sm:%s3] %v871
    %s874 = smul.addr 2, 21
    %s875 = scalar_lea.vmem %s0, %s874
    %v876 = vld [vmem:[%s875] sm:%s3]
    %s877 = scalar_lea.vmem [#allocation1], 168
    %878 = vst [vmem:[%s877] sm:%s3] %v876
    %s879 = smul.addr 2, 20
    %s880 = scalar_lea.vmem %s0, %s879
    %v881 = vld [vmem:[%s880] sm:%s3]
    %s882 = scalar_lea.vmem [#allocation1], 160
    %883 = vst [vmem:[%s882] sm:%s3] %v881
    %s884 = smul.addr 2, 19
    %s885 = scalar_lea.vmem %s0, %s884
    %v886 = vld [vmem:[%s885] sm:%s3]
    %s887 = scalar_lea.vmem [#allocation1], 152
    %888 = vst [vmem:[%s887] sm:%s3] %v886
    %s889 = smul.addr 2, 18
    %s890 = scalar_lea.vmem %s0, %s889
    %v891 = vld [vmem:[%s890] sm:%s3]
    %s892 = scalar_lea.vmem [#allocation1], 144
    %893 = vst [vmem:[%s892] sm:%s3] %v891
    %s894 = smul.addr 2, 17
    %s895 = scalar_lea.vmem %s0, %s894
    %v896 = vld [vmem:[%s895] sm:%s3]
    %s897 = scalar_lea.vmem [#allocation1], 136
    %898 = vst [vmem:[%s897] sm:%s3] %v896
    %s899 = smul.addr 2, 16
    %s900 = scalar_lea.vmem %s0, %s899
    %v901 = vld [vmem:[%s900] sm:%s3]
    %s902 = scalar_lea.vmem [#allocation1], 128
    %903 = vst [vmem:[%s902] sm:%s3] %v901
    %s904 = smul.addr 2, 15
    %s905 = scalar_lea.vmem %s0, %s904
    %v906 = vld [vmem:[%s905] sm:%s3]
    %s907 = scalar_lea.vmem [#allocation1], 120
    %908 = vst [vmem:[%s907] sm:%s3] %v906
    %s909 = smul.addr 2, 14
    %s910 = scalar_lea.vmem %s0, %s909
    %v911 = vld [vmem:[%s910] sm:%s3]
    %s912 = scalar_lea.vmem [#allocation1], 112
    %913 = vst [vmem:[%s912] sm:%s3] %v911
    %s914 = smul.addr 2, 13
    %s915 = scalar_lea.vmem %s0, %s914
    %v916 = vld [vmem:[%s915] sm:%s3]
    %s917 = scalar_lea.vmem [#allocation1], 104
    %918 = vst [vmem:[%s917] sm:%s3] %v916
    %s919 = smul.addr 2, 12
    %s920 = scalar_lea.vmem %s0, %s919
    %v921 = vld [vmem:[%s920] sm:%s3]
    %s922 = scalar_lea.vmem [#allocation1], 96
    %923 = vst [vmem:[%s922] sm:%s3] %v921
    %s924 = smul.addr 2, 11
    %s925 = scalar_lea.vmem %s0, %s924
    %v926 = vld [vmem:[%s925] sm:%s3]
    %s927 = scalar_lea.vmem [#allocation1], 88
    %928 = vst [vmem:[%s927] sm:%s3] %v926
    %s929 = smul.addr 2, 10
    %s930 = scalar_lea.vmem %s0, %s929
    %v931 = vld [vmem:[%s930] sm:%s3]
    %s932 = scalar_lea.vmem [#allocation1], 80
    %933 = vst [vmem:[%s932] sm:%s3] %v931
    %s934 = smul.addr 2, 9
    %s935 = scalar_lea.vmem %s0, %s934
    %v936 = vld [vmem:[%s935] sm:%s3]
    %s937 = scalar_lea.vmem [#allocation1], 72
    %938 = vst [vmem:[%s937] sm:%s3] %v936
    %s939 = smul.addr 2, 8
    %s940 = scalar_lea.vmem %s0, %s939
    %v941 = vld [vmem:[%s940] sm:%s3]
    %s942 = scalar_lea.vmem [#allocation1], 64
    %943 = vst [vmem:[%s942] sm:%s3] %v941
    %s944 = smul.addr 2, 7
    %s945 = scalar_lea.vmem %s0, %s944
    %v946 = vld [vmem:[%s945] sm:%s3]
    %s947 = scalar_lea.vmem [#allocation1], 56
    %948 = vst [vmem:[%s947] sm:%s3] %v946
    %s949 = smul.addr 2, 6
    %s950 = scalar_lea.vmem %s0, %s949
    %v951 = vld [vmem:[%s950] sm:%s3]
    %s952 = scalar_lea.vmem [#allocation1], 48
    %953 = vst [vmem:[%s952] sm:%s3] %v951
    %s954 = smul.addr 2, 5
    %s955 = scalar_lea.vmem %s0, %s954
    %v956 = vld [vmem:[%s955] sm:%s3]
    %s957 = scalar_lea.vmem [#allocation1], 40
    %958 = vst [vmem:[%s957] sm:%s3] %v956
    %s959 = smul.addr 2, 4
    %s960 = scalar_lea.vmem %s0, %s959
    %v961 = vld [vmem:[%s960] sm:%s3]
    %s962 = scalar_lea.vmem [#allocation1], 32
    %963 = vst [vmem:[%s962] sm:%s3] %v961
    %s964 = smul.addr 2, 3
    %s965 = scalar_lea.vmem %s0, %s964
    %v966 = vld [vmem:[%s965] sm:%s3]
    %s967 = scalar_lea.vmem [#allocation1], 24
    %968 = vst [vmem:[%s967] sm:%s3] %v966
    %s969 = smul.addr 2, 2
    %s970 = scalar_lea.vmem %s0, %s969
    %v971 = vld [vmem:[%s970] sm:%s3]
    %s972 = scalar_lea.vmem [#allocation1], 16
    %973 = vst [vmem:[%s972] sm:%s3] %v971
    %s974 = scalar_lea.vmem %s0, 2
    %v975 = vld [vmem:[%s974] sm:%s3]
    %s976 = scalar_lea.vmem [#allocation1], 8
    %977 = vst [vmem:[%s976] sm:%s3] %v975
    %v978 = vld [vmem:[%s0] sm:%s3]
    %979 = vst [vmem:[#allocation1] sm:%s3] %v978
    %v980 = vld [vmem:[#allocation1] sm:$0x3]
    %981 = vst [vmem:[#allocation0] sm:$0x3] %v980
    %s982 = scalar_lea.vmem [#allocation1], 8
    %v983 = vld [vmem:[%s982] sm:$0x3]
    %s984 = scalar_lea.vmem [#allocation0], 8
    %985 = vst [vmem:[%s984] sm:$0x3] %v983
    %s986 = scalar_lea.vmem [#allocation1], 16
    %v987 = vld [vmem:[%s986] sm:$0x3]
    %s988 = scalar_lea.vmem [#allocation0], 2
    %989 = vst [vmem:[%s988] sm:$0x3] %v987
    %s990 = scalar_lea.vmem [#allocation1], 24
    %v991 = vld [vmem:[%s990] sm:$0x3]
    %s992 = scalar_lea.vmem [#allocation0], 10
    %993 = vst [vmem:[%s992] sm:$0x3] %v991
    %s994 = scalar_lea.vmem [#allocation1], 32
    %v995 = vld [vmem:[%s994] sm:$0x3]
    %s996 = scalar_lea.vmem [#allocation0], 16
    %997 = vst [vmem:[%s996] sm:$0x3] %v995
    %s998 = scalar_lea.vmem [#allocation1], 40
    %v999 = vld [vmem:[%s998] sm:$0x3]
    %s1000 = scalar_lea.vmem [#allocation0], 24
    %1001 = vst [vmem:[%s1000] sm:$0x3] %v999
    %s1002 = scalar_lea.vmem [#allocation1], 48
    %v1003 = vld [vmem:[%s1002] sm:$0x3]
    %s1004 = scalar_lea.vmem [#allocation0], 18
    %1005 = vst [vmem:[%s1004] sm:$0x3] %v1003
    %s1006 = scalar_lea.vmem [#allocation1], 56
    %v1007 = vld [vmem:[%s1006] sm:$0x3]
    %s1008 = scalar_lea.vmem [#allocation0], 26
    %1009 = vst [vmem:[%s1008] sm:$0x3] %v1007
    %s1010 = scalar_lea.vmem [#allocation1], 64
    %v1011 = vld [vmem:[%s1010] sm:$0x3]
    %s1012 = scalar_lea.vmem [#allocation0], 32
    %1013 = vst [vmem:[%s1012] sm:$0x3] %v1011
    %s1014 = scalar_lea.vmem [#allocation1], 72
    %v1015 = vld [vmem:[%s1014] sm:$0x3]
    %s1016 = scalar_lea.vmem [#allocation0], 40
    %1017 = vst [vmem:[%s1016] sm:$0x3] %v1015
    %s1018 = scalar_lea.vmem [#allocation1], 80
    %v1019 = vld [vmem:[%s1018] sm:$0x3]
    %s1020 = scalar_lea.vmem [#allocation0], 34
    %1021 = vst [vmem:[%s1020] sm:$0x3] %v1019
    %s1022 = scalar_lea.vmem [#allocation1], 88
    %v1023 = vld [vmem:[%s1022] sm:$0x3]
    %s1024 = scalar_lea.vmem [#allocation0], 42
    %1025 = vst [vmem:[%s1024] sm:$0x3] %v1023
    %s1026 = scalar_lea.vmem [#allocation1], 96
    %v1027 = vld [vmem:[%s1026] sm:$0x3]
    %s1028 = scalar_lea.vmem [#allocation0], 48
    %1029 = vst [vmem:[%s1028] sm:$0x3] %v1027
    %s1030 = scalar_lea.vmem [#allocation1], 104
    %v1031 = vld [vmem:[%s1030] sm:$0x3]
    %s1032 = scalar_lea.vmem [#allocation0], 56
    %1033 = vst [vmem:[%s1032] sm:$0x3] %v1031
    %s1034 = scalar_lea.vmem [#allocation1], 112
    %v1035 = vld [vmem:[%s1034] sm:$0x3]
    %s1036 = scalar_lea.vmem [#allocation0], 50
    %1037 = vst [vmem:[%s1036] sm:$0x3] %v1035
    %s1038 = scalar_lea.vmem [#allocation1], 120
    %v1039 = vld [vmem:[%s1038] sm:$0x3]
    %s1040 = scalar_lea.vmem [#allocation0], 58
    %1041 = vst [vmem:[%s1040] sm:$0x3] %v1039
    %s1042 = scalar_lea.vmem [#allocation1], 128
    %v1043 = vld [vmem:[%s1042] sm:$0x3]
    %s1044 = scalar_lea.vmem [#allocation0], 64
    %1045 = vst [vmem:[%s1044] sm:$0x3] %v1043
    %s1046 = scalar_lea.vmem [#allocation1], 136
    %v1047 = vld [vmem:[%s1046] sm:$0x3]
    %s1048 = scalar_lea.vmem [#allocation0], 72
    %1049 = vst [vmem:[%s1048] sm:$0x3] %v1047
    %s1050 = scalar_lea.vmem [#allocation1], 144
    %v1051 = vld [vmem:[%s1050] sm:$0x3]
    %s1052 = scalar_lea.vmem [#allocation0], 66
    %1053 = vst [vmem:[%s1052] sm:$0x3] %v1051
    %s1054 = scalar_lea.vmem [#allocation1], 152
    %v1055 = vld [vmem:[%s1054] sm:$0x3]
    %s1056 = scalar_lea.vmem [#allocation0], 74
    %1057 = vst [vmem:[%s1056] sm:$0x3] %v1055
    %s1058 = scalar_lea.vmem [#allocation1], 160
    %v1059 = vld [vmem:[%s1058] sm:$0x3]
    %s1060 = scalar_lea.vmem [#allocation0], 80
    %1061 = vst [vmem:[%s1060] sm:$0x3] %v1059
    %s1062 = scalar_lea.vmem [#allocation1], 168
    %v1063 = vld [vmem:[%s1062] sm:$0x3]
    %s1064 = scalar_lea.vmem [#allocation0], 88
    %1065 = vst [vmem:[%s1064] sm:$0x3] %v1063
    %s1066 = scalar_lea.vmem [#allocation1], 176
    %v1067 = vld [vmem:[%s1066] sm:$0x3]
    %s1068 = scalar_lea.vmem [#allocation0], 82
    %1069 = vst [vmem:[%s1068] sm:$0x3] %v1067
    %s1070 = scalar_lea.vmem [#allocation1], 184
    %v1071 = vld [vmem:[%s1070] sm:$0x3]
    %s1072 = scalar_lea.vmem [#allocation0], 90
    %1073 = vst [vmem:[%s1072] sm:$0x3] %v1071
    %s1074 = scalar_lea.vmem [#allocation1], 192
    %v1075 = vld [vmem:[%s1074] sm:$0x3]
    %s1076 = scalar_lea.vmem [#allocation0], 96
    %1077 = vst [vmem:[%s1076] sm:$0x3] %v1075
    %s1078 = scalar_lea.vmem [#allocation1], 200
    %v1079 = vld [vmem:[%s1078] sm:$0x3]
    %s1080 = scalar_lea.vmem [#allocation0], 104
    %1081 = vst [vmem:[%s1080] sm:$0x3] %v1079
    %s1082 = scalar_lea.vmem [#allocation1], 208
    %v1083 = vld [vmem:[%s1082] sm:$0x3]
    %s1084 = scalar_lea.vmem [#allocation0], 98
    %1085 = vst [vmem:[%s1084] sm:$0x3] %v1083
    %s1086 = scalar_lea.vmem [#allocation1], 216
    %v1087 = vld [vmem:[%s1086] sm:$0x3]
    %s1088 = scalar_lea.vmem [#allocation0], 106
    %1089 = vst [vmem:[%s1088] sm:$0x3] %v1087
    %s1090 = scalar_lea.vmem [#allocation1], 224
    %v1091 = vld [vmem:[%s1090] sm:$0x3]
    %s1092 = scalar_lea.vmem [#allocation0], 112
    %1093 = vst [vmem:[%s1092] sm:$0x3] %v1091
    %s1094 = scalar_lea.vmem [#allocation1], 232
    %v1095 = vld [vmem:[%s1094] sm:$0x3]
    %s1096 = scalar_lea.vmem [#allocation0], 120
    %1097 = vst [vmem:[%s1096] sm:$0x3] %v1095
    %s1098 = scalar_lea.vmem [#allocation1], 240
    %v1099 = vld [vmem:[%s1098] sm:$0x3]
    %s1100 = scalar_lea.vmem [#allocation0], 114
    %1101 = vst [vmem:[%s1100] sm:$0x3] %v1099
    %s1102 = scalar_lea.vmem [#allocation1], 248
    %v1103 = vld [vmem:[%s1102] sm:$0x3]
    %s1104 = scalar_lea.vmem [#allocation0], 122
    %1105 = vst [vmem:[%s1104] sm:$0x3] %v1103
    %s1106 = scalar_lea.vmem [#allocation1], 256
    %v1107 = vld [vmem:[%s1106] sm:$0x3]
    %s1108 = scalar_lea.vmem [#allocation0], 128
    %1109 = vst [vmem:[%s1108] sm:$0x3] %v1107
    %s1110 = scalar_lea.vmem [#allocation1], 264
    %v1111 = vld [vmem:[%s1110] sm:$0x3]
    %s1112 = scalar_lea.vmem [#allocation0], 136
    %1113 = vst [vmem:[%s1112] sm:$0x3] %v1111
    %s1114 = scalar_lea.vmem [#allocation1], 272
    %v1115 = vld [vmem:[%s1114] sm:$0x3]
    %s1116 = scalar_lea.vmem [#allocation0], 130
    %1117 = vst [vmem:[%s1116] sm:$0x3] %v1115
    %s1118 = scalar_lea.vmem [#allocation1], 280
    %v1119 = vld [vmem:[%s1118] sm:$0x3]
    %s1120 = scalar_lea.vmem [#allocation0], 138
    %1121 = vst [vmem:[%s1120] sm:$0x3] %v1119
    %s1122 = scalar_lea.vmem [#allocation1], 288
    %v1123 = vld [vmem:[%s1122] sm:$0x3]
    %s1124 = scalar_lea.vmem [#allocation0], 144
    %1125 = vst [vmem:[%s1124] sm:$0x3] %v1123
    %s1126 = scalar_lea.vmem [#allocation1], 296
    %v1127 = vld [vmem:[%s1126] sm:$0x3]
    %s1128 = scalar_lea.vmem [#allocation0], 152
    %1129 = vst [vmem:[%s1128] sm:$0x3] %v1127
    %s1130 = scalar_lea.vmem [#allocation1], 304
    %v1131 = vld [vmem:[%s1130] sm:$0x3]
    %s1132 = scalar_lea.vmem [#allocation0], 146
    %1133 = vst [vmem:[%s1132] sm:$0x3] %v1131
    %s1134 = scalar_lea.vmem [#allocation1], 312
    %v1135 = vld [vmem:[%s1134] sm:$0x3]
    %s1136 = scalar_lea.vmem [#allocation0], 154
    %1137 = vst [vmem:[%s1136] sm:$0x3] %v1135
    %s1138 = scalar_lea.vmem [#allocation1], 320
    %v1139 = vld [vmem:[%s1138] sm:$0x3]
    %s1140 = scalar_lea.vmem [#allocation0], 160
    %1141 = vst [vmem:[%s1140] sm:$0x3] %v1139
    %s1142 = scalar_lea.vmem [#allocation1], 328
    %v1143 = vld [vmem:[%s1142] sm:$0x3]
    %s1144 = scalar_lea.vmem [#allocation0], 168
    %1145 = vst [vmem:[%s1144] sm:$0x3] %v1143
    %s1146 = scalar_lea.vmem [#allocation1], 336
    %v1147 = vld [vmem:[%s1146] sm:$0x3]
    %s1148 = scalar_lea.vmem [#allocation0], 162
    %1149 = vst [vmem:[%s1148] sm:$0x3] %v1147
    %s1150 = scalar_lea.vmem [#allocation1], 344
    %v1151 = vld [vmem:[%s1150] sm:$0x3]
    %s1152 = scalar_lea.vmem [#allocation0], 170
    %1153 = vst [vmem:[%s1152] sm:$0x3] %v1151
    %s1154 = scalar_lea.vmem [#allocation1], 352
    %v1155 = vld [vmem:[%s1154] sm:$0x3]
    %s1156 = scalar_lea.vmem [#allocation0], 176
    %1157 = vst [vmem:[%s1156] sm:$0x3] %v1155
    %s1158 = scalar_lea.vmem [#allocation1], 360
    %v1159 = vld [vmem:[%s1158] sm:$0x3]
    %s1160 = scalar_lea.vmem [#allocation0], 184
    %1161 = vst [vmem:[%s1160] sm:$0x3] %v1159
    %s1162 = scalar_lea.vmem [#allocation1], 368
    %v1163 = vld [vmem:[%s1162] sm:$0x3]
    %s1164 = scalar_lea.vmem [#allocation0], 178
    %1165 = vst [vmem:[%s1164] sm:$0x3] %v1163
    %s1166 = scalar_lea.vmem [#allocation1], 376
    %v1167 = vld [vmem:[%s1166] sm:$0x3]
    %s1168 = scalar_lea.vmem [#allocation0], 186
    %1169 = vst [vmem:[%s1168] sm:$0x3] %v1167
    %s1170 = scalar_lea.vmem [#allocation1], 384
    %v1171 = vld [vmem:[%s1170] sm:$0x3]
    %s1172 = scalar_lea.vmem [#allocation0], 192
    %1173 = vst [vmem:[%s1172] sm:$0x3] %v1171
    %s1174 = scalar_lea.vmem [#allocation1], 392
    %v1175 = vld [vmem:[%s1174] sm:$0x3]
    %s1176 = scalar_lea.vmem [#allocation0], 200
    %1177 = vst [vmem:[%s1176] sm:$0x3] %v1175
    %s1178 = scalar_lea.vmem [#allocation1], 400
    %v1179 = vld [vmem:[%s1178] sm:$0x3]
    %s1180 = scalar_lea.vmem [#allocation0], 194
    %1181 = vst [vmem:[%s1180] sm:$0x3] %v1179
    %s1182 = scalar_lea.vmem [#allocation1], 408
    %v1183 = vld [vmem:[%s1182] sm:$0x3]
    %s1184 = scalar_lea.vmem [#allocation0], 202
    %1185 = vst [vmem:[%s1184] sm:$0x3] %v1183
    %s1186 = scalar_lea.vmem [#allocation1], 416
    %v1187 = vld [vmem:[%s1186] sm:$0x3]
    %s1188 = scalar_lea.vmem [#allocation0], 208
    %1189 = vst [vmem:[%s1188] sm:$0x3] %v1187
    %s1190 = scalar_lea.vmem [#allocation1], 424
    %v1191 = vld [vmem:[%s1190] sm:$0x3]
    %s1192 = scalar_lea.vmem [#allocation0], 216
    %1193 = vst [vmem:[%s1192] sm:$0x3] %v1191
    %s1194 = scalar_lea.vmem [#allocation1], 432
    %v1195 = vld [vmem:[%s1194] sm:$0x3]
    %s1196 = scalar_lea.vmem [#allocation0], 210
    %1197 = vst [vmem:[%s1196] sm:$0x3] %v1195
    %s1198 = scalar_lea.vmem [#allocation1], 440
    %v1199 = vld [vmem:[%s1198] sm:$0x3]
    %s1200 = scalar_lea.vmem [#allocation0], 218
    %1201 = vst [vmem:[%s1200] sm:$0x3] %v1199
    %s1202 = scalar_lea.vmem [#allocation1], 448
    %v1203 = vld [vmem:[%s1202] sm:$0x3]
    %s1204 = scalar_lea.vmem [#allocation0], 224
    %1205 = vst [vmem:[%s1204] sm:$0x3] %v1203
    %s1206 = scalar_lea.vmem [#allocation1], 456
    %v1207 = vld [vmem:[%s1206] sm:$0x3]
    %s1208 = scalar_lea.vmem [#allocation0], 232
    %1209 = vst [vmem:[%s1208] sm:$0x3] %v1207
    %s1210 = scalar_lea.vmem [#allocation1], 464
    %v1211 = vld [vmem:[%s1210] sm:$0x3]
    %s1212 = scalar_lea.vmem [#allocation0], 226
    %1213 = vst [vmem:[%s1212] sm:$0x3] %v1211
    %s1214 = scalar_lea.vmem [#allocation1], 472
    %v1215 = vld [vmem:[%s1214] sm:$0x3]
    %s1216 = scalar_lea.vmem [#allocation0], 234
    %1217 = vst [vmem:[%s1216] sm:$0x3] %v1215
    %s1218 = scalar_lea.vmem [#allocation1], 480
    %v1219 = vld [vmem:[%s1218] sm:$0x3]
    %s1220 = scalar_lea.vmem [#allocation0], 240
    %1221 = vst [vmem:[%s1220] sm:$0x3] %v1219
    %s1222 = scalar_lea.vmem [#allocation1], 488
    %v1223 = vld [vmem:[%s1222] sm:$0x3]
    %s1224 = scalar_lea.vmem [#allocation0], 248
    %1225 = vst [vmem:[%s1224] sm:$0x3] %v1223
    %s1226 = scalar_lea.vmem [#allocation1], 496
    %v1227 = vld [vmem:[%s1226] sm:$0x3]
    %s1228 = scalar_lea.vmem [#allocation0], 242
    %1229 = vst [vmem:[%s1228] sm:$0x3] %v1227
    %s1230 = scalar_lea.vmem [#allocation1], 504
    %v1231 = vld [vmem:[%s1230] sm:$0x3]
    %s1232 = scalar_lea.vmem [#allocation0], 250
    %1233 = vst [vmem:[%s1232] sm:$0x3] %v1231
    %s1234 = scalar_lea.vmem [#allocation1], 512
    %v1235 = vld [vmem:[%s1234] sm:$0x3]
    %s1236 = scalar_lea.vmem [#allocation0], 256
    %1237 = vst [vmem:[%s1236] sm:$0x3] %v1235
    %s1238 = scalar_lea.vmem [#allocation1], 520
    %v1239 = vld [vmem:[%s1238] sm:$0x3]
    %s1240 = scalar_lea.vmem [#allocation0], 264
    %1241 = vst [vmem:[%s1240] sm:$0x3] %v1239
    %s1242 = scalar_lea.vmem [#allocation1], 528
    %v1243 = vld [vmem:[%s1242] sm:$0x3]
    %s1244 = scalar_lea.vmem [#allocation0], 258
    %1245 = vst [vmem:[%s1244] sm:$0x3] %v1243
    %s1246 = scalar_lea.vmem [#allocation1], 536
    %v1247 = vld [vmem:[%s1246] sm:$0x3]
    %s1248 = scalar_lea.vmem [#allocation0], 266
    %1249 = vst [vmem:[%s1248] sm:$0x3] %v1247
    %s1250 = scalar_lea.vmem [#allocation1], 544
    %v1251 = vld [vmem:[%s1250] sm:$0x3]
    %s1252 = scalar_lea.vmem [#allocation0], 272
    %1253 = vst [vmem:[%s1252] sm:$0x3] %v1251
    %s1254 = scalar_lea.vmem [#allocation1], 552
    %v1255 = vld [vmem:[%s1254] sm:$0x3]
    %s1256 = scalar_lea.vmem [#allocation0], 280
    %1257 = vst [vmem:[%s1256] sm:$0x3] %v1255
    %s1258 = scalar_lea.vmem [#allocation1], 560
    %v1259 = vld [vmem:[%s1258] sm:$0x3]
    %s1260 = scalar_lea.vmem [#allocation0], 274
    %1261 = vst [vmem:[%s1260] sm:$0x3] %v1259
    %s1262 = scalar_lea.vmem [#allocation1], 568
    %v1263 = vld [vmem:[%s1262] sm:$0x3]
    %s1264 = scalar_lea.vmem [#allocation0], 282
    %1265 = vst [vmem:[%s1264] sm:$0x3] %v1263
    %s1266 = scalar_lea.vmem [#allocation1], 576
    %v1267 = vld [vmem:[%s1266] sm:$0x3]
    %s1268 = scalar_lea.vmem [#allocation0], 288
    %1269 = vst [vmem:[%s1268] sm:$0x3] %v1267
    %s1270 = scalar_lea.vmem [#allocation1], 584
    %v1271 = vld [vmem:[%s1270] sm:$0x3]
    %s1272 = scalar_lea.vmem [#allocation0], 296
    %1273 = vst [vmem:[%s1272] sm:$0x3] %v1271
    %s1274 = scalar_lea.vmem [#allocation1], 592
    %v1275 = vld [vmem:[%s1274] sm:$0x3]
    %s1276 = scalar_lea.vmem [#allocation0], 290
    %1277 = vst [vmem:[%s1276] sm:$0x3] %v1275
    %s1278 = scalar_lea.vmem [#allocation1], 600
    %v1279 = vld [vmem:[%s1278] sm:$0x3]
    %s1280 = scalar_lea.vmem [#allocation0], 298
    %1281 = vst [vmem:[%s1280] sm:$0x3] %v1279
    %s1282 = scalar_lea.vmem [#allocation1], 608
    %v1283 = vld [vmem:[%s1282] sm:$0x3]
    %s1284 = scalar_lea.vmem [#allocation0], 304
    %1285 = vst [vmem:[%s1284] sm:$0x3] %v1283
    %s1286 = scalar_lea.vmem [#allocation1], 616
    %v1287 = vld [vmem:[%s1286] sm:$0x3]
    %s1288 = scalar_lea.vmem [#allocation0], 312
    %1289 = vst [vmem:[%s1288] sm:$0x3] %v1287
    %s1290 = scalar_lea.vmem [#allocation1], 624
    %v1291 = vld [vmem:[%s1290] sm:$0x3]
    %s1292 = scalar_lea.vmem [#allocation0], 306
    %1293 = vst [vmem:[%s1292] sm:$0x3] %v1291
    %s1294 = scalar_lea.vmem [#allocation1], 632
    %v1295 = vld [vmem:[%s1294] sm:$0x3]
    %s1296 = scalar_lea.vmem [#allocation0], 314
    %1297 = vst [vmem:[%s1296] sm:$0x3] %v1295
    %s1298 = scalar_lea.vmem [#allocation1], 640
    %v1299 = vld [vmem:[%s1298] sm:$0x3]
    %s1300 = scalar_lea.vmem [#allocation0], 320
    %1301 = vst [vmem:[%s1300] sm:$0x3] %v1299
    %s1302 = scalar_lea.vmem [#allocation1], 648
    %v1303 = vld [vmem:[%s1302] sm:$0x3]
    %s1304 = scalar_lea.vmem [#allocation0], 328
    %1305 = vst [vmem:[%s1304] sm:$0x3] %v1303
    %s1306 = scalar_lea.vmem [#allocation1], 656
    %v1307 = vld [vmem:[%s1306] sm:$0x3]
    %s1308 = scalar_lea.vmem [#allocation0], 322
    %1309 = vst [vmem:[%s1308] sm:$0x3] %v1307
    %s1310 = scalar_lea.vmem [#allocation1], 664
    %v1311 = vld [vmem:[%s1310] sm:$0x3]
    %s1312 = scalar_lea.vmem [#allocation0], 330
    %1313 = vst [vmem:[%s1312] sm:$0x3] %v1311
    %s1314 = scalar_lea.vmem [#allocation1], 672
    %v1315 = vld [vmem:[%s1314] sm:$0x3]
    %s1316 = scalar_lea.vmem [#allocation0], 336
    %1317 = vst [vmem:[%s1316] sm:$0x3] %v1315
    %s1318 = scalar_lea.vmem [#allocation1], 680
    %v1319 = vld [vmem:[%s1318] sm:$0x3]
    %s1320 = scalar_lea.vmem [#allocation0], 344
    %1321 = vst [vmem:[%s1320] sm:$0x3] %v1319
    %s1322 = scalar_lea.vmem [#allocation1], 688
    %v1323 = vld [vmem:[%s1322] sm:$0x3]
    %s1324 = scalar_lea.vmem [#allocation0], 338
    %1325 = vst [vmem:[%s1324] sm:$0x3] %v1323
    %s1326 = scalar_lea.vmem [#allocation1], 696
    %v1327 = vld [vmem:[%s1326] sm:$0x3]
    %s1328 = scalar_lea.vmem [#allocation0], 346
    %1329 = vst [vmem:[%s1328] sm:$0x3] %v1327
    %s1330 = scalar_lea.vmem [#allocation1], 704
    %v1331 = vld [vmem:[%s1330] sm:$0x3]
    %s1332 = scalar_lea.vmem [#allocation0], 352
    %1333 = vst [vmem:[%s1332] sm:$0x3] %v1331
    %s1334 = scalar_lea.vmem [#allocation1], 712
    %v1335 = vld [vmem:[%s1334] sm:$0x3]
    %s1336 = scalar_lea.vmem [#allocation0], 360
    %1337 = vst [vmem:[%s1336] sm:$0x3] %v1335
    %s1338 = scalar_lea.vmem [#allocation1], 720
    %v1339 = vld [vmem:[%s1338] sm:$0x3]
    %s1340 = scalar_lea.vmem [#allocation0], 354
    %1341 = vst [vmem:[%s1340] sm:$0x3] %v1339
    %s1342 = scalar_lea.vmem [#allocation1], 728
    %v1343 = vld [vmem:[%s1342] sm:$0x3]
    %s1344 = scalar_lea.vmem [#allocation0], 362
    %1345 = vst [vmem:[%s1344] sm:$0x3] %v1343
    %s1346 = scalar_lea.vmem [#allocation1], 736
    %v1347 = vld [vmem:[%s1346] sm:$0x3]
    %s1348 = scalar_lea.vmem [#allocation0], 368
    %1349 = vst [vmem:[%s1348] sm:$0x3] %v1347
    %s1350 = scalar_lea.vmem [#allocation1], 744
    %v1351 = vld [vmem:[%s1350] sm:$0x3]
    %s1352 = scalar_lea.vmem [#allocation0], 376
    %1353 = vst [vmem:[%s1352] sm:$0x3] %v1351
    %s1354 = scalar_lea.vmem [#allocation1], 752
    %v1355 = vld [vmem:[%s1354] sm:$0x3]
    %s1356 = scalar_lea.vmem [#allocation0], 370
    %1357 = vst [vmem:[%s1356] sm:$0x3] %v1355
    %s1358 = scalar_lea.vmem [#allocation1], 760
    %v1359 = vld [vmem:[%s1358] sm:$0x3]
    %s1360 = scalar_lea.vmem [#allocation0], 378
    %1361 = vst [vmem:[%s1360] sm:$0x3] %v1359
    %s1362 = scalar_lea.vmem [#allocation1], 768
    %v1363 = vld [vmem:[%s1362] sm:$0x3]
    %s1364 = scalar_lea.vmem [#allocation0], 384
    %1365 = vst [vmem:[%s1364] sm:$0x3] %v1363
    %s1366 = scalar_lea.vmem [#allocation1], 776
    %v1367 = vld [vmem:[%s1366] sm:$0x3]
    %s1368 = scalar_lea.vmem [#allocation0], 392
    %1369 = vst [vmem:[%s1368] sm:$0x3] %v1367
    %s1370 = scalar_lea.vmem [#allocation1], 784
    %v1371 = vld [vmem:[%s1370] sm:$0x3]
    %s1372 = scalar_lea.vmem [#allocation0], 386
    %1373 = vst [vmem:[%s1372] sm:$0x3] %v1371
    %s1374 = scalar_lea.vmem [#allocation1], 792
    %v1375 = vld [vmem:[%s1374] sm:$0x3]
    %s1376 = scalar_lea.vmem [#allocation0], 394
    %1377 = vst [vmem:[%s1376] sm:$0x3] %v1375
    %s1378 = scalar_lea.vmem [#allocation1], 800
    %v1379 = vld [vmem:[%s1378] sm:$0x3]
    %s1380 = scalar_lea.vmem [#allocation0], 400
    %1381 = vst [vmem:[%s1380] sm:$0x3] %v1379
    %s1382 = scalar_lea.vmem [#allocation1], 808
    %v1383 = vld [vmem:[%s1382] sm:$0x3]
    %s1384 = scalar_lea.vmem [#allocation0], 408
    %1385 = vst [vmem:[%s1384] sm:$0x3] %v1383
    %s1386 = scalar_lea.vmem [#allocation1], 816
    %v1387 = vld [vmem:[%s1386] sm:$0x3]
    %s1388 = scalar_lea.vmem [#allocation0], 402
    %1389 = vst [vmem:[%s1388] sm:$0x3] %v1387
    %s1390 = scalar_lea.vmem [#allocation1], 824
    %v1391 = vld [vmem:[%s1390] sm:$0x3]
    %s1392 = scalar_lea.vmem [#allocation0], 410
    %1393 = vst [vmem:[%s1392] sm:$0x3] %v1391
    %s1394 = scalar_lea.vmem [#allocation1], 832
    %v1395 = vld [vmem:[%s1394] sm:$0x3]
    %s1396 = scalar_lea.vmem [#allocation0], 416
    %1397 = vst [vmem:[%s1396] sm:$0x3] %v1395
    %s1398 = scalar_lea.vmem [#allocation1], 840
    %v1399 = vld [vmem:[%s1398] sm:$0x3]
    %s1400 = scalar_lea.vmem [#allocation0], 424
    %1401 = vst [vmem:[%s1400] sm:$0x3] %v1399
    %s1402 = scalar_lea.vmem [#allocation1], 848
    %v1403 = vld [vmem:[%s1402] sm:$0x3]
    %s1404 = scalar_lea.vmem [#allocation0], 418
    %1405 = vst [vmem:[%s1404] sm:$0x3] %v1403
    %s1406 = scalar_lea.vmem [#allocation1], 856
    %v1407 = vld [vmem:[%s1406] sm:$0x3]
    %s1408 = scalar_lea.vmem [#allocation0], 426
    %1409 = vst [vmem:[%s1408] sm:$0x3] %v1407
    %s1410 = scalar_lea.vmem [#allocation1], 864
    %v1411 = vld [vmem:[%s1410] sm:$0x3]
    %s1412 = scalar_lea.vmem [#allocation0], 432
    %1413 = vst [vmem:[%s1412] sm:$0x3] %v1411
    %s1414 = scalar_lea.vmem [#allocation1], 872
    %v1415 = vld [vmem:[%s1414] sm:$0x3]
    %s1416 = scalar_lea.vmem [#allocation0], 440
    %1417 = vst [vmem:[%s1416] sm:$0x3] %v1415
    %s1418 = scalar_lea.vmem [#allocation1], 880
    %v1419 = vld [vmem:[%s1418] sm:$0x3]
    %s1420 = scalar_lea.vmem [#allocation0], 434
    %1421 = vst [vmem:[%s1420] sm:$0x3] %v1419
    %s1422 = scalar_lea.vmem [#allocation1], 888
    %v1423 = vld [vmem:[%s1422] sm:$0x3]
    %s1424 = scalar_lea.vmem [#allocation0], 442
    %1425 = vst [vmem:[%s1424] sm:$0x3] %v1423
    %s1426 = scalar_lea.vmem [#allocation1], 896
    %v1427 = vld [vmem:[%s1426] sm:$0x3]
    %s1428 = scalar_lea.vmem [#allocation0], 448
    %1429 = vst [vmem:[%s1428] sm:$0x3] %v1427
    %s1430 = scalar_lea.vmem [#allocation1], 904
    %v1431 = vld [vmem:[%s1430] sm:$0x3]
    %s1432 = scalar_lea.vmem [#allocation0], 456
    %1433 = vst [vmem:[%s1432] sm:$0x3] %v1431
    %s1434 = scalar_lea.vmem [#allocation1], 912
    %v1435 = vld [vmem:[%s1434] sm:$0x3]
    %s1436 = scalar_lea.vmem [#allocation0], 450
    %1437 = vst [vmem:[%s1436] sm:$0x3] %v1435
    %s1438 = scalar_lea.vmem [#allocation1], 920
    %v1439 = vld [vmem:[%s1438] sm:$0x3]
    %s1440 = scalar_lea.vmem [#allocation0], 458
    %1441 = vst [vmem:[%s1440] sm:$0x3] %v1439
    %s1442 = scalar_lea.vmem [#allocation1], 928
    %v1443 = vld [vmem:[%s1442] sm:$0x3]
    %s1444 = scalar_lea.vmem [#allocation0], 464
    %1445 = vst [vmem:[%s1444] sm:$0x3] %v1443
    %s1446 = scalar_lea.vmem [#allocation1], 936
    %v1447 = vld [vmem:[%s1446] sm:$0x3]
    %s1448 = scalar_lea.vmem [#allocation0], 472
    %1449 = vst [vmem:[%s1448] sm:$0x3] %v1447
    %s1450 = scalar_lea.vmem [#allocation1], 944
    %v1451 = vld [vmem:[%s1450] sm:$0x3]
    %s1452 = scalar_lea.vmem [#allocation0], 466
    %1453 = vst [vmem:[%s1452] sm:$0x3] %v1451
    %s1454 = scalar_lea.vmem [#allocation1], 952
    %v1455 = vld [vmem:[%s1454] sm:$0x3]
    %s1456 = scalar_lea.vmem [#allocation0], 474
    %1457 = vst [vmem:[%s1456] sm:$0x3] %v1455
    %s1458 = scalar_lea.vmem [#allocation1], 960
    %v1459 = vld [vmem:[%s1458] sm:$0x3]
    %s1460 = scalar_lea.vmem [#allocation0], 480
    %1461 = vst [vmem:[%s1460] sm:$0x3] %v1459
    %s1462 = scalar_lea.vmem [#allocation1], 968
    %v1463 = vld [vmem:[%s1462] sm:$0x3]
    %s1464 = scalar_lea.vmem [#allocation0], 488
    %1465 = vst [vmem:[%s1464] sm:$0x3] %v1463
    %s1466 = scalar_lea.vmem [#allocation1], 976
    %v1467 = vld [vmem:[%s1466] sm:$0x3]
    %s1468 = scalar_lea.vmem [#allocation0], 482
    %1469 = vst [vmem:[%s1468] sm:$0x3] %v1467
    %s1470 = scalar_lea.vmem [#allocation1], 984
    %v1471 = vld [vmem:[%s1470] sm:$0x3]
    %s1472 = scalar_lea.vmem [#allocation0], 490
    %1473 = vst [vmem:[%s1472] sm:$0x3] %v1471
    %s1474 = scalar_lea.vmem [#allocation1], 992
    %v1475 = vld [vmem:[%s1474] sm:$0x3]
    %s1476 = scalar_lea.vmem [#allocation0], 496
    %1477 = vst [vmem:[%s1476] sm:$0x3] %v1475
    %s1478 = scalar_lea.vmem [#allocation1], 1000
    %v1479 = vld [vmem:[%s1478] sm:$0x3]
    %s1480 = scalar_lea.vmem [#allocation0], 504
    %1481 = vst [vmem:[%s1480] sm:$0x3] %v1479
    %s1482 = scalar_lea.vmem [#allocation1], 1008
    %v1483 = vld [vmem:[%s1482] sm:$0x3]
    %s1484 = scalar_lea.vmem [#allocation0], 498
    %1485 = vst [vmem:[%s1484] sm:$0x3] %v1483
    %s1486 = scalar_lea.vmem [#allocation1], 1016
    %v1487 = vld [vmem:[%s1486] sm:$0x3]
    %s1488 = scalar_lea.vmem [#allocation0], 506
    %1489 = vst [vmem:[%s1488] sm:$0x3] %v1487
    %s1490 = scalar_lea.vmem [#allocation1], 1024
    %v1491 = vld [vmem:[%s1490] sm:$0x3]
    %s1492 = scalar_lea.vmem [#allocation0], 512
    %1493 = vst [vmem:[%s1492] sm:$0x3] %v1491
    %s1494 = scalar_lea.vmem [#allocation1], 1032
    %v1495 = vld [vmem:[%s1494] sm:$0x3]
    %s1496 = scalar_lea.vmem [#allocation0], 520
    %1497 = vst [vmem:[%s1496] sm:$0x3] %v1495
    %s1498 = scalar_lea.vmem [#allocation1], 1040
    %v1499 = vld [vmem:[%s1498] sm:$0x3]
    %s1500 = scalar_lea.vmem [#allocation0], 514
    %1501 = vst [vmem:[%s1500] sm:$0x3] %v1499
    %s1502 = scalar_lea.vmem [#allocation1], 1048
    %v1503 = vld [vmem:[%s1502] sm:$0x3]
    %s1504 = scalar_lea.vmem [#allocation0], 522
    %1505 = vst [vmem:[%s1504] sm:$0x3] %v1503
    %s1506 = scalar_lea.vmem [#allocation1], 1056
    %v1507 = vld [vmem:[%s1506] sm:$0x3]
    %s1508 = scalar_lea.vmem [#allocation0], 528
    %1509 = vst [vmem:[%s1508] sm:$0x3] %v1507
    %s1510 = scalar_lea.vmem [#allocation1], 1064
    %v1511 = vld [vmem:[%s1510] sm:$0x3]
    %s1512 = scalar_lea.vmem [#allocation0], 536
    %1513 = vst [vmem:[%s1512] sm:$0x3] %v1511
    %s1514 = scalar_lea.vmem [#allocation1], 1072
    %v1515 = vld [vmem:[%s1514] sm:$0x3]
    %s1516 = scalar_lea.vmem [#allocation0], 530
    %1517 = vst [vmem:[%s1516] sm:$0x3] %v1515
    %s1518 = scalar_lea.vmem [#allocation1], 1080
    %v1519 = vld [vmem:[%s1518] sm:$0x3]
    %s1520 = scalar_lea.vmem [#allocation0], 538
    %1521 = vst [vmem:[%s1520] sm:$0x3] %v1519
    %s1522 = scalar_lea.vmem [#allocation1], 1088
    %v1523 = vld [vmem:[%s1522] sm:$0x3]
    %s1524 = scalar_lea.vmem [#allocation0], 544
    %1525 = vst [vmem:[%s1524] sm:$0x3] %v1523
    %s1526 = scalar_lea.vmem [#allocation1], 1096
    %v1527 = vld [vmem:[%s1526] sm:$0x3]
    %s1528 = scalar_lea.vmem [#allocation0], 552
    %1529 = vst [vmem:[%s1528] sm:$0x3] %v1527
    %s1530 = scalar_lea.vmem [#allocation1], 1104
    %v1531 = vld [vmem:[%s1530] sm:$0x3]
    %s1532 = scalar_lea.vmem [#allocation0], 546
    %1533 = vst [vmem:[%s1532] sm:$0x3] %v1531
    %s1534 = scalar_lea.vmem [#allocation1], 1112
    %v1535 = vld [vmem:[%s1534] sm:$0x3]
    %s1536 = scalar_lea.vmem [#allocation0], 554
    %1537 = vst [vmem:[%s1536] sm:$0x3] %v1535
    %s1538 = scalar_lea.vmem [#allocation1], 1120
    %v1539 = vld [vmem:[%s1538] sm:$0x3]
    %s1540 = scalar_lea.vmem [#allocation0], 560
    %1541 = vst [vmem:[%s1540] sm:$0x3] %v1539
    %s1542 = scalar_lea.vmem [#allocation1], 1128
    %v1543 = vld [vmem:[%s1542] sm:$0x3]
    %s1544 = scalar_lea.vmem [#allocation0], 568
    %1545 = vst [vmem:[%s1544] sm:$0x3] %v1543
    %s1546 = scalar_lea.vmem [#allocation1], 1136
    %v1547 = vld [vmem:[%s1546] sm:$0x3]
    %s1548 = scalar_lea.vmem [#allocation0], 562
    %1549 = vst [vmem:[%s1548] sm:$0x3] %v1547
    %s1550 = scalar_lea.vmem [#allocation1], 1144
    %v1551 = vld [vmem:[%s1550] sm:$0x3]
    %s1552 = scalar_lea.vmem [#allocation0], 570
    %1553 = vst [vmem:[%s1552] sm:$0x3] %v1551
    %s1554 = scalar_lea.vmem [#allocation1], 1152
    %v1555 = vld [vmem:[%s1554] sm:$0x3]
    %s1556 = scalar_lea.vmem [#allocation0], 576
    %1557 = vst [vmem:[%s1556] sm:$0x3] %v1555
    %s1558 = scalar_lea.vmem [#allocation1], 1160
    %v1559 = vld [vmem:[%s1558] sm:$0x3]
    %s1560 = scalar_lea.vmem [#allocation0], 584
    %1561 = vst [vmem:[%s1560] sm:$0x3] %v1559
    %s1562 = scalar_lea.vmem [#allocation1], 1168
    %v1563 = vld [vmem:[%s1562] sm:$0x3]
    %s1564 = scalar_lea.vmem [#allocation0], 578
    %1565 = vst [vmem:[%s1564] sm:$0x3] %v1563
    %s1566 = scalar_lea.vmem [#allocation1], 1176
    %v1567 = vld [vmem:[%s1566] sm:$0x3]
    %s1568 = scalar_lea.vmem [#allocation0], 586
    %1569 = vst [vmem:[%s1568] sm:$0x3] %v1567
    %s1570 = scalar_lea.vmem [#allocation1], 1184
    %v1571 = vld [vmem:[%s1570] sm:$0x3]
    %s1572 = scalar_lea.vmem [#allocation0], 592
    %1573 = vst [vmem:[%s1572] sm:$0x3] %v1571
    %s1574 = scalar_lea.vmem [#allocation1], 1192
    %v1575 = vld [vmem:[%s1574] sm:$0x3]
    %s1576 = scalar_lea.vmem [#allocation0], 600
    %1577 = vst [vmem:[%s1576] sm:$0x3] %v1575
    %s1578 = scalar_lea.vmem [#allocation1], 1200
    %v1579 = vld [vmem:[%s1578] sm:$0x3]
    %s1580 = scalar_lea.vmem [#allocation0], 594
    %1581 = vst [vmem:[%s1580] sm:$0x3] %v1579
    %s1582 = scalar_lea.vmem [#allocation1], 1208
    %v1583 = vld [vmem:[%s1582] sm:$0x3]
    %s1584 = scalar_lea.vmem [#allocation0], 602
    %1585 = vst [vmem:[%s1584] sm:$0x3] %v1583
    %s1586 = scalar_lea.vmem [#allocation1], 1216
    %v1587 = vld [vmem:[%s1586] sm:$0x3]
    %s1588 = scalar_lea.vmem [#allocation0], 608
    %1589 = vst [vmem:[%s1588] sm:$0x3] %v1587
    %s1590 = scalar_lea.vmem [#allocation1], 1224
    %v1591 = vld [vmem:[%s1590] sm:$0x3]
    %s1592 = scalar_lea.vmem [#allocation0], 616
    %1593 = vst [vmem:[%s1592] sm:$0x3] %v1591
    %s1594 = scalar_lea.vmem [#allocation1], 1232
    %v1595 = vld [vmem:[%s1594] sm:$0x3]
    %s1596 = scalar_lea.vmem [#allocation0], 610
    %1597 = vst [vmem:[%s1596] sm:$0x3] %v1595
    %s1598 = scalar_lea.vmem [#allocation1], 1240
    %v1599 = vld [vmem:[%s1598] sm:$0x3]
    %s1600 = scalar_lea.vmem [#allocation0], 618
    %1601 = vst [vmem:[%s1600] sm:$0x3] %v1599
    %s1602 = scalar_lea.vmem [#allocation1], 1248
    %v1603 = vld [vmem:[%s1602] sm:$0x3]
    %s1604 = scalar_lea.vmem [#allocation0], 624
    %1605 = vst [vmem:[%s1604] sm:$0x3] %v1603
    %s1606 = scalar_lea.vmem [#allocation1], 1256
    %v1607 = vld [vmem:[%s1606] sm:$0x3]
    %s1608 = scalar_lea.vmem [#allocation0], 632
    %1609 = vst [vmem:[%s1608] sm:$0x3] %v1607
    %s1610 = scalar_lea.vmem [#allocation1], 1264
    %v1611 = vld [vmem:[%s1610] sm:$0x3]
    %s1612 = scalar_lea.vmem [#allocation0], 626
    %1613 = vst [vmem:[%s1612] sm:$0x3] %v1611
    %s1614 = scalar_lea.vmem [#allocation1], 1272
    %v1615 = vld [vmem:[%s1614] sm:$0x3]
    %s1616 = scalar_lea.vmem [#allocation0], 634
    %1617 = vst [vmem:[%s1616] sm:$0x3] %v1615
    %s1618 = scalar_lea.vmem [#allocation1], 1280
    %v1619 = vld [vmem:[%s1618] sm:$0x3]
    %s1620 = scalar_lea.vmem [#allocation0], 640
    %1621 = vst [vmem:[%s1620] sm:$0x3] %v1619
    %s1622 = scalar_lea.vmem [#allocation1], 1288
    %v1623 = vld [vmem:[%s1622] sm:$0x3]
    %s1624 = scalar_lea.vmem [#allocation0], 648
    %1625 = vst [vmem:[%s1624] sm:$0x3] %v1623
    %s1626 = scalar_lea.vmem [#allocation1], 1296
    %v1627 = vld [vmem:[%s1626] sm:$0x3]
    %s1628 = scalar_lea.vmem [#allocation0], 642
    %1629 = vst [vmem:[%s1628] sm:$0x3] %v1627
    %s1630 = scalar_lea.vmem [#allocation1], 1304
    %v1631 = vld [vmem:[%s1630] sm:$0x3]
    %s1632 = scalar_lea.vmem [#allocation0], 650
    %1633 = vst [vmem:[%s1632] sm:$0x3] %v1631
    %s1634 = scalar_lea.vmem [#allocation1], 1312
    %v1635 = vld [vmem:[%s1634] sm:$0x3]
    %s1636 = scalar_lea.vmem [#allocation0], 656
    %1637 = vst [vmem:[%s1636] sm:$0x3] %v1635
    %s1638 = scalar_lea.vmem [#allocation1], 1320
    %v1639 = vld [vmem:[%s1638] sm:$0x3]
    %s1640 = scalar_lea.vmem [#allocation0], 664
    %1641 = vst [vmem:[%s1640] sm:$0x3] %v1639
    %s1642 = scalar_lea.vmem [#allocation1], 1328
    %v1643 = vld [vmem:[%s1642] sm:$0x3]
    %s1644 = scalar_lea.vmem [#allocation0], 658
    %1645 = vst [vmem:[%s1644] sm:$0x3] %v1643
    %s1646 = scalar_lea.vmem [#allocation1], 1336
    %v1647 = vld [vmem:[%s1646] sm:$0x3]
    %s1648 = scalar_lea.vmem [#allocation0], 666
    %1649 = vst [vmem:[%s1648] sm:$0x3] %v1647
    %s1650 = scalar_lea.vmem [#allocation1], 1344
    %v1651 = vld [vmem:[%s1650] sm:$0x3]
    %s1652 = scalar_lea.vmem [#allocation0], 672
    %1653 = vst [vmem:[%s1652] sm:$0x3] %v1651
    %s1654 = scalar_lea.vmem [#allocation1], 1352
    %v1655 = vld [vmem:[%s1654] sm:$0x3]
    %s1656 = scalar_lea.vmem [#allocation0], 680
    %1657 = vst [vmem:[%s1656] sm:$0x3] %v1655
    %s1658 = scalar_lea.vmem [#allocation1], 1360
    %v1659 = vld [vmem:[%s1658] sm:$0x3]
    %s1660 = scalar_lea.vmem [#allocation0], 674
    %1661 = vst [vmem:[%s1660] sm:$0x3] %v1659
    %s1662 = scalar_lea.vmem [#allocation1], 1368
    %v1663 = vld [vmem:[%s1662] sm:$0x3]
    %s1664 = scalar_lea.vmem [#allocation0], 682
    %1665 = vst [vmem:[%s1664] sm:$0x3] %v1663
    %s1666 = scalar_lea.vmem [#allocation1], 1376
    %v1667 = vld [vmem:[%s1666] sm:$0x3]
    %s1668 = scalar_lea.vmem [#allocation0], 688
    %1669 = vst [vmem:[%s1668] sm:$0x3] %v1667
    %s1670 = scalar_lea.vmem [#allocation1], 1384
    %v1671 = vld [vmem:[%s1670] sm:$0x3]
    %s1672 = scalar_lea.vmem [#allocation0], 696
    %1673 = vst [vmem:[%s1672] sm:$0x3] %v1671
    %s1674 = scalar_lea.vmem [#allocation1], 1392
    %v1675 = vld [vmem:[%s1674] sm:$0x3]
    %s1676 = scalar_lea.vmem [#allocation0], 690
    %1677 = vst [vmem:[%s1676] sm:$0x3] %v1675
    %s1678 = scalar_lea.vmem [#allocation1], 1400
    %v1679 = vld [vmem:[%s1678] sm:$0x3]
    %s1680 = scalar_lea.vmem [#allocation0], 698
    %1681 = vst [vmem:[%s1680] sm:$0x3] %v1679
    %s1682 = scalar_lea.vmem [#allocation1], 1408
    %v1683 = vld [vmem:[%s1682] sm:$0x3]
    %s1684 = scalar_lea.vmem [#allocation0], 704
    %1685 = vst [vmem:[%s1684] sm:$0x3] %v1683
    %s1686 = scalar_lea.vmem [#allocation1], 1416
    %v1687 = vld [vmem:[%s1686] sm:$0x3]
    %s1688 = scalar_lea.vmem [#allocation0], 712
    %1689 = vst [vmem:[%s1688] sm:$0x3] %v1687
    %s1690 = scalar_lea.vmem [#allocation1], 1424
    %v1691 = vld [vmem:[%s1690] sm:$0x3]
    %s1692 = scalar_lea.vmem [#allocation0], 706
    %1693 = vst [vmem:[%s1692] sm:$0x3] %v1691
    %s1694 = scalar_lea.vmem [#allocation1], 1432
    %v1695 = vld [vmem:[%s1694] sm:$0x3]
    %s1696 = scalar_lea.vmem [#allocation0], 714
    %1697 = vst [vmem:[%s1696] sm:$0x3] %v1695
    %s1698 = scalar_lea.vmem [#allocation1], 1440
    %v1699 = vld [vmem:[%s1698] sm:$0x3]
    %s1700 = scalar_lea.vmem [#allocation0], 720
    %1701 = vst [vmem:[%s1700] sm:$0x3] %v1699
    %s1702 = scalar_lea.vmem [#allocation1], 1448
    %v1703 = vld [vmem:[%s1702] sm:$0x3]
    %s1704 = scalar_lea.vmem [#allocation0], 728
    %1705 = vst [vmem:[%s1704] sm:$0x3] %v1703
    %s1706 = scalar_lea.vmem [#allocation1], 1456
    %v1707 = vld [vmem:[%s1706] sm:$0x3]
    %s1708 = scalar_lea.vmem [#allocation0], 722
    %1709 = vst [vmem:[%s1708] sm:$0x3] %v1707
    %s1710 = scalar_lea.vmem [#allocation1], 1464
    %v1711 = vld [vmem:[%s1710] sm:$0x3]
    %s1712 = scalar_lea.vmem [#allocation0], 730
    %1713 = vst [vmem:[%s1712] sm:$0x3] %v1711
    %s1714 = scalar_lea.vmem [#allocation1], 1472
    %v1715 = vld [vmem:[%s1714] sm:$0x3]
    %s1716 = scalar_lea.vmem [#allocation0], 736
    %1717 = vst [vmem:[%s1716] sm:$0x3] %v1715
    %s1718 = scalar_lea.vmem [#allocation1], 1480
    %v1719 = vld [vmem:[%s1718] sm:$0x3]
    %s1720 = scalar_lea.vmem [#allocation0], 744
    %1721 = vst [vmem:[%s1720] sm:$0x3] %v1719
    %s1722 = scalar_lea.vmem [#allocation1], 1488
    %v1723 = vld [vmem:[%s1722] sm:$0x3]
    %s1724 = scalar_lea.vmem [#allocation0], 738
    %1725 = vst [vmem:[%s1724] sm:$0x3] %v1723
    %s1726 = scalar_lea.vmem [#allocation1], 1496
    %v1727 = vld [vmem:[%s1726] sm:$0x3]
    %s1728 = scalar_lea.vmem [#allocation0], 746
    %1729 = vst [vmem:[%s1728] sm:$0x3] %v1727
    %s1730 = scalar_lea.vmem [#allocation1], 1504
    %v1731 = vld [vmem:[%s1730] sm:$0x3]
    %s1732 = scalar_lea.vmem [#allocation0], 752
    %1733 = vst [vmem:[%s1732] sm:$0x3] %v1731
    %s1734 = scalar_lea.vmem [#allocation1], 1512
    %v1735 = vld [vmem:[%s1734] sm:$0x3]
    %s1736 = scalar_lea.vmem [#allocation0], 760
    %1737 = vst [vmem:[%s1736] sm:$0x3] %v1735
    %s1738 = scalar_lea.vmem [#allocation1], 1520
    %v1739 = vld [vmem:[%s1738] sm:$0x3]
    %s1740 = scalar_lea.vmem [#allocation0], 754
    %1741 = vst [vmem:[%s1740] sm:$0x3] %v1739
    %s1742 = scalar_lea.vmem [#allocation1], 1528
    %v1743 = vld [vmem:[%s1742] sm:$0x3]
    %s1744 = scalar_lea.vmem [#allocation0], 762
    %1745 = vst [vmem:[%s1744] sm:$0x3] %v1743
    %s1746 = scalar_lea.vmem [#allocation1], 1536
    %v1747 = vld [vmem:[%s1746] sm:$0x3]
    %s1748 = scalar_lea.vmem [#allocation0], 768
    %1749 = vst [vmem:[%s1748] sm:$0x3] %v1747
    %s1750 = scalar_lea.vmem [#allocation1], 1544
    %v1751 = vld [vmem:[%s1750] sm:$0x3]
    %s1752 = scalar_lea.vmem [#allocation0], 776
    %1753 = vst [vmem:[%s1752] sm:$0x3] %v1751
    %s1754 = scalar_lea.vmem [#allocation1], 1552
    %v1755 = vld [vmem:[%s1754] sm:$0x3]
    %s1756 = scalar_lea.vmem [#allocation0], 770
    %1757 = vst [vmem:[%s1756] sm:$0x3] %v1755
    %s1758 = scalar_lea.vmem [#allocation1], 1560
    %v1759 = vld [vmem:[%s1758] sm:$0x3]
    %s1760 = scalar_lea.vmem [#allocation0], 778
    %1761 = vst [vmem:[%s1760] sm:$0x3] %v1759
    %s1763 = sshllo.u32 0, 4
    %v1765 = vld [vmem:[#allocation0] sm:%s1763]
    %s1766 = sshllo.u32 0, 4
    %1767 = vst [vmem:[%s1] sm:%s1766] %v1765
    %s1768 = scalar_lea.vmem [#allocation0], 8
    %v1769 = vld [vmem:[%s1768] sm:%s1763]
    %s1770 = sshllo.u32 0, 4
    %s1771 = scalar_lea.vmem %s1, 4
    %1772 = vst [vmem:[%s1771] sm:%s1770] %v1769
    %s1773 = scalar_lea.vmem [#allocation0], 16
    %v1774 = vld [vmem:[%s1773] sm:%s1763]
    %s1775 = sshllo.u32 0, 4
    %s1776 = smul.addr 4, 2
    %s1777 = scalar_lea.vmem %s1, %s1776
    %1778 = vst [vmem:[%s1777] sm:%s1775] %v1774
    %s1779 = scalar_lea.vmem [#allocation0], 24
    %v1780 = vld [vmem:[%s1779] sm:%s1763]
    %s1781 = sshllo.u32 0, 4
    %s1782 = smul.addr 4, 3
    %s1783 = scalar_lea.vmem %s1, %s1782
    %1784 = vst [vmem:[%s1783] sm:%s1781] %v1780
    %s1785 = scalar_lea.vmem [#allocation0], 32
    %v1786 = vld [vmem:[%s1785] sm:%s1763]
    %s1787 = sshllo.u32 0, 4
    %s1788 = smul.addr 4, 4
    %s1789 = scalar_lea.vmem %s1, %s1788
    %1790 = vst [vmem:[%s1789] sm:%s1787] %v1786
    %s1791 = scalar_lea.vmem [#allocation0], 40
    %v1792 = vld [vmem:[%s1791] sm:%s1763]
    %s1793 = sshllo.u32 0, 4
    %s1794 = smul.addr 4, 5
    %s1795 = scalar_lea.vmem %s1, %s1794
    %1796 = vst [vmem:[%s1795] sm:%s1793] %v1792
    %s1797 = scalar_lea.vmem [#allocation0], 48
    %v1798 = vld [vmem:[%s1797] sm:%s1763]
    %s1799 = sshllo.u32 0, 4
    %s1800 = smul.addr 4, 6
    %s1801 = scalar_lea.vmem %s1, %s1800
    %1802 = vst [vmem:[%s1801] sm:%s1799] %v1798
    %s1803 = scalar_lea.vmem [#allocation0], 56
    %v1804 = vld [vmem:[%s1803] sm:%s1763]
    %s1805 = sshllo.u32 0, 4
    %s1806 = smul.addr 4, 7
    %s1807 = scalar_lea.vmem %s1, %s1806
    %1808 = vst [vmem:[%s1807] sm:%s1805] %v1804
    %s1809 = scalar_lea.vmem [#allocation0], 64
    %v1810 = vld [vmem:[%s1809] sm:%s1763]
    %s1811 = sshllo.u32 0, 4
    %s1812 = smul.addr 4, 8
    %s1813 = scalar_lea.vmem %s1, %s1812
    %1814 = vst [vmem:[%s1813] sm:%s1811] %v1810
    %s1815 = scalar_lea.vmem [#allocation0], 72
    %v1816 = vld [vmem:[%s1815] sm:%s1763]
    %s1817 = sshllo.u32 0, 4
    %s1818 = smul.addr 4, 9
    %s1819 = scalar_lea.vmem %s1, %s1818
    %1820 = vst [vmem:[%s1819] sm:%s1817] %v1816
    %s1821 = scalar_lea.vmem [#allocation0], 80
    %v1822 = vld [vmem:[%s1821] sm:%s1763]
    %s1823 = sshllo.u32 0, 4
    %s1824 = smul.addr 4, 10
    %s1825 = scalar_lea.vmem %s1, %s1824
    %1826 = vst [vmem:[%s1825] sm:%s1823] %v1822
    %s1827 = scalar_lea.vmem [#allocation0], 88
    %v1828 = vld [vmem:[%s1827] sm:%s1763]
    %s1829 = sshllo.u32 0, 4
    %s1830 = smul.addr 4, 11
    %s1831 = scalar_lea.vmem %s1, %s1830
    %1832 = vst [vmem:[%s1831] sm:%s1829] %v1828
    %s1833 = scalar_lea.vmem [#allocation0], 96
    %v1834 = vld [vmem:[%s1833] sm:%s1763]
    %s1835 = sshllo.u32 0, 4
    %s1836 = smul.addr 4, 12
    %s1837 = scalar_lea.vmem %s1, %s1836
    %1838 = vst [vmem:[%s1837] sm:%s1835] %v1834
    %s1839 = scalar_lea.vmem [#allocation0], 104
    %v1840 = vld [vmem:[%s1839] sm:%s1763]
    %s1841 = sshllo.u32 0, 4
    %s1842 = smul.addr 4, 13
    %s1843 = scalar_lea.vmem %s1, %s1842
    %1844 = vst [vmem:[%s1843] sm:%s1841] %v1840
    %s1845 = scalar_lea.vmem [#allocation0], 112
    %v1846 = vld [vmem:[%s1845] sm:%s1763]
    %s1847 = sshllo.u32 0, 4
    %s1848 = smul.addr 4, 14
    %s1849 = scalar_lea.vmem %s1, %s1848
    %1850 = vst [vmem:[%s1849] sm:%s1847] %v1846
    %s1851 = scalar_lea.vmem [#allocation0], 120
    %v1852 = vld [vmem:[%s1851] sm:%s1763]
    %s1853 = sshllo.u32 0, 4
    %s1854 = smul.addr 4, 15
    %s1855 = scalar_lea.vmem %s1, %s1854
    %1856 = vst [vmem:[%s1855] sm:%s1853] %v1852
    %s1857 = scalar_lea.vmem [#allocation0], 128
    %v1858 = vld [vmem:[%s1857] sm:%s1763]
    %s1859 = sshllo.u32 0, 4
    %s1860 = smul.addr 4, 16
    %s1861 = scalar_lea.vmem %s1, %s1860
    %1862 = vst [vmem:[%s1861] sm:%s1859] %v1858
    %s1863 = scalar_lea.vmem [#allocation0], 136
    %v1864 = vld [vmem:[%s1863] sm:%s1763]
    %s1865 = sshllo.u32 0, 4
    %s1866 = smul.addr 4, 17
    %s1867 = scalar_lea.vmem %s1, %s1866
    %1868 = vst [vmem:[%s1867] sm:%s1865] %v1864
    %s1869 = scalar_lea.vmem [#allocation0], 144
    %v1870 = vld [vmem:[%s1869] sm:%s1763]
    %s1871 = sshllo.u32 0, 4
    %s1872 = smul.addr 4, 18
    %s1873 = scalar_lea.vmem %s1, %s1872
    %1874 = vst [vmem:[%s1873] sm:%s1871] %v1870
    %s1875 = scalar_lea.vmem [#allocation0], 152
    %v1876 = vld [vmem:[%s1875] sm:%s1763]
    %s1877 = sshllo.u32 0, 4
    %s1878 = smul.addr 4, 19
    %s1879 = scalar_lea.vmem %s1, %s1878
    %1880 = vst [vmem:[%s1879] sm:%s1877] %v1876
    %s1881 = scalar_lea.vmem [#allocation0], 160
    %v1882 = vld [vmem:[%s1881] sm:%s1763]
    %s1883 = sshllo.u32 0, 4
    %s1884 = smul.addr 4, 20
    %s1885 = scalar_lea.vmem %s1, %s1884
    %1886 = vst [vmem:[%s1885] sm:%s1883] %v1882
    %s1887 = scalar_lea.vmem [#allocation0], 168
    %v1888 = vld [vmem:[%s1887] sm:%s1763]
    %s1889 = sshllo.u32 0, 4
    %s1890 = smul.addr 4, 21
    %s1891 = scalar_lea.vmem %s1, %s1890
    %1892 = vst [vmem:[%s1891] sm:%s1889] %v1888
    %s1893 = scalar_lea.vmem [#allocation0], 176
    %v1894 = vld [vmem:[%s1893] sm:%s1763]
    %s1895 = sshllo.u32 0, 4
    %s1896 = smul.addr 4, 22
    %s1897 = scalar_lea.vmem %s1, %s1896
    %1898 = vst [vmem:[%s1897] sm:%s1895] %v1894
    %s1899 = scalar_lea.vmem [#allocation0], 184
    %v1900 = vld [vmem:[%s1899] sm:%s1763]
    %s1901 = sshllo.u32 0, 4
    %s1902 = smul.addr 4, 23
    %s1903 = scalar_lea.vmem %s1, %s1902
    %1904 = vst [vmem:[%s1903] sm:%s1901] %v1900
    %s1905 = scalar_lea.vmem [#allocation0], 192
    %v1906 = vld [vmem:[%s1905] sm:%s1763]
    %s1907 = sshllo.u32 0, 4
    %s1908 = smul.addr 4, 24
    %s1909 = scalar_lea.vmem %s1, %s1908
    %1910 = vst [vmem:[%s1909] sm:%s1907] %v1906
    %s1911 = scalar_lea.vmem [#allocation0], 200
    %v1912 = vld [vmem:[%s1911] sm:%s1763]
    %s1913 = sshllo.u32 0, 4
    %s1914 = smul.addr 4, 25
    %s1915 = scalar_lea.vmem %s1, %s1914
    %1916 = vst [vmem:[%s1915] sm:%s1913] %v1912
    %s1917 = scalar_lea.vmem [#allocation0], 208
    %v1918 = vld [vmem:[%s1917] sm:%s1763]
    %s1919 = sshllo.u32 0, 4
    %s1920 = smul.addr 4, 26
    %s1921 = scalar_lea.vmem %s1, %s1920
    %1922 = vst [vmem:[%s1921] sm:%s1919] %v1918
    %s1923 = scalar_lea.vmem [#allocation0], 216
    %v1924 = vld [vmem:[%s1923] sm:%s1763]
    %s1925 = sshllo.u32 0, 4
    %s1926 = smul.addr 4, 27
    %s1927 = scalar_lea.vmem %s1, %s1926
    %1928 = vst [vmem:[%s1927] sm:%s1925] %v1924
    %s1929 = scalar_lea.vmem [#allocation0], 224
    %v1930 = vld [vmem:[%s1929] sm:%s1763]
    %s1931 = sshllo.u32 0, 4
    %s1932 = smul.addr 4, 28
    %s1933 = scalar_lea.vmem %s1, %s1932
    %1934 = vst [vmem:[%s1933] sm:%s1931] %v1930
    %s1935 = scalar_lea.vmem [#allocation0], 232
    %v1936 = vld [vmem:[%s1935] sm:%s1763]
    %s1937 = sshllo.u32 0, 4
    %s1938 = smul.addr 4, 29
    %s1939 = scalar_lea.vmem %s1, %s1938
    %1940 = vst [vmem:[%s1939] sm:%s1937] %v1936
    %s1941 = scalar_lea.vmem [#allocation0], 240
    %v1942 = vld [vmem:[%s1941] sm:%s1763]
    %s1943 = sshllo.u32 0, 4
    %s1944 = smul.addr 4, 30
    %s1945 = scalar_lea.vmem %s1, %s1944
    %1946 = vst [vmem:[%s1945] sm:%s1943] %v1942
    %s1947 = scalar_lea.vmem [#allocation0], 248
    %v1948 = vld [vmem:[%s1947] sm:%s1763]
    %s1949 = sshllo.u32 0, 4
    %s1950 = smul.addr 4, 31
    %s1951 = scalar_lea.vmem %s1, %s1950
    %1952 = vst [vmem:[%s1951] sm:%s1949] %v1948
    %s1953 = scalar_lea.vmem [#allocation0], 256
    %v1954 = vld [vmem:[%s1953] sm:%s1763]
    %s1955 = sshllo.u32 0, 4
    %s1956 = smul.addr 4, 32
    %s1957 = scalar_lea.vmem %s1, %s1956
    %1958 = vst [vmem:[%s1957] sm:%s1955] %v1954
    %s1959 = scalar_lea.vmem [#allocation0], 264
    %v1960 = vld [vmem:[%s1959] sm:%s1763]
    %s1961 = sshllo.u32 0, 4
    %s1962 = smul.addr 4, 33
    %s1963 = scalar_lea.vmem %s1, %s1962
    %1964 = vst [vmem:[%s1963] sm:%s1961] %v1960
    %s1965 = scalar_lea.vmem [#allocation0], 272
    %v1966 = vld [vmem:[%s1965] sm:%s1763]
    %s1967 = sshllo.u32 0, 4
    %s1968 = smul.addr 4, 34
    %s1969 = scalar_lea.vmem %s1, %s1968
    %1970 = vst [vmem:[%s1969] sm:%s1967] %v1966
    %s1971 = scalar_lea.vmem [#allocation0], 280
    %v1972 = vld [vmem:[%s1971] sm:%s1763]
    %s1973 = sshllo.u32 0, 4
    %s1974 = smul.addr 4, 35
    %s1975 = scalar_lea.vmem %s1, %s1974
    %1976 = vst [vmem:[%s1975] sm:%s1973] %v1972
    %s1977 = scalar_lea.vmem [#allocation0], 288
    %v1978 = vld [vmem:[%s1977] sm:%s1763]
    %s1979 = sshllo.u32 0, 4
    %s1980 = smul.addr 4, 36
    %s1981 = scalar_lea.vmem %s1, %s1980
    %1982 = vst [vmem:[%s1981] sm:%s1979] %v1978
    %s1983 = scalar_lea.vmem [#allocation0], 296
    %v1984 = vld [vmem:[%s1983] sm:%s1763]
    %s1985 = sshllo.u32 0, 4
    %s1986 = smul.addr 4, 37
    %s1987 = scalar_lea.vmem %s1, %s1986
    %1988 = vst [vmem:[%s1987] sm:%s1985] %v1984
    %s1989 = scalar_lea.vmem [#allocation0], 304
    %v1990 = vld [vmem:[%s1989] sm:%s1763]
    %s1991 = sshllo.u32 0, 4
    %s1992 = smul.addr 4, 38
    %s1993 = scalar_lea.vmem %s1, %s1992
    %1994 = vst [vmem:[%s1993] sm:%s1991] %v1990
    %s1995 = scalar_lea.vmem [#allocation0], 312
    %v1996 = vld [vmem:[%s1995] sm:%s1763]
    %s1997 = sshllo.u32 0, 4
    %s1998 = smul.addr 4, 39
    %s1999 = scalar_lea.vmem %s1, %s1998
    %2000 = vst [vmem:[%s1999] sm:%s1997] %v1996
    %s2001 = scalar_lea.vmem [#allocation0], 320
    %v2002 = vld [vmem:[%s2001] sm:%s1763]
    %s2003 = sshllo.u32 0, 4
    %s2004 = smul.addr 4, 40
    %s2005 = scalar_lea.vmem %s1, %s2004
    %2006 = vst [vmem:[%s2005] sm:%s2003] %v2002
    %s2007 = scalar_lea.vmem [#allocation0], 328
    %v2008 = vld [vmem:[%s2007] sm:%s1763]
    %s2009 = sshllo.u32 0, 4
    %s2010 = smul.addr 4, 41
    %s2011 = scalar_lea.vmem %s1, %s2010
    %2012 = vst [vmem:[%s2011] sm:%s2009] %v2008
    %s2013 = scalar_lea.vmem [#allocation0], 336
    %v2014 = vld [vmem:[%s2013] sm:%s1763]
    %s2015 = sshllo.u32 0, 4
    %s2016 = smul.addr 4, 42
    %s2017 = scalar_lea.vmem %s1, %s2016
    %2018 = vst [vmem:[%s2017] sm:%s2015] %v2014
    %s2019 = scalar_lea.vmem [#allocation0], 344
    %v2020 = vld [vmem:[%s2019] sm:%s1763]
    %s2021 = sshllo.u32 0, 4
    %s2022 = smul.addr 4, 43
    %s2023 = scalar_lea.vmem %s1, %s2022
    %2024 = vst [vmem:[%s2023] sm:%s2021] %v2020
    %s2025 = scalar_lea.vmem [#allocation0], 352
    %v2026 = vld [vmem:[%s2025] sm:%s1763]
    %s2027 = sshllo.u32 0, 4
    %s2028 = smul.addr 4, 44
    %s2029 = scalar_lea.vmem %s1, %s2028
    %2030 = vst [vmem:[%s2029] sm:%s2027] %v2026
    %s2031 = scalar_lea.vmem [#allocation0], 360
    %v2032 = vld [vmem:[%s2031] sm:%s1763]
    %s2033 = sshllo.u32 0, 4
    %s2034 = smul.addr 4, 45
    %s2035 = scalar_lea.vmem %s1, %s2034
    %2036 = vst [vmem:[%s2035] sm:%s2033] %v2032
    %s2037 = scalar_lea.vmem [#allocation0], 368
    %v2038 = vld [vmem:[%s2037] sm:%s1763]
    %s2039 = sshllo.u32 0, 4
    %s2040 = smul.addr 4, 46
    %s2041 = scalar_lea.vmem %s1, %s2040
    %2042 = vst [vmem:[%s2041] sm:%s2039] %v2038
    %s2043 = scalar_lea.vmem [#allocation0], 376
    %v2044 = vld [vmem:[%s2043] sm:%s1763]
    %s2045 = sshllo.u32 0, 4
    %s2046 = smul.addr 4, 47
    %s2047 = scalar_lea.vmem %s1, %s2046
    %2048 = vst [vmem:[%s2047] sm:%s2045] %v2044
    %s2049 = scalar_lea.vmem [#allocation0], 384
    %v2050 = vld [vmem:[%s2049] sm:%s1763]
    %s2051 = sshllo.u32 0, 4
    %s2052 = smul.addr 4, 48
    %s2053 = scalar_lea.vmem %s1, %s2052
    %2054 = vst [vmem:[%s2053] sm:%s2051] %v2050
    %s2055 = scalar_lea.vmem [#allocation0], 392
    %v2056 = vld [vmem:[%s2055] sm:%s1763]
    %s2057 = sshllo.u32 0, 4
    %s2058 = smul.addr 4, 49
    %s2059 = scalar_lea.vmem %s1, %s2058
    %2060 = vst [vmem:[%s2059] sm:%s2057] %v2056
    %s2061 = scalar_lea.vmem [#allocation0], 400
    %v2062 = vld [vmem:[%s2061] sm:%s1763]
    %s2063 = sshllo.u32 0, 4
    %s2064 = smul.addr 4, 50
    %s2065 = scalar_lea.vmem %s1, %s2064
    %2066 = vst [vmem:[%s2065] sm:%s2063] %v2062
    %s2067 = scalar_lea.vmem [#allocation0], 408
    %v2068 = vld [vmem:[%s2067] sm:%s1763]
    %s2069 = sshllo.u32 0, 4
    %s2070 = smul.addr 4, 51
    %s2071 = scalar_lea.vmem %s1, %s2070
    %2072 = vst [vmem:[%s2071] sm:%s2069] %v2068
    %s2073 = scalar_lea.vmem [#allocation0], 416
    %v2074 = vld [vmem:[%s2073] sm:%s1763]
    %s2075 = sshllo.u32 0, 4
    %s2076 = smul.addr 4, 52
    %s2077 = scalar_lea.vmem %s1, %s2076
    %2078 = vst [vmem:[%s2077] sm:%s2075] %v2074
    %s2079 = scalar_lea.vmem [#allocation0], 424
    %v2080 = vld [vmem:[%s2079] sm:%s1763]
    %s2081 = sshllo.u32 0, 4
    %s2082 = smul.addr 4, 53
    %s2083 = scalar_lea.vmem %s1, %s2082
    %2084 = vst [vmem:[%s2083] sm:%s2081] %v2080
    %s2085 = scalar_lea.vmem [#allocation0], 432
    %v2086 = vld [vmem:[%s2085] sm:%s1763]
    %s2087 = sshllo.u32 0, 4
    %s2088 = smul.addr 4, 54
    %s2089 = scalar_lea.vmem %s1, %s2088
    %2090 = vst [vmem:[%s2089] sm:%s2087] %v2086
    %s2091 = scalar_lea.vmem [#allocation0], 440
    %v2092 = vld [vmem:[%s2091] sm:%s1763]
    %s2093 = sshllo.u32 0, 4
    %s2094 = smul.addr 4, 55
    %s2095 = scalar_lea.vmem %s1, %s2094
    %2096 = vst [vmem:[%s2095] sm:%s2093] %v2092
    %s2097 = scalar_lea.vmem [#allocation0], 448
    %v2098 = vld [vmem:[%s2097] sm:%s1763]
    %s2099 = sshllo.u32 0, 4
    %s2100 = smul.addr 4, 56
    %s2101 = scalar_lea.vmem %s1, %s2100
    %2102 = vst [vmem:[%s2101] sm:%s2099] %v2098
    %s2103 = scalar_lea.vmem [#allocation0], 456
    %v2104 = vld [vmem:[%s2103] sm:%s1763]
    %s2105 = sshllo.u32 0, 4
    %s2106 = smul.addr 4, 57
    %s2107 = scalar_lea.vmem %s1, %s2106
    %2108 = vst [vmem:[%s2107] sm:%s2105] %v2104
    %s2109 = scalar_lea.vmem [#allocation0], 464
    %v2110 = vld [vmem:[%s2109] sm:%s1763]
    %s2111 = sshllo.u32 0, 4
    %s2112 = smul.addr 4, 58
    %s2113 = scalar_lea.vmem %s1, %s2112
    %2114 = vst [vmem:[%s2113] sm:%s2111] %v2110
    %s2115 = scalar_lea.vmem [#allocation0], 472
    %v2116 = vld [vmem:[%s2115] sm:%s1763]
    %s2117 = sshllo.u32 0, 4
    %s2118 = smul.addr 4, 59
    %s2119 = scalar_lea.vmem %s1, %s2118
    %2120 = vst [vmem:[%s2119] sm:%s2117] %v2116
    %s2121 = scalar_lea.vmem [#allocation0], 480
    %v2122 = vld [vmem:[%s2121] sm:%s1763]
    %s2123 = sshllo.u32 0, 4
    %s2124 = smul.addr 4, 60
    %s2125 = scalar_lea.vmem %s1, %s2124
    %2126 = vst [vmem:[%s2125] sm:%s2123] %v2122
    %s2127 = scalar_lea.vmem [#allocation0], 488
    %v2128 = vld [vmem:[%s2127] sm:%s1763]
    %s2129 = sshllo.u32 0, 4
    %s2130 = smul.addr 4, 61
    %s2131 = scalar_lea.vmem %s1, %s2130
    %2132 = vst [vmem:[%s2131] sm:%s2129] %v2128
    %s2133 = scalar_lea.vmem [#allocation0], 496
    %v2134 = vld [vmem:[%s2133] sm:%s1763]
    %s2135 = sshllo.u32 0, 4
    %s2136 = smul.addr 4, 62
    %s2137 = scalar_lea.vmem %s1, %s2136
    %2138 = vst [vmem:[%s2137] sm:%s2135] %v2134
    %s2139 = scalar_lea.vmem [#allocation0], 504
    %v2140 = vld [vmem:[%s2139] sm:%s1763]
    %s2141 = sshllo.u32 0, 4
    %s2142 = smul.addr 4, 63
    %s2143 = scalar_lea.vmem %s1, %s2142
    %2144 = vst [vmem:[%s2143] sm:%s2141] %v2140
    %s2145 = scalar_lea.vmem [#allocation0], 512
    %v2146 = vld [vmem:[%s2145] sm:%s1763]
    %s2147 = sshllo.u32 0, 4
    %s2148 = smul.addr 4, 64
    %s2149 = scalar_lea.vmem %s1, %s2148
    %2150 = vst [vmem:[%s2149] sm:%s2147] %v2146
    %s2151 = scalar_lea.vmem [#allocation0], 520
    %v2152 = vld [vmem:[%s2151] sm:%s1763]
    %s2153 = sshllo.u32 0, 4
    %s2154 = smul.addr 4, 65
    %s2155 = scalar_lea.vmem %s1, %s2154
    %2156 = vst [vmem:[%s2155] sm:%s2153] %v2152
    %s2157 = scalar_lea.vmem [#allocation0], 528
    %v2158 = vld [vmem:[%s2157] sm:%s1763]
    %s2159 = sshllo.u32 0, 4
    %s2160 = smul.addr 4, 66
    %s2161 = scalar_lea.vmem %s1, %s2160
    %2162 = vst [vmem:[%s2161] sm:%s2159] %v2158
    %s2163 = scalar_lea.vmem [#allocation0], 536
    %v2164 = vld [vmem:[%s2163] sm:%s1763]
    %s2165 = sshllo.u32 0, 4
    %s2166 = smul.addr 4, 67
    %s2167 = scalar_lea.vmem %s1, %s2166
    %2168 = vst [vmem:[%s2167] sm:%s2165] %v2164
    %s2169 = scalar_lea.vmem [#allocation0], 544
    %v2170 = vld [vmem:[%s2169] sm:%s1763]
    %s2171 = sshllo.u32 0, 4
    %s2172 = smul.addr 4, 68
    %s2173 = scalar_lea.vmem %s1, %s2172
    %2174 = vst [vmem:[%s2173] sm:%s2171] %v2170
    %s2175 = scalar_lea.vmem [#allocation0], 552
    %v2176 = vld [vmem:[%s2175] sm:%s1763]
    %s2177 = sshllo.u32 0, 4
    %s2178 = smul.addr 4, 69
    %s2179 = scalar_lea.vmem %s1, %s2178
    %2180 = vst [vmem:[%s2179] sm:%s2177] %v2176
    %s2181 = scalar_lea.vmem [#allocation0], 560
    %v2182 = vld [vmem:[%s2181] sm:%s1763]
    %s2183 = sshllo.u32 0, 4
    %s2184 = smul.addr 4, 70
    %s2185 = scalar_lea.vmem %s1, %s2184
    %2186 = vst [vmem:[%s2185] sm:%s2183] %v2182
    %s2187 = scalar_lea.vmem [#allocation0], 568
    %v2188 = vld [vmem:[%s2187] sm:%s1763]
    %s2189 = sshllo.u32 0, 4
    %s2190 = smul.addr 4, 71
    %s2191 = scalar_lea.vmem %s1, %s2190
    %2192 = vst [vmem:[%s2191] sm:%s2189] %v2188
    %s2193 = scalar_lea.vmem [#allocation0], 576
    %v2194 = vld [vmem:[%s2193] sm:%s1763]
    %s2195 = sshllo.u32 0, 4
    %s2196 = smul.addr 4, 72
    %s2197 = scalar_lea.vmem %s1, %s2196
    %2198 = vst [vmem:[%s2197] sm:%s2195] %v2194
    %s2199 = scalar_lea.vmem [#allocation0], 584
    %v2200 = vld [vmem:[%s2199] sm:%s1763]
    %s2201 = sshllo.u32 0, 4
    %s2202 = smul.addr 4, 73
    %s2203 = scalar_lea.vmem %s1, %s2202
    %2204 = vst [vmem:[%s2203] sm:%s2201] %v2200
    %s2205 = scalar_lea.vmem [#allocation0], 592
    %v2206 = vld [vmem:[%s2205] sm:%s1763]
    %s2207 = sshllo.u32 0, 4
    %s2208 = smul.addr 4, 74
    %s2209 = scalar_lea.vmem %s1, %s2208
    %2210 = vst [vmem:[%s2209] sm:%s2207] %v2206
    %s2211 = scalar_lea.vmem [#allocation0], 600
    %v2212 = vld [vmem:[%s2211] sm:%s1763]
    %s2213 = sshllo.u32 0, 4
    %s2214 = smul.addr 4, 75
    %s2215 = scalar_lea.vmem %s1, %s2214
    %2216 = vst [vmem:[%s2215] sm:%s2213] %v2212
    %s2217 = scalar_lea.vmem [#allocation0], 608
    %v2218 = vld [vmem:[%s2217] sm:%s1763]
    %s2219 = sshllo.u32 0, 4
    %s2220 = smul.addr 4, 76
    %s2221 = scalar_lea.vmem %s1, %s2220
    %2222 = vst [vmem:[%s2221] sm:%s2219] %v2218
    %s2223 = scalar_lea.vmem [#allocation0], 616
    %v2224 = vld [vmem:[%s2223] sm:%s1763]
    %s2225 = sshllo.u32 0, 4
    %s2226 = smul.addr 4, 77
    %s2227 = scalar_lea.vmem %s1, %s2226
    %2228 = vst [vmem:[%s2227] sm:%s2225] %v2224
    %s2229 = scalar_lea.vmem [#allocation0], 624
    %v2230 = vld [vmem:[%s2229] sm:%s1763]
    %s2231 = sshllo.u32 0, 4
    %s2232 = smul.addr 4, 78
    %s2233 = scalar_lea.vmem %s1, %s2232
    %2234 = vst [vmem:[%s2233] sm:%s2231] %v2230
    %s2235 = scalar_lea.vmem [#allocation0], 632
    %v2236 = vld [vmem:[%s2235] sm:%s1763]
    %s2237 = sshllo.u32 0, 4
    %s2238 = smul.addr 4, 79
    %s2239 = scalar_lea.vmem %s1, %s2238
    %2240 = vst [vmem:[%s2239] sm:%s2237] %v2236
    %s2241 = scalar_lea.vmem [#allocation0], 640
    %v2242 = vld [vmem:[%s2241] sm:%s1763]
    %s2243 = sshllo.u32 0, 4
    %s2244 = smul.addr 4, 80
    %s2245 = scalar_lea.vmem %s1, %s2244
    %2246 = vst [vmem:[%s2245] sm:%s2243] %v2242
    %s2247 = scalar_lea.vmem [#allocation0], 648
    %v2248 = vld [vmem:[%s2247] sm:%s1763]
    %s2249 = sshllo.u32 0, 4
    %s2250 = smul.addr 4, 81
    %s2251 = scalar_lea.vmem %s1, %s2250
    %2252 = vst [vmem:[%s2251] sm:%s2249] %v2248
    %s2253 = scalar_lea.vmem [#allocation0], 656
    %v2254 = vld [vmem:[%s2253] sm:%s1763]
    %s2255 = sshllo.u32 0, 4
    %s2256 = smul.addr 4, 82
    %s2257 = scalar_lea.vmem %s1, %s2256
    %2258 = vst [vmem:[%s2257] sm:%s2255] %v2254
    %s2259 = scalar_lea.vmem [#allocation0], 664
    %v2260 = vld [vmem:[%s2259] sm:%s1763]
    %s2261 = sshllo.u32 0, 4
    %s2262 = smul.addr 4, 83
    %s2263 = scalar_lea.vmem %s1, %s2262
    %2264 = vst [vmem:[%s2263] sm:%s2261] %v2260
    %s2265 = scalar_lea.vmem [#allocation0], 672
    %v2266 = vld [vmem:[%s2265] sm:%s1763]
    %s2267 = sshllo.u32 0, 4
    %s2268 = smul.addr 4, 84
    %s2269 = scalar_lea.vmem %s1, %s2268
    %2270 = vst [vmem:[%s2269] sm:%s2267] %v2266
    %s2271 = scalar_lea.vmem [#allocation0], 680
    %v2272 = vld [vmem:[%s2271] sm:%s1763]
    %s2273 = sshllo.u32 0, 4
    %s2274 = smul.addr 4, 85
    %s2275 = scalar_lea.vmem %s1, %s2274
    %2276 = vst [vmem:[%s2275] sm:%s2273] %v2272
    %s2277 = scalar_lea.vmem [#allocation0], 688
    %v2278 = vld [vmem:[%s2277] sm:%s1763]
    %s2279 = sshllo.u32 0, 4
    %s2280 = smul.addr 4, 86
    %s2281 = scalar_lea.vmem %s1, %s2280
    %2282 = vst [vmem:[%s2281] sm:%s2279] %v2278
    %s2283 = scalar_lea.vmem [#allocation0], 696
    %v2284 = vld [vmem:[%s2283] sm:%s1763]
    %s2285 = sshllo.u32 0, 4
    %s2286 = smul.addr 4, 87
    %s2287 = scalar_lea.vmem %s1, %s2286
    %2288 = vst [vmem:[%s2287] sm:%s2285] %v2284
    %s2289 = scalar_lea.vmem [#allocation0], 704
    %v2290 = vld [vmem:[%s2289] sm:%s1763]
    %s2291 = sshllo.u32 0, 4
    %s2292 = smul.addr 4, 88
    %s2293 = scalar_lea.vmem %s1, %s2292
    %2294 = vst [vmem:[%s2293] sm:%s2291] %v2290
    %s2295 = scalar_lea.vmem [#allocation0], 712
    %v2296 = vld [vmem:[%s2295] sm:%s1763]
    %s2297 = sshllo.u32 0, 4
    %s2298 = smul.addr 4, 89
    %s2299 = scalar_lea.vmem %s1, %s2298
    %2300 = vst [vmem:[%s2299] sm:%s2297] %v2296
    %s2301 = scalar_lea.vmem [#allocation0], 720
    %v2302 = vld [vmem:[%s2301] sm:%s1763]
    %s2303 = sshllo.u32 0, 4
    %s2304 = smul.addr 4, 90
    %s2305 = scalar_lea.vmem %s1, %s2304
    %2306 = vst [vmem:[%s2305] sm:%s2303] %v2302
    %s2307 = scalar_lea.vmem [#allocation0], 728
    %v2308 = vld [vmem:[%s2307] sm:%s1763]
    %s2309 = sshllo.u32 0, 4
    %s2310 = smul.addr 4, 91
    %s2311 = scalar_lea.vmem %s1, %s2310
    %2312 = vst [vmem:[%s2311] sm:%s2309] %v2308
    %s2313 = scalar_lea.vmem [#allocation0], 736
    %v2314 = vld [vmem:[%s2313] sm:%s1763]
    %s2315 = sshllo.u32 0, 4
    %s2316 = smul.addr 4, 92
    %s2317 = scalar_lea.vmem %s1, %s2316
    %2318 = vst [vmem:[%s2317] sm:%s2315] %v2314
    %s2319 = scalar_lea.vmem [#allocation0], 744
    %v2320 = vld [vmem:[%s2319] sm:%s1763]
    %s2321 = sshllo.u32 0, 4
    %s2322 = smul.addr 4, 93
    %s2323 = scalar_lea.vmem %s1, %s2322
    %2324 = vst [vmem:[%s2323] sm:%s2321] %v2320
    %s2325 = scalar_lea.vmem [#allocation0], 752
    %v2326 = vld [vmem:[%s2325] sm:%s1763]
    %s2327 = sshllo.u32 0, 4
    %s2328 = smul.addr 4, 94
    %s2329 = scalar_lea.vmem %s1, %s2328
    %2330 = vst [vmem:[%s2329] sm:%s2327] %v2326
    %s2331 = scalar_lea.vmem [#allocation0], 760
    %v2332 = vld [vmem:[%s2331] sm:%s1763]
    %s2333 = sshllo.u32 0, 4
    %s2334 = smul.addr 4, 95
    %s2335 = scalar_lea.vmem %s1, %s2334
    %2336 = vst [vmem:[%s2335] sm:%s2333] %v2332
    %s2337 = scalar_lea.vmem [#allocation0], 768
    %v2338 = vld [vmem:[%s2337] sm:%s1763]
    %s2339 = sshllo.u32 0, 4
    %s2340 = smul.addr 4, 96
    %s2341 = scalar_lea.vmem %s1, %s2340
    %2342 = vst [vmem:[%s2341] sm:%s2339] %v2338
    %s2343 = scalar_lea.vmem [#allocation0], 776
    %v2344 = vld [vmem:[%s2343] sm:%s1763]
    %s2345 = sshllo.u32 0, 4
    %s2346 = smul.addr 4, 97
    %s2347 = scalar_lea.vmem %s1, %s2346
    %2348 = vst [vmem:[%s2347] sm:%s2345] %v2344

// kernel: cbam_pallas.1
$region0: #{cbam_pallas.1}
  #allocation0 [shape = 'u32[]', space=smem, size = 0x4, offset = 0x4, fixed_abs, tag = 'smem constant byte address 0x4 - core index']
  #allocation1 [shape = 'u32[144,128]{1,0:T(1,128)}', space=vmem, size = 0x12000, scoped, tag = 'internal scratch']
  #allocation2 [shape = 'f32[2,8,256]{2,1,0:T(8,128)}', space=vmem, size = 0x4000, scoped, tag = 'scratch operand']
  #allocation3 [shape = 'f32[4,256]{1,0:T(4,128)}', space=vmem, size = 0x1000, scoped, tag = 'scratch operand']
  #allocation4 [shape = 'f32[8,4]{1,0:T(8,128)}', space=vmem, size = 0x1000, scoped, tag = 'scratch operand']
  %s0 = inlined_call_operand.vmem [shape: f32[4,8,256], index: 0, kind: input, shape index: {}]
  %s1 = inlined_call_operand.vmem [shape: f32[2,8], index: 1, kind: input, shape index: {}]
  %s2 = inlined_call_operand.vmem [shape: f32[8,2], index: 2, kind: input, shape index: {}]
  %s3 = inlined_call_operand.vmem [shape: f32[49,4,256], index: 3, kind: input, shape index: {}]
  %s4 = inlined_call_operand.vmem [shape: f32[4,8,256], index: 4, kind: output, shape index: {}]
  %s5 = sld [smem:[#allocation0]]
  $region49: #{cbam_pallas.1} parent=0
    _
  %s7 = ssub.s32 1, %s5
  %s8 = scalar_select 0, %s7, %s5
  loop: start=0, step=1, limit=4
  $region2: #{cbam_pallas.1} parent=0 // loop_pre_header
    _
  $region3: #{cbam_pallas.1} parent=0 // loop_header
    %s10 = sphi 0, %s14
    %p11 = scmp.ge.s32.totalorder %s10, 4
    %s20 = sphi 0, %s22
    %s23 = sphi 0, %s20
    %s24 = sphi 0, %s23
    %s40 = sphi 0, %s24
    %s44 = sphi 0, %s44
    %s46 = sphi 0, %s44
    %s47 = sphi 0, %s46
    %s61 = sphi 0, %s47
    %s65 = sphi 0, %s65
    %s67 = sphi 0, %s65
    %s68 = sphi 0, %s67
    %s82 = sphi 0, %s68
    %s86 = sphi 0, %s86
    %s88 = sphi 0, %s86
    %s89 = sphi 0, %s88
    %s103 = sphi 0, %s89
    %s109 = sphi 0, %s111
    %s112 = sphi 0, %s109
    %s113 = sphi 0, %s112
    %s129 = sphi 0, %s113
  $region4: #{cbam_pallas.1} parent=0 // loop_header_branch
    %13 = sbr.rel (%p11) target = $region8
  $region5: #{cbam_pallas.1} parent=0 // loop_body
    %s15 = ssub.s32 %s10, 1
    %s16 = ssub.s32 %s10, 2
    %s17 = sadd.s32 %s10, 1
    %s18 = ssub.s32 %s10, %s17
    %p19 = scmp.eq.s32.totalorder %s18, 0
    %s21 = sadd.s32 %s20, 1
    %s22 = scalar_select %p19, %s20, %s21
    %p25 = pneg %p19
    %p26 = scmp.eq.s32.totalorder %s10, 1
    %p27 = por %p25, %p26
    %p28 = scmp.ne.s32.totalorder %s20, %s23
    %p29 = scmp.eq.s32.totalorder %s10, 0
    %p30 = por %p28, %p29
    %p31 = scmp.ne.s32.totalorder %s20, %s23
    %p32 = scmp.eq.s32.totalorder %s15, 1
    %p33 = por %p31, %p32
    %p34 = scmp.ne.s32.totalorder %s23, %s24
    %p35 = scmp.eq.s32.totalorder %s15, 0
    %p36 = por %p34, %p35
    %p37 = scmp.ne.s32.totalorder %s23, %s24
    %p38 = scmp.eq.s32.totalorder %s16, 1
    %p39 = por %p37, %p38
    %p41 = scmp.ne.s32.totalorder %s24, %s40
    %p42 = scmp.eq.s32.totalorder %s16, 0
    %p43 = por %p41, %p42
    %s45 = sadd.s32 %s44, 1
    %p48 = scmp.eq.s32.totalorder %s10, 1
    %p49 = scmp.ne.s32.totalorder %s44, %s46
    %p50 = scmp.eq.s32.totalorder %s10, 0
    %p51 = por %p49, %p50
    %p52 = scmp.ne.s32.totalorder %s44, %s46
    %p53 = scmp.eq.s32.totalorder %s15, 1
    %p54 = por %p52, %p53
    %p55 = scmp.ne.s32.totalorder %s46, %s47
    %p56 = scmp.eq.s32.totalorder %s15, 0
    %p57 = por %p55, %p56
    %p58 = scmp.ne.s32.totalorder %s46, %s47
    %p59 = scmp.eq.s32.totalorder %s16, 1
    %p60 = por %p58, %p59
    %p62 = scmp.ne.s32.totalorder %s47, %s61
    %p63 = scmp.eq.s32.totalorder %s16, 0
    %p64 = por %p62, %p63
    %s66 = sadd.s32 %s65, 1
    %p69 = scmp.eq.s32.totalorder %s10, 1
    %p70 = scmp.ne.s32.totalorder %s65, %s67
    %p71 = scmp.eq.s32.totalorder %s10, 0
    %p72 = por %p70, %p71
    %p73 = scmp.ne.s32.totalorder %s65, %s67
    %p74 = scmp.eq.s32.totalorder %s15, 1
    %p75 = por %p73, %p74
    %p76 = scmp.ne.s32.totalorder %s67, %s68
    %p77 = scmp.eq.s32.totalorder %s15, 0
    %p78 = por %p76, %p77
    %p79 = scmp.ne.s32.totalorder %s67, %s68
    %p80 = scmp.eq.s32.totalorder %s16, 1
    %p81 = por %p79, %p80
    %p83 = scmp.ne.s32.totalorder %s68, %s82
    %p84 = scmp.eq.s32.totalorder %s16, 0
    %p85 = por %p83, %p84
    %s87 = sadd.s32 %s86, 1
    %p90 = scmp.eq.s32.totalorder %s10, 1
    %p91 = scmp.ne.s32.totalorder %s86, %s88
    %p92 = scmp.eq.s32.totalorder %s10, 0
    %p93 = por %p91, %p92
    %p94 = scmp.ne.s32.totalorder %s86, %s88
    %p95 = scmp.eq.s32.totalorder %s15, 1
    %p96 = por %p94, %p95
    %p97 = scmp.ne.s32.totalorder %s88, %s89
    %p98 = scmp.eq.s32.totalorder %s15, 0
    %p99 = por %p97, %p98
    %p100 = scmp.ne.s32.totalorder %s88, %s89
    %p101 = scmp.eq.s32.totalorder %s16, 1
    %p102 = por %p100, %p101
    %p104 = scmp.ne.s32.totalorder %s89, %s103
    %p105 = scmp.eq.s32.totalorder %s16, 0
    %p106 = por %p104, %p105
    %s107 = ssub.s32 %s10, %s17
    %p108 = scmp.eq.s32.totalorder %s107, 0
    %s110 = sadd.s32 %s109, 1
    %s111 = scalar_select %p108, %s109, %s110
    %p114 = pneg %p108
    %p115 = scmp.eq.s32.totalorder %s10, 1
    %p116 = por %p114, %p115
    %p117 = scmp.ne.s32.totalorder %s109, %s112
    %p118 = scmp.eq.s32.totalorder %s10, 0
    %p119 = por %p117, %p118
    %p120 = scmp.ne.s32.totalorder %s109, %s112
    %p121 = scmp.eq.s32.totalorder %s15, 1
    %p122 = por %p120, %p121
    %p123 = scmp.ne.s32.totalorder %s112, %s113
    %p124 = scmp.eq.s32.totalorder %s15, 0
    %p125 = por %p123, %p124
    %p126 = scmp.ne.s32.totalorder %s112, %s113
    %p127 = scmp.eq.s32.totalorder %s16, 1
    %p128 = por %p126, %p127
    %p130 = scmp.ne.s32.totalorder %s113, %s129
    %p131 = scmp.eq.s32.totalorder %s16, 0
    %p132 = por %p130, %p131
    %p133 = scmp.le.s32.totalorder 1, %s10
    %p134 = scmp.lt.s32.totalorder %s10, 3
    %p135 = pnand %p133, %p134
    %p136 = pneg %p135
    // Predicated region
    $region9: #{cbam_pallas.1} parent=5 // pred_check
      _
    $region10: #{cbam_pallas.1} parent=5 // pred_check_branch
      %138 = sbr.rel (%p135) target = $region12
    $region11: #{cbam_pallas.1} parent=5 // pred_region
      %s139 = ssub.s32 %s10, 1
      // Predicated region
      $region13: #{cbam_pallas.1} parent=11 // pred_check
        %p140 = pneg %p57
      $region14: #{cbam_pallas.1} parent=11 // pred_check_branch
        %142 = sbr.rel (%p140) target = $region16
      $region15: #{cbam_pallas.1} parent=11 // pred_region
        _
      $region16: #{cbam_pallas.1} parent=11 // pred_fallthru
        _
      // Predicated region
      $region17: #{cbam_pallas.1} parent=11 // pred_check
        %p143 = pneg %p78
      $region18: #{cbam_pallas.1} parent=11 // pred_check_branch
        %145 = sbr.rel (%p143) target = $region20
      $region19: #{cbam_pallas.1} parent=11 // pred_region
        _
      $region20: #{cbam_pallas.1} parent=11 // pred_fallthru
        _
      // Predicated region
      $region21: #{cbam_pallas.1} parent=11 // pred_check
        %p146 = pneg %p99
      $region22: #{cbam_pallas.1} parent=11 // pred_check_branch
        %148 = sbr.rel (%p146) target = $region24
      $region23: #{cbam_pallas.1} parent=11 // pred_region
        _
      $region24: #{cbam_pallas.1} parent=11 // pred_fallthru
        _
    $region12: #{cbam_pallas.1} parent=5 // pred_fallthru
      _
    %p149 = scmp.lt.s32.totalorder %s10, 2
    // Predicated region
    $region25: #{cbam_pallas.1} parent=5 // pred_check
      %p150 = pneg %p149
    $region26: #{cbam_pallas.1} parent=5 // pred_check_branch
      %152 = sbr.rel (%p150) target = $region28
    $region27: #{cbam_pallas.1} parent=5 // pred_region
      // Predicated region
      $region29: #{cbam_pallas.1} parent=27 // pred_check
        %p153 = pneg %p30
      $region30: #{cbam_pallas.1} parent=27 // pred_check_branch
        %155 = sbr.rel (%p153) target = $region32
      $region31: #{cbam_pallas.1} parent=27 // pred_region
        %s156 = smul.u32 2, %s10
        %p157 = scmp.lt.s32.totalorder %s156, 3
        %s158 = scalar_select %p157, %s156, 3
        %s159 = smul.addr %s158, 2
        %s160 = smul.addr %s159, 8
        %s161 = scalar_lea.vmem %s0, %s160
        %s162 = smul.u32 2, %s10
      $region32: #{cbam_pallas.1} parent=27 // pred_fallthru
        _
    $region28: #{cbam_pallas.1} parent=5 // pred_fallthru
      _
    %p163 = scmp.le.s32.totalorder 1, %s10
    %p164 = scmp.lt.s32.totalorder %s10, 3
    %p165 = pnand %p163, %p164
    %p166 = pneg %p165
    // Predicated region
    $region33: #{cbam_pallas.1} parent=5 // pred_check
      _
    $region34: #{cbam_pallas.1} parent=5 // pred_check_branch
      %168 = sbr.rel (%p165) target = $region36
    $region35: #{cbam_pallas.1} parent=5 // pred_region
      %s169 = ssub.s32 %s10, 1
      %s170 = smul.u32 2, %s15
      %p171 = scmp.lt.s32.totalorder %s170, 3
      %s172 = scalar_select %p171, %s170, 3
      %s173 = smul.addr %s172, 2
      %s174 = smul.addr %s173, 8
      %s175 = scalar_lea.vmem %s0, %s174
      %p176 = pneg %p36
      %p177 = pneg %p33
      %p178 = pneg %p57
      %p179 = pneg %p54
      %p180 = pneg %p78
      %p181 = pneg %p75
      %p182 = pneg %p99
      %p183 = pneg %p96
      %p184 = pneg %p125
      %p185 = pneg %p122
      %s186 = smul.u32 2, %s15
      %p187 = scmp.lt.s32.totalorder %s186, 3
      %s188 = scalar_select %p187, %s186, 3
      %s189 = smul.addr %s188, 2
      %s190 = smul.addr %s189, 8
      %s191 = scalar_lea.vmem %s4, %s190
      %s192 = smul.u32 2, %s15
      %p193 = scmp.lt.s32.totalorder %s192, 3
      %s194 = scalar_select %p193, %s192, 3
      %s195 = smul.addr %s194, 2
      %s196 = smul.addr %s195, 8
      %s197 = scalar_lea.vmem %s0, %s196
      %s198 = smul.u32 2, %s15
      %s199 = smul.u32 2, %s15
      %p200 = scmp.lt.s32.totalorder %s199, 3
      %s201 = scalar_select %p200, %s199, 3
      %s202 = smul.addr %s201, 2
      %s203 = smul.addr %s202, 8
      %s204 = scalar_lea.vmem %s4, %s203
      %s205 = smul.u32 2, %s15
      %v206 = vld [vmem:[%s197] sm:$0xff]
      %v207 = vld [vmem:[%s197 + $0x8] sm:$0xff]
      %v208 = vadd.f32 %v206, %v207
      %209 = vadd.xlane.f32.xlu0 %v208
      %v210 = vpop.xlane.xlu0 %209
      %v211 = vrcp.pop 256.0
      %v212 = vmul.f32 %v210, %v211
      %v213 = vmax.f32 %v206, %v207
      %214 = vmax.xlane.f32.xlu0 %v213
      %v215 = vpop.xlane.xlu0 %214
      %v216 = vlaneseq
      %v217 = vand.u32 %v216, 127
      %vm218 = vcmp.eq.s32.totalorder %v217, 0
      %v219 = vsel %vm218, %v212, %v215
      %vm220 = vcmask 15360
      %221 = vst.msk [vmem:[#allocation4] sm:$0xff] %vm220, %v219
      %s222 = scalar_lea.vmem %s197, 16
      %v223 = vld [vmem:[%s222] sm:$0xff]
      %v224 = vld [vmem:[%s222 + $0x8] sm:$0xff]
      %v225 = vadd.f32 %v223, %v224
      %226 = vadd.xlane.f32.xlu0 %v225
      %v227 = vpop.xlane.xlu0 %226
      %v228 = vmul.f32 %v227, %v211
      %v229 = vmax.f32 %v223, %v224
      %230 = vmax.xlane.f32.xlu0 %v229
      %v231 = vpop.xlane.xlu0 %230
      %v232 = vsel %vm218, %v228, %v231
      %234 = vrot.lane.b32.xlu0 %v232, 2
      %v235 = vpop.permute.xlu0 %234
      %vm237 = vcmask 31760
      %238 = vst.msk [vmem:[#allocation4] sm:$0xff] %vm237, %v235
      %v239 = vld [vmem:[#allocation4] sm:$0xff]
      %v240 = vld [vmem:[%s1] sm:$0x3]
      %vm241 = vcmask 64512
      %v243 = vsel %vm241, %v240, 0
      %245 = vmatprep.subr.mxu0 0.0
      %246 = vmatpush1.msra.mxu0 %v239
      %247 = vmatprep.subr.mxu0 0.0
      %248 = vmatpush1.msra.mxu0 0.0
      %249 = vmatprep.subr.mxu0 0.0
      %250 = vmatpush1.msra.mxu0 0.0
      %251 = vmatprep.subr.mxu0 0.0
      %252 = vmatpush1.msra.mxu0 0.0
      %253 = vmatprep.subr.mxu0 0.0
      %254 = vmatpush1.msra.mxu0 0.0
      %255 = vmatprep.subr.mxu0 0.0
      %256 = vmatpush1.msra.mxu0 0.0
      %257 = vmatprep.subr.mxu0 0.0
      %258 = vmatpush1.msra.mxu0 0.0
      %259 = vmatprep.subr.mxu0 0.0
      %260 = vmatpush1.msra.mxu0 0.0
      %261 = vmatprep.subr.mxu0 0.0
      %262 = vmatpush1.msra.mxu0 0.0
      %263 = vmatprep.subr.mxu0 0.0
      %264 = vmatpush1.msra.mxu0 0.0
      %265 = vmatprep.subr.mxu0 0.0
      %266 = vmatpush1.msra.mxu0 0.0
      %267 = vmatprep.subr.mxu0 0.0
      %268 = vmatpush1.msra.mxu0 0.0
      %269 = vmatprep.subr.mxu0 0.0
      %270 = vmatpush1.msra.mxu0 0.0
      %271 = vmatprep.subr.mxu0 0.0
      %272 = vmatpush1.msra.mxu0 0.0
      %273 = vmatprep.subr.mxu0 0.0
      %274 = vmatpush1.msra.mxu0 0.0
      %275 = vmatprep.subr.mxu0 0.0
      %276 = vmatpush1.msra.mxu0 0.0
      %277 = vmatprep.subr.mxu0 0.0
      %278 = vmatpush1.msra.mxu0 0.0
      %279 = vmatprep.subr.mxu0 0.0
      %280 = vmatpush1.msra.mxu0 0.0
      %281 = vmatprep.subr.mxu0 0.0
      %282 = vmatpush1.msra.mxu0 0.0
      %283 = vmatprep.subr.mxu0 0.0
      %284 = vmatpush1.msra.mxu0 0.0
      %285 = vmatprep.subr.mxu0 0.0
      %286 = vmatpush1.msra.mxu0 0.0
      %287 = vmatprep.subr.mxu0 0.0
      %288 = vmatpush1.msra.mxu0 0.0
      %289 = vmatprep.subr.mxu0 0.0
      %290 = vmatpush1.msra.mxu0 0.0
      %291 = vmatprep.subr.mxu0 0.0
      %292 = vmatpush1.msra.mxu0 0.0
      %293 = vmatprep.subr.mxu0 0.0
      %294 = vmatpush1.msra.mxu0 0.0
      %295 = vmatprep.subr.mxu0 0.0
      %296 = vmatpush1.msra.mxu0 0.0
      %297 = vmatprep.subr.mxu0 0.0
      %298 = vmatpush1.msra.mxu0 0.0
      %299 = vmatprep.subr.mxu0 0.0
      %300 = vmatpush1.msra.mxu0 0.0
      %301 = vmatprep.subr.mxu0 0.0
      %302 = vmatpush1.msra.mxu0 0.0
      %303 = vmatprep.subr.mxu0 0.0
      %304 = vmatpush1.msra.mxu0 0.0
      %305 = vmatprep.subr.mxu0 0.0
      %306 = vmatpush1.msra.mxu0 0.0
      %307 = vmatprep.subr.mxu0 0.0
      %308 = vmatpush1.msra.mxu0 0.0
      %309 = vmatprep.mubr.f32.mxu0 0.0
      %310 = vmatmul.mubr.f32.gmra.mrb[0].mxu0 %v243
      %v311 = vpop.f32.mrb[0].mxu0
      %v312 = vadd.f32 0.0, %v311
      %v313 = vpop.f32.mrb[0].mxu0
      %314 = vdwg.mxu0
      %v315 = vmax.f32 %v312, 0.0
      %v316 = vld [vmem:[%s2] sm:$0xff]
      %v318 = vsel %vm220, %v316, 0
      %vm320 = vcmask 1041408
      %v322 = vsel %vm320, %v315, 0
      %324 = vmatprep.subr.mxu0 0.0
      %325 = vmatpush1.msra.mxu0 %v322
      %326 = vmatprep.subr.mxu0 0.0
      %327 = vmatpush1.msra.mxu0 0.0
      %328 = vmatprep.subr.mxu0 0.0
      %329 = vmatpush1.msra.mxu0 0.0
      %330 = vmatprep.subr.mxu0 0.0
      %331 = vmatpush1.msra.mxu0 0.0
      %332 = vmatprep.subr.mxu0 0.0
      %333 = vmatpush1.msra.mxu0 0.0
      %334 = vmatprep.subr.mxu0 0.0
      %335 = vmatpush1.msra.mxu0 0.0
      %336 = vmatprep.subr.mxu0 0.0
      %337 = vmatpush1.msra.mxu0 0.0
      %338 = vmatprep.subr.mxu0 0.0
      %339 = vmatpush1.msra.mxu0 0.0
      %340 = vmatprep.subr.mxu0 0.0
      %341 = vmatpush1.msra.mxu0 0.0
      %342 = vmatprep.subr.mxu0 0.0
      %343 = vmatpush1.msra.mxu0 0.0
      %344 = vmatprep.subr.mxu0 0.0
      %345 = vmatpush1.msra.mxu0 0.0
      %346 = vmatprep.subr.mxu0 0.0
      %347 = vmatpush1.msra.mxu0 0.0
      %348 = vmatprep.subr.mxu0 0.0
      %349 = vmatpush1.msra.mxu0 0.0
      %350 = vmatprep.subr.mxu0 0.0
      %351 = vmatpush1.msra.mxu0 0.0
      %352 = vmatprep.subr.mxu0 0.0
      %353 = vmatpush1.msra.mxu0 0.0
      %354 = vmatprep.subr.mxu0 0.0
      %355 = vmatpush1.msra.mxu0 0.0
      %356 = vmatprep.subr.mxu0 0.0
      %357 = vmatpush1.msra.mxu0 0.0
      %358 = vmatprep.subr.mxu0 0.0
      %359 = vmatpush1.msra.mxu0 0.0
      %360 = vmatprep.subr.mxu0 0.0
      %361 = vmatpush1.msra.mxu0 0.0
      %362 = vmatprep.subr.mxu0 0.0
      %363 = vmatpush1.msra.mxu0 0.0
      %364 = vmatprep.subr.mxu0 0.0
      %365 = vmatpush1.msra.mxu0 0.0
      %366 = vmatprep.subr.mxu0 0.0
      %367 = vmatpush1.msra.mxu0 0.0
      %368 = vmatprep.subr.mxu0 0.0
      %369 = vmatpush1.msra.mxu0 0.0
      %370 = vmatprep.subr.mxu0 0.0
      %371 = vmatpush1.msra.mxu0 0.0
      %372 = vmatprep.subr.mxu0 0.0
      %373 = vmatpush1.msra.mxu0 0.0
      %374 = vmatprep.subr.mxu0 0.0
      %375 = vmatpush1.msra.mxu0 0.0
      %376 = vmatprep.subr.mxu0 0.0
      %377 = vmatpush1.msra.mxu0 0.0
      %378 = vmatprep.subr.mxu0 0.0
      %379 = vmatpush1.msra.mxu0 0.0
      %380 = vmatprep.subr.mxu0 0.0
      %381 = vmatpush1.msra.mxu0 0.0
      %382 = vmatprep.subr.mxu0 0.0
      %383 = vmatpush1.msra.mxu0 0.0
      %384 = vmatprep.subr.mxu0 0.0
      %385 = vmatpush1.msra.mxu0 0.0
      %386 = vmatprep.subr.mxu0 0.0
      %387 = vmatpush1.msra.mxu0 0.0
      %388 = vmatprep.mubr.f32.mxu0 0.0
      %389 = vmatmul.mubr.f32.gmra.mrb[0].mxu0 %v318
      %v390 = vpop.f32.mrb[0].mxu0
      %v391 = vadd.f32 0.0, %v390
      %v392 = vpop.f32.mrb[0].mxu0
      %393 = vdwg.mxu0
      %v394 = vld [vmem:[%s197] sm:$0xff]
      %v395 = vld [vmem:[%s197 + $0x8] sm:$0xff]
      %397 = vrot.lane.b32.xlu0 %v391, 127
      %v398 = vpop.permute.xlu0 %397
      %v400 = vadd.f32 %v391, %v398
      %v401 = vxor.u32 %v400, 2147483648
      %v402 = vmul.f32 %v401, 1.442695
      %v403 = vpow.pop %v402
      %v404 = vadd.f32 %v403, 1.0
      %v405 = vrcp.pop %v404
      %v406 = vmul.f32 1.0, %v405
      %408 = vset.pattern.permute.xlu0 0
      %409 = vperm.xlu0 %408, %v406
      %v410 = vpop.permute.xlu0 %409
      %v412 = vmul.f32 %v394, %v410
      %v413 = vmul.f32 %v395, %v410
      %414 = vst [vmem:[#allocation2] sm:$0xff] %v412
      %415 = vst [vmem:[#allocation2 + $0x8] sm:$0xff] %v413
      %v416 = vrot.slane %v412, 4
      %v417 = vadd.f32 %v412, %v416
      %v418 = vrot.slane %v417, 2
      %v419 = vadd.f32 %v417, %v418
      %v420 = vrot.slane %v419, 1
      %v421 = vadd.f32 %v419, %v420
      %v422 = vrot.slane %v413, 4
      %v423 = vadd.f32 %v413, %v422
      %v424 = vrot.slane %v423, 2
      %v425 = vadd.f32 %v423, %v424
      %v426 = vrot.slane %v425, 1
      %v427 = vadd.f32 %v425, %v426
      %v428 = vrcp.pop 8.0
      %v429 = vmul.f32 %v421, %v428
      %v430 = vmul.f32 %v427, %v428
      %v431 = vrot.slane %v412, 4
      %v432 = vmax.f32 %v412, %v431
      %v433 = vrot.slane %v432, 2
      %v434 = vmax.f32 %v432, %v433
      %v435 = vrot.slane %v434, 1
      %v436 = vmax.f32 %v434, %v435
      %v437 = vrot.slane %v413, 4
      %v438 = vmax.f32 %v413, %v437
      %v439 = vrot.slane %v438, 2
      %v440 = vmax.f32 %v438, %v439
      %v441 = vrot.slane %v440, 1
      %v442 = vmax.f32 %v440, %v441
      %v443 = vlaneseq
      %v444 = vshrl.u32 %v443, 7
      %vm445 = vcmp.eq.s32.totalorder %v444, 0
      %v446 = vsel %vm445, %v429, %v436
      %v447 = vsel %vm445, %v430, %v442
      %v450 = vcombine.low %v446, %v447
      %452 = vst [vmem:[#allocation3] sm:$0x33] %v450
      %v453 = vld [vmem:[%s222] sm:$0xff]
      %v454 = vld [vmem:[%s222 + $0x8] sm:$0xff]
      %455 = vset.pattern.permute.xlu0 2
      %456 = vperm.xlu0 %455, %v406
      %v457 = vpop.permute.xlu0 %456
      %v459 = vmul.f32 %v453, %v457
      %v460 = vmul.f32 %v454, %v457
      %s461 = scalar_lea.vmem [#allocation2], 16
      %462 = vst [vmem:[%s461] sm:$0xff] %v459
      %463 = vst [vmem:[%s461 + $0x8] sm:$0xff] %v460
      %v464 = vrot.slane %v459, 4
      %v465 = vadd.f32 %v459, %v464
      %v466 = vrot.slane %v465, 2
      %v467 = vadd.f32 %v465, %v466
      %v468 = vrot.slane %v467, 1
      %v469 = vadd.f32 %v467, %v468
      %v470 = vrot.slane %v460, 4
      %v471 = vadd.f32 %v460, %v470
      %v472 = vrot.slane %v471, 2
      %v473 = vadd.f32 %v471, %v472
      %v474 = vrot.slane %v473, 1
      %v475 = vadd.f32 %v473, %v474
      %v476 = vmul.f32 %v469, %v428
      %v477 = vmul.f32 %v475, %v428
      %v478 = vrot.slane %v459, 4
      %v479 = vmax.f32 %v459, %v478
      %v480 = vrot.slane %v479, 2
      %v481 = vmax.f32 %v479, %v480
      %v482 = vrot.slane %v481, 1
      %v483 = vmax.f32 %v481, %v482
      %v484 = vrot.slane %v460, 4
      %v485 = vmax.f32 %v460, %v484
      %v486 = vrot.slane %v485, 2
      %v487 = vmax.f32 %v485, %v486
      %v488 = vrot.slane %v487, 1
      %v489 = vmax.f32 %v487, %v488
      %v490 = vsel %vm445, %v476, %v483
      %v491 = vsel %vm445, %v477, %v489
      %v494 = vcombine.low %v490, %v491
      %v495 = vrot.slane %v494, 6
      %497 = vst [vmem:[#allocation3] sm:$0xcc] %v495
      %v498 = vld [vmem:[#allocation3] sm:$0xff]
      %v500 = vcombine.high %v498, %v498
      %502 = vrot.lane.b32.xlu0 %v498, 51
      %v503 = vpop.permute.xlu0 %502
      %504 = vrot.lane.b32.xlu0 %v500, 51
      %v505 = vpop.permute.xlu0 %504
      %vm506 = vcmp.lt.s32.totalorder %v217, 51
      %v507 = vsel %vm506, %v503, %v505
      %v508 = vsel %vm506, %v505, %v503
      %v509 = vld [vmem:[%s3] sm:$0xff]
      %v512 = vcombine.low %v508, %v507
      %v514 = vmul.f32 %v509, %v512
      %v515 = vadd.f32 %v514, 0.0
      %516 = vrot.lane.b32.xlu0 %v498, 50
      %v517 = vpop.permute.xlu0 %516
      %518 = vrot.lane.b32.xlu0 %v500, 50
      %v519 = vpop.permute.xlu0 %518
      %vm520 = vcmp.lt.s32.totalorder %v217, 50
      %v521 = vsel %vm520, %v517, %v519
      %v522 = vsel %vm520, %v519, %v517
      %s523 = scalar_lea.vmem %s3, 8
      %v524 = vld [vmem:[%s523] sm:$0xff]
      %v527 = vcombine.low %v522, %v521
      %v529 = vmul.f32 %v524, %v527
      %v530 = vadd.f32 %v515, %v529
      %531 = vrot.lane.b32.xlu0 %v498, 49
      %v532 = vpop.permute.xlu0 %531
      %533 = vrot.lane.b32.xlu0 %v500, 49
      %v534 = vpop.permute.xlu0 %533
      %vm535 = vcmp.lt.s32.totalorder %v217, 49
      %v536 = vsel %vm535, %v532, %v534
      %v537 = vsel %vm535, %v534, %v532
      %s538 = scalar_lea.vmem %s3, 16
      %v539 = vld [vmem:[%s538] sm:$0xff]
      %v542 = vcombine.low %v537, %v536
      %v544 = vmul.f32 %v539, %v542
      %v545 = vadd.f32 %v530, %v544
      %546 = vrot.lane.b32.xlu0 %v498, 48
      %v547 = vpop.permute.xlu0 %546
      %548 = vrot.lane.b32.xlu0 %v500, 48
      %v549 = vpop.permute.xlu0 %548
      %vm550 = vcmp.lt.s32.totalorder %v217, 48
      %v551 = vsel %vm550, %v547, %v549
      %v552 = vsel %vm550, %v549, %v547
      %s553 = scalar_lea.vmem %s3, 24
      %v554 = vld [vmem:[%s553] sm:$0xff]
      %v557 = vcombine.low %v552, %v551
      %v559 = vmul.f32 %v554, %v557
      %v560 = vadd.f32 %v545, %v559
      %561 = vrot.lane.b32.xlu0 %v498, 47
      %v562 = vpop.permute.xlu0 %561
      %563 = vrot.lane.b32.xlu0 %v500, 47
      %v564 = vpop.permute.xlu0 %563
      %vm565 = vcmp.lt.s32.totalorder %v217, 47
      %v566 = vsel %vm565, %v562, %v564
      %v567 = vsel %vm565, %v564, %v562
      %s568 = scalar_lea.vmem %s3, 32
      %v569 = vld [vmem:[%s568] sm:$0xff]
      %v572 = vcombine.low %v567, %v566
      %v574 = vmul.f32 %v569, %v572
      %v575 = vadd.f32 %v560, %v574
      %576 = vrot.lane.b32.xlu0 %v498, 46
      %v577 = vpop.permute.xlu0 %576
      %578 = vrot.lane.b32.xlu0 %v500, 46
      %v579 = vpop.permute.xlu0 %578
      %vm580 = vcmp.lt.s32.totalorder %v217, 46
      %v581 = vsel %vm580, %v577, %v579
      %v582 = vsel %vm580, %v579, %v577
      %s583 = scalar_lea.vmem %s3, 40
      %v584 = vld [vmem:[%s583] sm:$0xff]
      %v587 = vcombine.low %v582, %v581
      %v589 = vmul.f32 %v584, %v587
      %v590 = vadd.f32 %v575, %v589
      %591 = vrot.lane.b32.xlu0 %v498, 45
      %v592 = vpop.permute.xlu0 %591
      %593 = vrot.lane.b32.xlu0 %v500, 45
      %v594 = vpop.permute.xlu0 %593
      %vm595 = vcmp.lt.s32.totalorder %v217, 45
      %v596 = vsel %vm595, %v592, %v594
      %v597 = vsel %vm595, %v594, %v592
      %s598 = scalar_lea.vmem %s3, 48
      %v599 = vld [vmem:[%s598] sm:$0xff]
      %v602 = vcombine.low %v597, %v596
      %v604 = vmul.f32 %v599, %v602
      %v605 = vadd.f32 %v590, %v604
      %606 = vrot.lane.b32.xlu0 %v498, 35
      %v607 = vpop.permute.xlu0 %606
      %608 = vrot.lane.b32.xlu0 %v500, 35
      %v609 = vpop.permute.xlu0 %608
      %vm610 = vcmp.lt.s32.totalorder %v217, 35
      %v611 = vsel %vm610, %v607, %v609
      %v612 = vsel %vm610, %v609, %v607
      %s613 = scalar_lea.vmem %s3, 56
      %v614 = vld [vmem:[%s613] sm:$0xff]
      %v617 = vcombine.low %v612, %v611
      %v619 = vmul.f32 %v614, %v617
      %v620 = vadd.f32 %v605, %v619
      %621 = vrot.lane.b32.xlu0 %v498, 34
      %v622 = vpop.permute.xlu0 %621
      %623 = vrot.lane.b32.xlu0 %v500, 34
      %v624 = vpop.permute.xlu0 %623
      %vm625 = vcmp.lt.s32.totalorder %v217, 34
      %v626 = vsel %vm625, %v622, %v624
      %v627 = vsel %vm625, %v624, %v622
      %s628 = scalar_lea.vmem %s3, 64
      %v629 = vld [vmem:[%s628] sm:$0xff]
      %v632 = vcombine.low %v627, %v626
      %v634 = vmul.f32 %v629, %v632
      %v635 = vadd.f32 %v620, %v634
      %636 = vrot.lane.b32.xlu0 %v498, 33
      %v637 = vpop.permute.xlu0 %636
      %638 = vrot.lane.b32.xlu0 %v500, 33
      %v639 = vpop.permute.xlu0 %638
      %vm640 = vcmp.lt.s32.totalorder %v217, 33
      %v641 = vsel %vm640, %v637, %v639
      %v642 = vsel %vm640, %v639, %v637
      %s643 = scalar_lea.vmem %s3, 72
      %v644 = vld [vmem:[%s643] sm:$0xff]
      %v647 = vcombine.low %v642, %v641
      %v649 = vmul.f32 %v644, %v647
      %v650 = vadd.f32 %v635, %v649
      %651 = vrot.lane.b32.xlu0 %v498, 32
      %v652 = vpop.permute.xlu0 %651
      %653 = vrot.lane.b32.xlu0 %v500, 32
      %v654 = vpop.permute.xlu0 %653
      %vm655 = vcmp.lt.s32.totalorder %v217, 32
      %v656 = vsel %vm655, %v652, %v654
      %v657 = vsel %vm655, %v654, %v652
      %s658 = scalar_lea.vmem %s3, 80
      %v659 = vld [vmem:[%s658] sm:$0xff]
      %v662 = vcombine.low %v657, %v656
      %v664 = vmul.f32 %v659, %v662
      %v665 = vadd.f32 %v650, %v664
      %666 = vrot.lane.b32.xlu0 %v498, 31
      %v667 = vpop.permute.xlu0 %666
      %668 = vrot.lane.b32.xlu0 %v500, 31
      %v669 = vpop.permute.xlu0 %668
      %vm670 = vcmp.lt.s32.totalorder %v217, 31
      %v671 = vsel %vm670, %v667, %v669
      %v672 = vsel %vm670, %v669, %v667
      %s673 = scalar_lea.vmem %s3, 88
      %v674 = vld [vmem:[%s673] sm:$0xff]
      %v677 = vcombine.low %v672, %v671
      %v679 = vmul.f32 %v674, %v677
      %v680 = vadd.f32 %v665, %v679
      %681 = vrot.lane.b32.xlu0 %v498, 30
      %v682 = vpop.permute.xlu0 %681
      %683 = vrot.lane.b32.xlu0 %v500, 30
      %v684 = vpop.permute.xlu0 %683
      %vm685 = vcmp.lt.s32.totalorder %v217, 30
      %v686 = vsel %vm685, %v682, %v684
      %v687 = vsel %vm685, %v684, %v682
      %s688 = scalar_lea.vmem %s3, 96
      %v689 = vld [vmem:[%s688] sm:$0xff]
      %v692 = vcombine.low %v687, %v686
      %v694 = vmul.f32 %v689, %v692
      %v695 = vadd.f32 %v680, %v694
      %696 = vrot.lane.b32.xlu0 %v498, 29
      %v697 = vpop.permute.xlu0 %696
      %698 = vrot.lane.b32.xlu0 %v500, 29
      %v699 = vpop.permute.xlu0 %698
      %vm700 = vcmp.lt.s32.totalorder %v217, 29
      %v701 = vsel %vm700, %v697, %v699
      %v702 = vsel %vm700, %v699, %v697
      %s703 = scalar_lea.vmem %s3, 104
      %v704 = vld [vmem:[%s703] sm:$0xff]
      %v707 = vcombine.low %v702, %v701
      %v709 = vmul.f32 %v704, %v707
      %v710 = vadd.f32 %v695, %v709
      %711 = vrot.lane.b32.xlu0 %v498, 19
      %v712 = vpop.permute.xlu0 %711
      %713 = vrot.lane.b32.xlu0 %v500, 19
      %v714 = vpop.permute.xlu0 %713
      %vm715 = vcmp.lt.s32.totalorder %v217, 19
      %v716 = vsel %vm715, %v712, %v714
      %v717 = vsel %vm715, %v714, %v712
      %s718 = scalar_lea.vmem %s3, 112
      %v719 = vld [vmem:[%s718] sm:$0xff]
      %v722 = vcombine.low %v717, %v716
      %v724 = vmul.f32 %v719, %v722
      %v725 = vadd.f32 %v710, %v724
      %726 = vrot.lane.b32.xlu0 %v498, 18
      %v727 = vpop.permute.xlu0 %726
      %728 = vrot.lane.b32.xlu0 %v500, 18
      %v729 = vpop.permute.xlu0 %728
      %vm730 = vcmp.lt.s32.totalorder %v217, 18
      %v731 = vsel %vm730, %v727, %v729
      %v732 = vsel %vm730, %v729, %v727
      %s733 = scalar_lea.vmem %s3, 120
      %v734 = vld [vmem:[%s733] sm:$0xff]
      %v737 = vcombine.low %v732, %v731
      %v739 = vmul.f32 %v734, %v737
      %v740 = vadd.f32 %v725, %v739
      %741 = vrot.lane.b32.xlu0 %v498, 17
      %v742 = vpop.permute.xlu0 %741
      %743 = vrot.lane.b32.xlu0 %v500, 17
      %v744 = vpop.permute.xlu0 %743
      %vm745 = vcmp.lt.s32.totalorder %v217, 17
      %v746 = vsel %vm745, %v742, %v744
      %v747 = vsel %vm745, %v744, %v742
      %s748 = scalar_lea.vmem %s3, 128
      %v749 = vld [vmem:[%s748] sm:$0xff]
      %v752 = vcombine.low %v747, %v746
      %v754 = vmul.f32 %v749, %v752
      %v755 = vadd.f32 %v740, %v754
      %756 = vrot.lane.b32.xlu0 %v498, 16
      %v757 = vpop.permute.xlu0 %756
      %758 = vrot.lane.b32.xlu0 %v500, 16
      %v759 = vpop.permute.xlu0 %758
      %vm760 = vcmp.lt.s32.totalorder %v217, 16
      %v761 = vsel %vm760, %v757, %v759
      %v762 = vsel %vm760, %v759, %v757
      %s763 = scalar_lea.vmem %s3, 136
      %v764 = vld [vmem:[%s763] sm:$0xff]
      %v767 = vcombine.low %v762, %v761
      %v769 = vmul.f32 %v764, %v767
      %v770 = vadd.f32 %v755, %v769
      %771 = vrot.lane.b32.xlu0 %v498, 15
      %v772 = vpop.permute.xlu0 %771
      %773 = vrot.lane.b32.xlu0 %v500, 15
      %v774 = vpop.permute.xlu0 %773
      %vm775 = vcmp.lt.s32.totalorder %v217, 15
      %v776 = vsel %vm775, %v772, %v774
      %v777 = vsel %vm775, %v774, %v772
      %s778 = scalar_lea.vmem %s3, 144
      %v779 = vld [vmem:[%s778] sm:$0xff]
      %v782 = vcombine.low %v777, %v776
      %v784 = vmul.f32 %v779, %v782
      %v785 = vadd.f32 %v770, %v784
      %786 = vrot.lane.b32.xlu0 %v498, 14
      %v787 = vpop.permute.xlu0 %786
      %788 = vrot.lane.b32.xlu0 %v500, 14
      %v789 = vpop.permute.xlu0 %788
      %vm790 = vcmp.lt.s32.totalorder %v217, 14
      %v791 = vsel %vm790, %v787, %v789
      %v792 = vsel %vm790, %v789, %v787
      %s793 = scalar_lea.vmem %s3, 152
      %v794 = vld [vmem:[%s793] sm:$0xff]
      %v797 = vcombine.low %v792, %v791
      %v799 = vmul.f32 %v794, %v797
      %v800 = vadd.f32 %v785, %v799
      %801 = vrot.lane.b32.xlu0 %v498, 13
      %v802 = vpop.permute.xlu0 %801
      %803 = vrot.lane.b32.xlu0 %v500, 13
      %v804 = vpop.permute.xlu0 %803
      %vm805 = vcmp.lt.s32.totalorder %v217, 13
      %v806 = vsel %vm805, %v802, %v804
      %v807 = vsel %vm805, %v804, %v802
      %s808 = scalar_lea.vmem %s3, 160
      %v809 = vld [vmem:[%s808] sm:$0xff]
      %v812 = vcombine.low %v807, %v806
      %v814 = vmul.f32 %v809, %v812
      %v815 = vadd.f32 %v800, %v814
      %816 = vrot.lane.b32.xlu0 %v498, 3
      %v817 = vpop.permute.xlu0 %816
      %818 = vrot.lane.b32.xlu0 %v500, 3
      %v819 = vpop.permute.xlu0 %818
      %vm820 = vcmp.lt.s32.totalorder %v217, 3
      %v821 = vsel %vm820, %v817, %v819
      %v822 = vsel %vm820, %v819, %v817
      %s823 = scalar_lea.vmem %s3, 168
      %v824 = vld [vmem:[%s823] sm:$0xff]
      %v827 = vcombine.low %v822, %v821
      %v829 = vmul.f32 %v824, %v827
      %v830 = vadd.f32 %v815, %v829
      %831 = vrot.lane.b32.xlu0 %v498, 2
      %v832 = vpop.permute.xlu0 %831
      %833 = vrot.lane.b32.xlu0 %v500, 2
      %v834 = vpop.permute.xlu0 %833
      %vm835 = vcmp.lt.s32.totalorder %v217, 2
      %v836 = vsel %vm835, %v832, %v834
      %v837 = vsel %vm835, %v834, %v832
      %s838 = scalar_lea.vmem %s3, 176
      %v839 = vld [vmem:[%s838] sm:$0xff]
      %v842 = vcombine.low %v837, %v836
      %v844 = vmul.f32 %v839, %v842
      %v845 = vadd.f32 %v830, %v844
      %846 = vrot.lane.b32.xlu0 %v498, 1
      %v847 = vpop.permute.xlu0 %846
      %848 = vrot.lane.b32.xlu0 %v500, 1
      %v849 = vpop.permute.xlu0 %848
      %vm850 = vcmp.lt.s32.totalorder %v217, 1
      %v851 = vsel %vm850, %v847, %v849
      %v852 = vsel %vm850, %v849, %v847
      %s853 = scalar_lea.vmem %s3, 184
      %v854 = vld [vmem:[%s853] sm:$0xff]
      %v857 = vcombine.low %v852, %v851
      %v859 = vmul.f32 %v854, %v857
      %v860 = vadd.f32 %v845, %v859
      %s861 = scalar_lea.vmem %s3, 192
      %v862 = vld [vmem:[%s861] sm:$0xff]
      %v863 = vmul.f32 %v862, %v498
      %v864 = vadd.f32 %v860, %v863
      %865 = vrot.lane.b32.xlu0 %v498, 127
      %v866 = vpop.permute.xlu0 %865
      %867 = vrot.lane.b32.xlu0 %v500, 127
      %v868 = vpop.permute.xlu0 %867
      %vm869 = vcmp.lt.s32.totalorder %v217, 127
      %v870 = vsel %vm869, %v866, %v868
      %v871 = vsel %vm869, %v868, %v866
      %s872 = scalar_lea.vmem %s3, 200
      %v873 = vld [vmem:[%s872] sm:$0xff]
      %v876 = vcombine.low %v870, %v871
      %v878 = vmul.f32 %v873, %v876
      %v879 = vadd.f32 %v864, %v878
      %880 = vrot.lane.b32.xlu0 %v498, 126
      %v881 = vpop.permute.xlu0 %880
      %882 = vrot.lane.b32.xlu0 %v500, 126
      %v883 = vpop.permute.xlu0 %882
      %vm884 = vcmp.lt.s32.totalorder %v217, 126
      %v885 = vsel %vm884, %v881, %v883
      %v886 = vsel %vm884, %v883, %v881
      %s887 = scalar_lea.vmem %s3, 208
      %v888 = vld [vmem:[%s887] sm:$0xff]
      %v891 = vcombine.low %v885, %v886
      %v893 = vmul.f32 %v888, %v891
      %v894 = vadd.f32 %v879, %v893
      %895 = vrot.lane.b32.xlu0 %v498, 125
      %v896 = vpop.permute.xlu0 %895
      %897 = vrot.lane.b32.xlu0 %v500, 125
      %v898 = vpop.permute.xlu0 %897
      %vm899 = vcmp.lt.s32.totalorder %v217, 125
      %v900 = vsel %vm899, %v896, %v898
      %v901 = vsel %vm899, %v898, %v896
      %s902 = scalar_lea.vmem %s3, 216
      %v903 = vld [vmem:[%s902] sm:$0xff]
      %v906 = vcombine.low %v900, %v901
      %v908 = vmul.f32 %v903, %v906
      %v909 = vadd.f32 %v894, %v908
      %910 = vrot.lane.b32.xlu0 %v498, 115
      %v911 = vpop.permute.xlu0 %910
      %912 = vrot.lane.b32.xlu0 %v500, 115
      %v913 = vpop.permute.xlu0 %912
      %vm914 = vcmp.lt.s32.totalorder %v217, 115
      %v915 = vsel %vm914, %v911, %v913
      %v916 = vsel %vm914, %v913, %v911
      %s917 = scalar_lea.vmem %s3, 224
      %v918 = vld [vmem:[%s917] sm:$0xff]
      %v921 = vcombine.low %v915, %v916
      %v923 = vmul.f32 %v918, %v921
      %v924 = vadd.f32 %v909, %v923
      %925 = vrot.lane.b32.xlu0 %v498, 114
      %v926 = vpop.permute.xlu0 %925
      %927 = vrot.lane.b32.xlu0 %v500, 114
      %v928 = vpop.permute.xlu0 %927
      %vm929 = vcmp.lt.s32.totalorder %v217, 114
      %v930 = vsel %vm929, %v926, %v928
      %v931 = vsel %vm929, %v928, %v926
      %s932 = scalar_lea.vmem %s3, 232
      %v933 = vld [vmem:[%s932] sm:$0xff]
      %v936 = vcombine.low %v930, %v931
      %v938 = vmul.f32 %v933, %v936
      %v939 = vadd.f32 %v924, %v938
      %940 = vrot.lane.b32.xlu0 %v498, 113
      %v941 = vpop.permute.xlu0 %940
      %942 = vrot.lane.b32.xlu0 %v500, 113
      %v943 = vpop.permute.xlu0 %942
      %vm944 = vcmp.lt.s32.totalorder %v217, 113
      %v945 = vsel %vm944, %v941, %v943
      %v946 = vsel %vm944, %v943, %v941
      %s947 = scalar_lea.vmem %s3, 240
      %v948 = vld [vmem:[%s947] sm:$0xff]
      %v951 = vcombine.low %v945, %v946
      %v953 = vmul.f32 %v948, %v951
      %v954 = vadd.f32 %v939, %v953
      %955 = vrot.lane.b32.xlu0 %v498, 112
      %v956 = vpop.permute.xlu0 %955
      %957 = vrot.lane.b32.xlu0 %v500, 112
      %v958 = vpop.permute.xlu0 %957
      %vm959 = vcmp.lt.s32.totalorder %v217, 112
      %v960 = vsel %vm959, %v956, %v958
      %v961 = vsel %vm959, %v958, %v956
      %s962 = scalar_lea.vmem %s3, 248
      %v963 = vld [vmem:[%s962] sm:$0xff]
      %v966 = vcombine.low %v960, %v961
      %v968 = vmul.f32 %v963, %v966
      %v969 = vadd.f32 %v954, %v968
      %970 = vrot.lane.b32.xlu0 %v498, 111
      %v971 = vpop.permute.xlu0 %970
      %972 = vrot.lane.b32.xlu0 %v500, 111
      %v973 = vpop.permute.xlu0 %972
      %vm974 = vcmp.lt.s32.totalorder %v217, 111
      %v975 = vsel %vm974, %v971, %v973
      %v976 = vsel %vm974, %v973, %v971
      %s977 = scalar_lea.vmem %s3, 256
      %v978 = vld [vmem:[%s977] sm:$0xff]
      %v981 = vcombine.low %v975, %v976
      %v983 = vmul.f32 %v978, %v981
      %v984 = vadd.f32 %v969, %v983
      %985 = vrot.lane.b32.xlu0 %v498, 110
      %v986 = vpop.permute.xlu0 %985
      %987 = vrot.lane.b32.xlu0 %v500, 110
      %v988 = vpop.permute.xlu0 %987
      %vm989 = vcmp.lt.s32.totalorder %v217, 110
      %v990 = vsel %vm989, %v986, %v988
      %v991 = vsel %vm989, %v988, %v986
      %s992 = scalar_lea.vmem %s3, 264
      %v993 = vld [vmem:[%s992] sm:$0xff]
      %v996 = vcombine.low %v990, %v991
      %v998 = vmul.f32 %v993, %v996
      %v999 = vadd.f32 %v984, %v998
      %1000 = vrot.lane.b32.xlu0 %v498, 109
      %v1001 = vpop.permute.xlu0 %1000
      %1002 = vrot.lane.b32.xlu0 %v500, 109
      %v1003 = vpop.permute.xlu0 %1002
      %vm1004 = vcmp.lt.s32.totalorder %v217, 109
      %v1005 = vsel %vm1004, %v1001, %v1003
      %v1006 = vsel %vm1004, %v1003, %v1001
      %s1007 = scalar_lea.vmem %s3, 272
      %v1008 = vld [vmem:[%s1007] sm:$0xff]
      %v1011 = vcombine.low %v1005, %v1006
      %v1013 = vmul.f32 %v1008, %v1011
      %v1014 = vadd.f32 %v999, %v1013
      %1015 = vrot.lane.b32.xlu0 %v498, 99
      %v1016 = vpop.permute.xlu0 %1015
      %1017 = vrot.lane.b32.xlu0 %v500, 99
      %v1018 = vpop.permute.xlu0 %1017
      %vm1019 = vcmp.lt.s32.totalorder %v217, 99
      %v1020 = vsel %vm1019, %v1016, %v1018
      %v1021 = vsel %vm1019, %v1018, %v1016
      %s1022 = scalar_lea.vmem %s3, 280
      %v1023 = vld [vmem:[%s1022] sm:$0xff]
      %v1026 = vcombine.low %v1020, %v1021
      %v1028 = vmul.f32 %v1023, %v1026
      %v1029 = vadd.f32 %v1014, %v1028
      %1030 = vrot.lane.b32.xlu0 %v498, 98
      %v1031 = vpop.permute.xlu0 %1030
      %1032 = vrot.lane.b32.xlu0 %v500, 98
      %v1033 = vpop.permute.xlu0 %1032
      %vm1034 = vcmp.lt.s32.totalorder %v217, 98
      %v1035 = vsel %vm1034, %v1031, %v1033
      %v1036 = vsel %vm1034, %v1033, %v1031
      %s1037 = scalar_lea.vmem %s3, 288
      %v1038 = vld [vmem:[%s1037] sm:$0xff]
      %v1041 = vcombine.low %v1035, %v1036
      %v1043 = vmul.f32 %v1038, %v1041
      %v1044 = vadd.f32 %v1029, %v1043
      %1045 = vrot.lane.b32.xlu0 %v498, 97
      %v1046 = vpop.permute.xlu0 %1045
      %1047 = vrot.lane.b32.xlu0 %v500, 97
      %v1048 = vpop.permute.xlu0 %1047
      %vm1049 = vcmp.lt.s32.totalorder %v217, 97
      %v1050 = vsel %vm1049, %v1046, %v1048
      %v1051 = vsel %vm1049, %v1048, %v1046
      %s1052 = scalar_lea.vmem %s3, 296
      %v1053 = vld [vmem:[%s1052] sm:$0xff]
      %v1056 = vcombine.low %v1050, %v1051
      %v1058 = vmul.f32 %v1053, %v1056
      %v1059 = vadd.f32 %v1044, %v1058
      %1060 = vrot.lane.b32.xlu0 %v498, 96
      %v1061 = vpop.permute.xlu0 %1060
      %1062 = vrot.lane.b32.xlu0 %v500, 96
      %v1063 = vpop.permute.xlu0 %1062
      %vm1064 = vcmp.lt.s32.totalorder %v217, 96
      %v1065 = vsel %vm1064, %v1061, %v1063
      %v1066 = vsel %vm1064, %v1063, %v1061
      %s1067 = scalar_lea.vmem %s3, 304
      %v1068 = vld [vmem:[%s1067] sm:$0xff]
      %v1071 = vcombine.low %v1065, %v1066
      %v1073 = vmul.f32 %v1068, %v1071
      %v1074 = vadd.f32 %v1059, %v1073
      %1075 = vrot.lane.b32.xlu0 %v498, 95
      %v1076 = vpop.permute.xlu0 %1075
      %1077 = vrot.lane.b32.xlu0 %v500, 95
      %v1078 = vpop.permute.xlu0 %1077
      %vm1079 = vcmp.lt.s32.totalorder %v217, 95
      %v1080 = vsel %vm1079, %v1076, %v1078
      %v1081 = vsel %vm1079, %v1078, %v1076
      %s1082 = scalar_lea.vmem %s3, 312
      %v1083 = vld [vmem:[%s1082] sm:$0xff]
      %v1086 = vcombine.low %v1080, %v1081
      %v1088 = vmul.f32 %v1083, %v1086
      %v1089 = vadd.f32 %v1074, %v1088
      %1090 = vrot.lane.b32.xlu0 %v498, 94
      %v1091 = vpop.permute.xlu0 %1090
      %1092 = vrot.lane.b32.xlu0 %v500, 94
      %v1093 = vpop.permute.xlu0 %1092
      %vm1094 = vcmp.lt.s32.totalorder %v217, 94
      %v1095 = vsel %vm1094, %v1091, %v1093
      %v1096 = vsel %vm1094, %v1093, %v1091
      %s1097 = scalar_lea.vmem %s3, 320
      %v1098 = vld [vmem:[%s1097] sm:$0xff]
      %v1101 = vcombine.low %v1095, %v1096
      %v1103 = vmul.f32 %v1098, %v1101
      %v1104 = vadd.f32 %v1089, %v1103
      %1105 = vrot.lane.b32.xlu0 %v498, 93
      %v1106 = vpop.permute.xlu0 %1105
      %1107 = vrot.lane.b32.xlu0 %v500, 93
      %v1108 = vpop.permute.xlu0 %1107
      %vm1109 = vcmp.lt.s32.totalorder %v217, 93
      %v1110 = vsel %vm1109, %v1106, %v1108
      %v1111 = vsel %vm1109, %v1108, %v1106
      %s1112 = scalar_lea.vmem %s3, 328
      %v1113 = vld [vmem:[%s1112] sm:$0xff]
      %v1116 = vcombine.low %v1110, %v1111
      %v1118 = vmul.f32 %v1113, %v1116
      %v1119 = vadd.f32 %v1104, %v1118
      %1120 = vrot.lane.b32.xlu0 %v498, 83
      %v1121 = vpop.permute.xlu0 %1120
      %1122 = vrot.lane.b32.xlu0 %v500, 83
      %v1123 = vpop.permute.xlu0 %1122
      %vm1124 = vcmp.lt.s32.totalorder %v217, 83
      %v1125 = vsel %vm1124, %v1121, %v1123
      %v1126 = vsel %vm1124, %v1123, %v1121
      %s1127 = scalar_lea.vmem %s3, 336
      %v1128 = vld [vmem:[%s1127] sm:$0xff]
      %v1131 = vcombine.low %v1125, %v1126
      %v1133 = vmul.f32 %v1128, %v1131
      %v1134 = vadd.f32 %v1119, %v1133
      %1135 = vrot.lane.b32.xlu0 %v498, 82
      %v1136 = vpop.permute.xlu0 %1135
      %1137 = vrot.lane.b32.xlu0 %v500, 82
      %v1138 = vpop.permute.xlu0 %1137
      %vm1139 = vcmp.lt.s32.totalorder %v217, 82
      %v1140 = vsel %vm1139, %v1136, %v1138
      %v1141 = vsel %vm1139, %v1138, %v1136
      %s1142 = scalar_lea.vmem %s3, 344
      %v1143 = vld [vmem:[%s1142] sm:$0xff]
      %v1146 = vcombine.low %v1140, %v1141
      %v1148 = vmul.f32 %v1143, %v1146
      %v1149 = vadd.f32 %v1134, %v1148
      %1150 = vrot.lane.b32.xlu0 %v498, 81
      %v1151 = vpop.permute.xlu0 %1150
      %1152 = vrot.lane.b32.xlu0 %v500, 81
      %v1153 = vpop.permute.xlu0 %1152
      %vm1154 = vcmp.lt.s32.totalorder %v217, 81
      %v1155 = vsel %vm1154, %v1151, %v1153
      %v1156 = vsel %vm1154, %v1153, %v1151
      %s1157 = scalar_lea.vmem %s3, 352
      %v1158 = vld [vmem:[%s1157] sm:$0xff]
      %v1161 = vcombine.low %v1155, %v1156
      %v1163 = vmul.f32 %v1158, %v1161
      %v1164 = vadd.f32 %v1149, %v1163
      %1165 = vrot.lane.b32.xlu0 %v498, 80
      %v1166 = vpop.permute.xlu0 %1165
      %1167 = vrot.lane.b32.xlu0 %v500, 80
      %v1168 = vpop.permute.xlu0 %1167
      %vm1169 = vcmp.lt.s32.totalorder %v217, 80
      %v1170 = vsel %vm1169, %v1166, %v1168
      %v1171 = vsel %vm1169, %v1168, %v1166
      %s1172 = scalar_lea.vmem %s3, 360
      %v1173 = vld [vmem:[%s1172] sm:$0xff]
      %v1176 = vcombine.low %v1170, %v1171
      %v1178 = vmul.f32 %v1173, %v1176
      %v1179 = vadd.f32 %v1164, %v1178
      %1180 = vrot.lane.b32.xlu0 %v498, 79
      %v1181 = vpop.permute.xlu0 %1180
      %1182 = vrot.lane.b32.xlu0 %v500, 79
      %v1183 = vpop.permute.xlu0 %1182
      %vm1184 = vcmp.lt.s32.totalorder %v217, 79
      %v1185 = vsel %vm1184, %v1181, %v1183
      %v1186 = vsel %vm1184, %v1183, %v1181
      %s1187 = scalar_lea.vmem %s3, 368
      %v1188 = vld [vmem:[%s1187] sm:$0xff]
      %v1191 = vcombine.low %v1185, %v1186
      %v1193 = vmul.f32 %v1188, %v1191
      %v1194 = vadd.f32 %v1179, %v1193
      %1195 = vrot.lane.b32.xlu0 %v498, 78
      %v1196 = vpop.permute.xlu0 %1195
      %1197 = vrot.lane.b32.xlu0 %v500, 78
      %v1198 = vpop.permute.xlu0 %1197
      %vm1199 = vcmp.lt.s32.totalorder %v217, 78
      %v1200 = vsel %vm1199, %v1196, %v1198
      %v1201 = vsel %vm1199, %v1198, %v1196
      %s1202 = scalar_lea.vmem %s3, 376
      %v1203 = vld [vmem:[%s1202] sm:$0xff]
      %v1206 = vcombine.low %v1200, %v1201
      %v1208 = vmul.f32 %v1203, %v1206
      %v1209 = vadd.f32 %v1194, %v1208
      %1210 = vrot.lane.b32.xlu0 %v498, 77
      %v1211 = vpop.permute.xlu0 %1210
      %1212 = vrot.lane.b32.xlu0 %v500, 77
      %v1213 = vpop.permute.xlu0 %1212
      %vm1214 = vcmp.lt.s32.totalorder %v217, 77
      %v1215 = vsel %vm1214, %v1211, %v1213
      %v1216 = vsel %vm1214, %v1213, %v1211
      %s1217 = scalar_lea.vmem %s3, 384
      %v1218 = vld [vmem:[%s1217] sm:$0xff]
      %v1221 = vcombine.low %v1215, %v1216
      %v1223 = vmul.f32 %v1218, %v1221
      %v1224 = vadd.f32 %v1209, %v1223
      %v1226 = vrot.slane %v1224, 5
      %v1227 = vrot.slane %v1226, 4
      %v1229 = vadd.f32 %v1224, %v1227
      %v1230 = vxor.u32 %v1229, 2147483648
      %v1231 = vmul.f32 %v1230, 1.442695
      %v1232 = vpow.pop %v1231
      %v1233 = vadd.f32 %v1232, 1.0
      %v1234 = vrcp.pop %v1233
      %v1235 = vmul.f32 1.0, %v1234
      %v1236 = vld [vmem:[#allocation2] sm:$0xff]
      %v1237 = vld [vmem:[#allocation2 + $0x8] sm:$0xff]
      %v1239 = vlaneseq
      %v1240 = vshrl.u32 %v1239, 7
      %v1241 = vsub.s32 0, %v1240
      %v1242 = vrot.slane %v1235, %v1241
      %v1243 = vlaneseq
      %v1244 = vshrl.u32 %v1243, 7
      %v1245 = vsub.s32 4, %v1244
      %v1246 = vrot.slane %v1235, %v1245
      %v1249 = vlaneseq
      %v1250 = vshrl.u32 %v1249, 7
      %v1251 = vsub.s32 0, %v1250
      %v1252 = vrot.slane %v1242, %v1251
      %v1253 = vlaneseq
      %v1254 = vshrl.u32 %v1253, 7
      %v1255 = vsub.s32 0, %v1254
      %v1256 = vrot.slane %v1246, %v1255
      %v1257 = vmul.f32 %v1236, %v1252
      %v1258 = vmul.f32 %v1237, %v1256
      %1259 = vst [vmem:[%s204] sm:$0xff] %v1257
      %1260 = vst [vmem:[%s204 + $0x8] sm:$0xff] %v1258
      %v1261 = vld [vmem:[%s461] sm:$0xff]
      %v1262 = vld [vmem:[%s461 + $0x8] sm:$0xff]
      %v1263 = vlaneseq
      %v1264 = vshrl.u32 %v1263, 7
      %v1265 = vsub.s32 2, %v1264
      %v1266 = vrot.slane %v1235, %v1265
      %v1267 = vlaneseq
      %v1268 = vshrl.u32 %v1267, 7
      %v1269 = vsub.s32 6, %v1268
      %v1270 = vrot.slane %v1235, %v1269
      %v1273 = vlaneseq
      %v1274 = vshrl.u32 %v1273, 7
      %v1275 = vsub.s32 2, %v1274
      %v1276 = vrot.slane %v1266, %v1275
      %v1277 = vlaneseq
      %v1278 = vshrl.u32 %v1277, 7
      %v1279 = vsub.s32 2, %v1278
      %v1280 = vrot.slane %v1270, %v1279
      %v1281 = vmul.f32 %v1261, %v1276
      %v1282 = vmul.f32 %v1262, %v1280
      %s1283 = scalar_lea.vmem %s204, 16
      %1284 = vst [vmem:[%s1283] sm:$0xff] %v1281
      %1285 = vst [vmem:[%s1283 + $0x8] sm:$0xff] %v1282
      %s1286 = smul.u32 2, %s15
      %p1287 = scmp.lt.s32.totalorder %s1286, 3
      %s1288 = scalar_select %p1287, %s1286, 3
      %s1289 = smul.addr %s1288, 2
      %s1290 = smul.addr %s1289, 8
      %s1291 = scalar_lea.vmem %s4, %s1290
      // Predicated region
      $region37: #{cbam_pallas.1} parent=35 // pred_check
        %p1292 = pneg %p122
      $region38: #{cbam_pallas.1} parent=35 // pred_check_branch
        %1294 = sbr.rel (%p1292) target = $region40
      $region39: #{cbam_pallas.1} parent=35 // pred_region
        %s1295 = smul.u32 2, %s15
      $region40: #{cbam_pallas.1} parent=35 // pred_fallthru
        _
    $region36: #{cbam_pallas.1} parent=5 // pred_fallthru
      _
    %p1296 = scmp.le.s32.totalorder 2, %s10
    // Predicated region
    $region41: #{cbam_pallas.1} parent=5 // pred_check
      %p1297 = pneg %p1296
    $region42: #{cbam_pallas.1} parent=5 // pred_check_branch
      %1299 = sbr.rel (%p1297) target = $region44
    $region43: #{cbam_pallas.1} parent=5 // pred_region
      %s1300 = ssub.s32 %s10, 2
      // Predicated region
      $region45: #{cbam_pallas.1} parent=43 // pred_check
        %p1301 = pneg %p128
      $region46: #{cbam_pallas.1} parent=43 // pred_check_branch
        %1303 = sbr.rel (%p1301) target = $region48
      $region47: #{cbam_pallas.1} parent=43 // pred_region
        %s1304 = smul.u32 2, %s16
        %p1305 = scmp.lt.s32.totalorder %s1304, 3
        %s1306 = scalar_select %p1305, %s1304, 3
        %s1307 = smul.addr %s1306, 2
        %s1308 = smul.addr %s1307, 8
        %s1309 = scalar_lea.vmem %s4, %s1308
      $region48: #{cbam_pallas.1} parent=43 // pred_fallthru
        _
    $region44: #{cbam_pallas.1} parent=5 // pred_fallthru
      _
  $region6: #{cbam_pallas.1} parent=0 // loop_footer
    %s14 = sadd.s32 1, %s10
  $region7: #{cbam_pallas.1} parent=0 // loop_footer_branch
    %9 = sbr.rel target = $region3
  $region8: #{cbam_pallas.1} parent=0 // loop_exit
    _

</llo_original>
